<compile_context>
chip_gen: v6e
topology: v6e:2x2x1
jax: 0.10.0
libtpu: 0.0.40
codegen_flags: <defaults>
</compile_context>

<pallas_src>
import math
import jax
import jax.numpy as jnp
from jax.experimental import pallas as pl
from jax.experimental.pallas import tpu as pltpu

K_PAD = 64           # sublane-aligned contraction pad (max real in-dim is 55)
N_PAD = 128          # lane-aligned output pad (max real out-dim is 55)
LEAKY_SLOPE = 0.01   # PyTorch nn.LeakyReLU default


# ----------------------------------------------------------------------------
# Reproduce the layer-size generation logic from the PyTorch module (shapes only).
# ----------------------------------------------------------------------------
def gen_even_step_dims(starting_dim, end_dim, layer_number):
    dim_step_size = (end_dim - starting_dim) / layer_number
    last_out_dim = starting_dim
    next_out_dim = starting_dim + dim_step_size
    if end_dim > starting_dim:
        end_cond = lambda d: d < end_dim
    else:
        end_cond = lambda d: d > end_dim
    dims = []
    while end_cond(next_out_dim):
        dims.append((int(last_out_dim), int(next_out_dim)))
        last_out_dim = next_out_dim
        next_out_dim = last_out_dim + dim_step_size
    return dims, last_out_dim


def build_layer_dims(input_dim):
    dims_up, last_dim = gen_even_step_dims(input_dim, 100, layer_number=2)
    dims_down, last_dim = gen_even_step_dims(last_dim, 5, layer_number=10)
    layer_dims = dims_up + dims_down
    layer_dims.append((int(last_dim), 1))   # final Linear(last_dim, 1) after LeakyReLU
    return layer_dims


# ----------------------------------------------------------------------------
# Pallas kernel: full MLP forward for one batch tile (all 11 matmuls fused).
# ----------------------------------------------------------------------------
def mlp_kernel(x_ref, w_ref, b_ref, out_ref, x0_ref):
    # x_ref:   (TILE_B, in_dim)        f32, UNPADDED input rows
    # w_ref:   (L, K_PAD, N_PAD)       bf16 (or f32) zero-padded weights (VMEM-resident)
    # b_ref:   (L, 1, N_PAD)           f32 zero-padded biases           (VMEM-resident)
    # out_ref: (TILE_B, 1)             f32, narrow output block
    # x0_ref:  (TILE_B, K_PAD)         f32 scratch: lane-zero-extended first activations
    n_layers, k_pad, _ = w_ref.shape
    in_dim = x_ref.shape[1]
    mm_dtype = w_ref.dtype               # matmul input dtype (bf16 default)

    # Zero-extend the (TILE_B, in_dim) input to K_PAD lanes inside the kernel.
    # Padding with exact zeros is correct: padded weight rows/cols and biases
    # are zero and tanh(0) = LeakyReLU(0) = 0, so padded lanes stay zero.
    # Re-zero every grid step (cheap) so megacore grid sharding stays correct.
    x0_ref[...] = jnp.zeros_like(x0_ref)
    x0_ref[:, :in_dim] = x_ref[...]
    h = x0_ref[...]                       # (TILE_B, K_PAD) f32

    # Static (unrolled) layer loop keeps the dependent matmul chain visible to
    # the LLO scheduler so MXU push/pop and EUP tanh of adjacent layers interleave.
    for i in range(n_layers):
        z = jnp.dot(h[:, :k_pad].astype(mm_dtype), w_ref[i],
                    preferred_element_type=jnp.float32) + b_ref[i]
        if i < n_layers - 2:
            h = jnp.tanh(z)                               # Tanh between linears (f32 EUP)
        elif i == n_layers - 2:
            h = jnp.where(z >= 0.0, z, LEAKY_SLOPE * z)   # LeakyReLU before final Linear
        else:
            h = z                                         # final Linear, no activation
    out_ref[...] = h[:, :1]               # only column 0 is real -> 1-lane writeback


# ----------------------------------------------------------------------------
# Wrapper: tile the batch, keep the packed weights resident, call the kernel.
# ----------------------------------------------------------------------------
def tanh_leakyrelu_forward(x, w_packed, b_packed, *, tile_b=None):
    """x: (batch, input_dim) f32.  w_packed: (L,K_PAD,N_PAD).  b_packed: (L,1,N_PAD)."""
    x = x.astype(jnp.float32)
    batch, in_dim = x.shape
    n_layers, k_pad, n_pad = w_packed.shape

    if tile_b is None:
        # Bigger tiles amortize MXU fill/drain and grid-step overhead; VMEM cost
        # is ~1-2 MiB even at 512, fine on all generations (incl. v7x 64 MiB).
        tile_b = 512 if batch >= 1024 else (256 if batch >= 256 else 128)
    assert tile_b % 8 == 0

    padded_batch = pl.cdiv(batch, tile_b) * tile_b
    grid = (padded_batch // tile_b,)

    # Advisory cost hint for XLA's scheduler (tiny, DMA/latency-bound kernel).
    flops = 2 * padded_batch * n_layers * k_pad * n_pad
    transcendentals = padded_batch * n_pad * (n_layers - 2)
    bytes_accessed = (x.size * 4
                      + w_packed.size * w_packed.dtype.itemsize
                      + b_packed.size * 4
                      + padded_batch * 4)

    out = pl.pallas_call(
        mlp_kernel,
        out_shape=jax.ShapeDtypeStruct((padded_batch, 1), jnp.float32),
        grid_spec=pltpu.PrefetchScalarGridSpec(
            num_scalar_prefetch=0,
            grid=grid,
            in_specs=[
                # Unpadded input rows: last block dim equals full array dim (legal).
                pl.BlockSpec((tile_b, in_dim), lambda i: (i, 0)),
                # Packed weights/biases: constant index_map -> resident in VMEM.
                pl.BlockSpec((n_layers, k_pad, n_pad), lambda i: (0, 0, 0)),
                pl.BlockSpec((n_layers, 1, n_pad), lambda i: (0, 0, 0)),
            ],
            # Narrow output block: 1 real column, last dim == full array dim.
            out_specs=pl.BlockSpec((tile_b, 1), lambda i: (i, 0)),
            scratch_shapes=[pltpu.VMEM((tile_b, k_pad), jnp.float32)],
        ),
        compiler_params=pltpu.CompilerParams(
            dimension_semantics=("parallel",),     # shard batch tiles across TCs on v7x
        ),
        cost_estimate=pl.CostEstimate(
            flops=int(flops),
            transcendentals=int(transcendentals),
            bytes_accessed=int(bytes_accessed),
        ),
    )(x, w_packed, b_packed)

    return out[:batch] if padded_batch != batch else out


# ----------------------------------------------------------------------------
# Parameter init (PyTorch-style uniform(-1/sqrt(in), 1/sqrt(in))) and packing.
# ----------------------------------------------------------------------------
def init_params(layer_dims, key):
    params = []
    for (d_in, d_out) in layer_dims:
        key, kw, kb = jax.random.split(key, 3)
        bound = 1.0 / math.sqrt(d_in)
        w = jax.random.uniform(kw, (d_in, d_out), jnp.float32, -bound, bound)
        b = jax.random.uniform(kb, (1, d_out), jnp.float32, -bound, bound)
        params.extend([w, b])
    return params


def pack_params(layer_dims, params, *, matmul_dtype=jnp.bfloat16):
    """Pack per-layer (in,out) weights into a zero-padded (L,K_PAD,N_PAD) bf16 slab
    and (1,out) biases into a zero-padded (L,1,N_PAD) f32 slab."""
    n = len(layer_dims)
    assert max(d_in for d_in, _ in layer_dims) <= K_PAD
    assert max(d_out for _, d_out in layer_dims) <= N_PAD
    w_packed = jnp.zeros((n, K_PAD, N_PAD), matmul_dtype)
    b_packed = jnp.zeros((n, 1, N_PAD), jnp.float32)
    for i, (d_in, d_out) in enumerate(layer_dims):
        w_packed = w_packed.at[i, :d_in, :d_out].set(params[2 * i].astype(matmul_dtype))
        b_packed = b_packed.at[i, 0, :d_out].set(params[2 * i + 1].reshape(-1))
    return w_packed, b_packed


# Pure-JAX reference.  matmul_dtype=bf16 reproduces the kernel's casting exactly
# (bf16 matmul inputs, f32 accumulation/bias/activations); f32 is the "true" model.
def reference_forward(x, params, *, matmul_dtype=jnp.float32):
    n_lin = len(params) // 2
    h = x
    for i in range(n_lin):
        z = jnp.dot(h.astype(matmul_dtype), params[2 * i].astype(matmul_dtype),
                    preferred_element_type=jnp.float32) + params[2 * i + 1]
        if i < n_lin - 2:
            h = jnp.tanh(z)
        elif i == n_lin - 2:
            h = jnp.where(z >= 0.0, z, LEAKY_SLOPE * z)
        else:
            h = z
    return h


if __name__ == "__main__":
    input_dim = 10
    batch = 512        # -> tile_b=256, 2 batch tiles: exercises the grid / TC sharding

    layer_dims = build_layer_dims(input_dim)   # [(10,55),(55,50),...,(15,10),(10,1)]

    key = jax.random.PRNGKey(0)
    key, kx = jax.random.split(key)
    x = jax.random.normal(kx, (batch, input_dim), jnp.float32)
    params = init_params(layer_dims, key)
    w_packed, b_packed = pack_params(layer_dims, params)   # bf16 weights by default

    y = tanh_leakyrelu_forward(x, w_packed, b_packed)
    y = jax.block_until_ready(y)
    assert y.shape == (batch, 1)

    # Tight check vs a reference that applies the same bf16 matmul-input casting.
    y_ref_bf16 = reference_forward(x, params, matmul_dtype=jnp.bfloat16)
    assert jnp.allclose(y, y_ref_bf16, atol=2e-3, rtol=2e-3), \
        float(jnp.max(jnp.abs(y - y_ref_bf16)))

    # Loose sanity check vs the full-f32 model (bf16 rounding accumulates slightly).
    y_ref_f32 = reference_forward(x, params, matmul_dtype=jnp.float32)
    assert jnp.allclose(y, y_ref_f32, atol=5e-2, rtol=5e-2), \
        float(jnp.max(jnp.abs(y - y_ref_f32)))

    print("KERNEL_OK")
</pallas_src>

<mosaic_0001>
module attributes {stable_mosaic.version = 11 : i64} {
  func.func @mlp_kernel(%arg0: i32, %arg1: memref<256x10xf32, #tpu.memory_space<vmem>>, %arg2: memref<11x64x128xbf16, #tpu.memory_space<vmem>>, %arg3: memref<11x1x128xf32, #tpu.memory_space<vmem>>, %arg4: memref<256x1xf32, #tpu.memory_space<vmem>>, %arg5: memref<256x64xf32, #tpu.memory_space<vmem>>) attributes {dimension_semantics = [#tpu.dimension_semantics<parallel>], iteration_bounds = array<i64: 2>, scalar_prefetch = 0 : i64, scratch_operands = 1 : i64, tpu.core_type = #tpu.core_type<tc>, window_params = [{transform_indices = @transform_0, window_bounds = array<i64: 256, 10>}, {pipeline_mode = #tpu.pipeline_mode<synchronous>, transform_indices = @transform_1, window_bounds = array<i64: 11, 64, 128>}, {pipeline_mode = #tpu.pipeline_mode<synchronous>, transform_indices = @transform_2, window_bounds = array<i64: 11, 1, 128>}, {transform_indices = @transform_3, window_bounds = array<i64: 256, 1>}]} {
    %cst = arith.constant 0.000000e+00 : f32
    %0 = vector.broadcast %cst : f32 to vector<256x64xf32>
    %c0 = arith.constant 0 : index
    %c0_0 = arith.constant 0 : index
    %1 = vector.load %arg5[%c0, %c0_0] : memref<256x64xf32, #tpu.memory_space<vmem>>, vector<256x64xf32>
    tpu.vector_store %arg5[%c0, %c0_0], %0 {strides = array<i32>} : memref<256x64xf32, #tpu.memory_space<vmem>>, vector<256x64xf32>,
    %c0_1 = arith.constant 0 : index
    %c0_2 = arith.constant 0 : index
    %2 = vector.load %arg1[%c0_1, %c0_2] : memref<256x10xf32, #tpu.memory_space<vmem>>, vector<256x10xf32>
    %c0_3 = arith.constant 0 : index
    %c0_4 = arith.constant 0 : index
    %3 = vector.load %arg5[%c0_3, %c0_4] : memref<256x64xf32, #tpu.memory_space<vmem>>, vector<256x10xf32>
    tpu.vector_store %arg5[%c0_3, %c0_4], %2 {strides = array<i32>} : memref<256x64xf32, #tpu.memory_space<vmem>>, vector<256x10xf32>,
    %c0_5 = arith.constant 0 : index
    %c0_6 = arith.constant 0 : index
    %4 = vector.load %arg5[%c0_5, %c0_6] : memref<256x64xf32, #tpu.memory_space<vmem>>, vector<256x64xf32>
    %5 = arith.truncf %4 : vector<256x64xf32> to vector<256x64xbf16>
    %c0_7 = arith.constant 0 : index
    %c0_8 = arith.constant 0 : index
    %c0_9 = arith.constant 0 : index
    %6 = vector.load %arg2[%c0_7, %c0_8, %c0_9] : memref<11x64x128xbf16, #tpu.memory_space<vmem>>, vector<1x64x128xbf16>
    %7 = vector.shape_cast %6 : vector<1x64x128xbf16> to vector<64x128xbf16>
    %cst_10 = arith.constant dense<0.000000e+00> : vector<256x128xf32>
    %8 = tpu.matmul %5, %7, %cst_10 {dimension_numbers = #tpu.dot_dimension_numbers<[1], [0], [0], [1], [0, 0, 1, 1], [], []>} : vector<256x64xbf16>, vector<64x128xbf16>, vector<256x128xf32> -> vector<256x128xf32>
    %c0_11 = arith.constant 0 : index
    %c0_12 = arith.constant 0 : index
    %c0_13 = arith.constant 0 : index
    %9 = vector.load %arg3[%c0_11, %c0_12, %c0_13] : memref<11x1x128xf32, #tpu.memory_space<vmem>>, vector<1x1x128xf32>
    %10 = vector.shape_cast %9 : vector<1x1x128xf32> to vector<1x128xf32>
    %11 = vector.broadcast %10 : vector<1x128xf32> to vector<256x128xf32>
    %12 = arith.addf %8, %11 : vector<256x128xf32>
    %13 = math.tanh %12 : vector<256x128xf32>
    %14 = vector.extract_strided_slice %13 {offsets = [0, 0], sizes = [256, 64], strides = [1, 1]} : vector<256x128xf32> to vector<256x64xf32>
    %15 = arith.truncf %14 : vector<256x64xf32> to vector<256x64xbf16>
    %c1 = arith.constant 1 : index
    %c0_14 = arith.constant 0 : index
    %c0_15 = arith.constant 0 : index
    %16 = vector.load %arg2[%c1, %c0_14, %c0_15] : memref<11x64x128xbf16, #tpu.memory_space<vmem>>, vector<1x64x128xbf16>
    %17 = vector.shape_cast %16 : vector<1x64x128xbf16> to vector<64x128xbf16>
    %cst_16 = arith.constant dense<0.000000e+00> : vector<256x128xf32>
    %18 = tpu.matmul %15, %17, %cst_16 {dimension_numbers = #tpu.dot_dimension_numbers<[1], [0], [0], [1], [0, 0, 1, 1], [], []>} : vector<256x64xbf16>, vector<64x128xbf16>, vector<256x128xf32> -> vector<256x128xf32>
    %c1_17 = arith.constant 1 : index
    %c0_18 = arith.constant 0 : index
    %c0_19 = arith.constant 0 : index
    %19 = vector.load %arg3[%c1_17, %c0_18, %c0_19] : memref<11x1x128xf32, #tpu.memory_space<vmem>>, vector<1x1x128xf32>
    %20 = vector.shape_cast %19 : vector<1x1x128xf32> to vector<1x128xf32>
    %21 = vector.broadcast %20 : vector<1x128xf32> to vector<256x128xf32>
    %22 = arith.addf %18, %21 : vector<256x128xf32>
    %23 = math.tanh %22 : vector<256x128xf32>
    %24 = vector.extract_strided_slice %23 {offsets = [0, 0], sizes = [256, 64], strides = [1, 1]} : vector<256x128xf32> to vector<256x64xf32>
    %25 = arith.truncf %24 : vector<256x64xf32> to vector<256x64xbf16>
    %c2 = arith.constant 2 : index
    %c0_20 = arith.constant 0 : index
    %c0_21 = arith.constant 0 : index
    %26 = vector.load %arg2[%c2, %c0_20, %c0_21] : memref<11x64x128xbf16, #tpu.memory_space<vmem>>, vector<1x64x128xbf16>
    %27 = vector.shape_cast %26 : vector<1x64x128xbf16> to vector<64x128xbf16>
    %cst_22 = arith.constant dense<0.000000e+00> : vector<256x128xf32>
    %28 = tpu.matmul %25, %27, %cst_22 {dimension_numbers = #tpu.dot_dimension_numbers<[1], [0], [0], [1], [0, 0, 1, 1], [], []>} : vector<256x64xbf16>, vector<64x128xbf16>, vector<256x128xf32> -> vector<256x128xf32>
    %c2_23 = arith.constant 2 : index
    %c0_24 = arith.constant 0 : index
    %c0_25 = arith.constant 0 : index
    %29 = vector.load %arg3[%c2_23, %c0_24, %c0_25] : memref<11x1x128xf32, #tpu.memory_space<vmem>>, vector<1x1x128xf32>
    %30 = vector.shape_cast %29 : vector<1x1x128xf32> to vector<1x128xf32>
    %31 = vector.broadcast %30 : vector<1x128xf32> to vector<256x128xf32>
    %32 = arith.addf %28, %31 : vector<256x128xf32>
    %33 = math.tanh %32 : vector<256x128xf32>
    %34 = vector.extract_strided_slice %33 {offsets = [0, 0], sizes = [256, 64], strides = [1, 1]} : vector<256x128xf32> to vector<256x64xf32>
    %35 = arith.truncf %34 : vector<256x64xf32> to vector<256x64xbf16>
    %c3 = arith.constant 3 : index
    %c0_26 = arith.constant 0 : index
    %c0_27 = arith.constant 0 : index
    %36 = vector.load %arg2[%c3, %c0_26, %c0_27] : memref<11x64x128xbf16, #tpu.memory_space<vmem>>, vector<1x64x128xbf16>
    %37 = vector.shape_cast %36 : vector<1x64x128xbf16> to vector<64x128xbf16>
    %cst_28 = arith.constant dense<0.000000e+00> : vector<256x128xf32>
    %38 = tpu.matmul %35, %37, %cst_28 {dimension_numbers = #tpu.dot_dimension_numbers<[1], [0], [0], [1], [0, 0, 1, 1], [], []>} : vector<256x64xbf16>, vector<64x128xbf16>, vector<256x128xf32> -> vector<256x128xf32>
    %c3_29 = arith.constant 3 : index
    %c0_30 = arith.constant 0 : index
    %c0_31 = arith.constant 0 : index
    %39 = vector.load %arg3[%c3_29, %c0_30, %c0_31] : memref<11x1x128xf32, #tpu.memory_space<vmem>>, vector<1x1x128xf32>
    %40 = vector.shape_cast %39 : vector<1x1x128xf32> to vector<1x128xf32>
    %41 = vector.broadcast %40 : vector<1x128xf32> to vector<256x128xf32>
    %42 = arith.addf %38, %41 : vector<256x128xf32>
    %43 = math.tanh %42 : vector<256x128xf32>
    %44 = vector.extract_strided_slice %43 {offsets = [0, 0], sizes = [256, 64], strides = [1, 1]} : vector<256x128xf32> to vector<256x64xf32>
    %45 = arith.truncf %44 : vector<256x64xf32> to vector<256x64xbf16>
    %c4 = arith.constant 4 : index
    %c0_32 = arith.constant 0 : index
    %c0_33 = arith.constant 0 : index
    %46 = vector.load %arg2[%c4, %c0_32, %c0_33] : memref<11x64x128xbf16, #tpu.memory_space<vmem>>, vector<1x64x128xbf16>
    %47 = vector.shape_cast %46 : vector<1x64x128xbf16> to vector<64x128xbf16>
    %cst_34 = arith.constant dense<0.000000e+00> : vector<256x128xf32>
    %48 = tpu.matmul %45, %47, %cst_34 {dimension_numbers = #tpu.dot_dimension_numbers<[1], [0], [0], [1], [0, 0, 1, 1], [], []>} : vector<256x64xbf16>, vector<64x128xbf16>, vector<256x128xf32> -> vector<256x128xf32>
    %c4_35 = arith.constant 4 : index
    %c0_36 = arith.constant 0 : index
    %c0_37 = arith.constant 0 : index
    %49 = vector.load %arg3[%c4_35, %c0_36, %c0_37] : memref<11x1x128xf32, #tpu.memory_space<vmem>>, vector<1x1x128xf32>
    %50 = vector.shape_cast %49 : vector<1x1x128xf32> to vector<1x128xf32>
    %51 = vector.broadcast %50 : vector<1x128xf32> to vector<256x128xf32>
    %52 = arith.addf %48, %51 : vector<256x128xf32>
    %53 = math.tanh %52 : vector<256x128xf32>
    %54 = vector.extract_strided_slice %53 {offsets = [0, 0], sizes = [256, 64], strides = [1, 1]} : vector<256x128xf32> to vector<256x64xf32>
    %55 = arith.truncf %54 : vector<256x64xf32> to vector<256x64xbf16>
    %c5 = arith.constant 5 : index
    %c0_38 = arith.constant 0 : index
    %c0_39 = arith.constant 0 : index
    %56 = vector.load %arg2[%c5, %c0_38, %c0_39] : memref<11x64x128xbf16, #tpu.memory_space<vmem>>, vector<1x64x128xbf16>
    %57 = vector.shape_cast %56 : vector<1x64x128xbf16> to vector<64x128xbf16>
    %cst_40 = arith.constant dense<0.000000e+00> : vector<256x128xf32>
    %58 = tpu.matmul %55, %57, %cst_40 {dimension_numbers = #tpu.dot_dimension_numbers<[1], [0], [0], [1], [0, 0, 1, 1], [], []>} : vector<256x64xbf16>, vector<64x128xbf16>, vector<256x128xf32> -> vector<256x128xf32>
    %c5_41 = arith.constant 5 : index
    %c0_42 = arith.constant 0 : index
    %c0_43 = arith.constant 0 : index
    %59 = vector.load %arg3[%c5_41, %c0_42, %c0_43] : memref<11x1x128xf32, #tpu.memory_space<vmem>>, vector<1x1x128xf32>
    %60 = vector.shape_cast %59 : vector<1x1x128xf32> to vector<1x128xf32>
    %61 = vector.broadcast %60 : vector<1x128xf32> to vector<256x128xf32>
    %62 = arith.addf %58, %61 : vector<256x128xf32>
    %63 = math.tanh %62 : vector<256x128xf32>
    %64 = vector.extract_strided_slice %63 {offsets = [0, 0], sizes = [256, 64], strides = [1, 1]} : vector<256x128xf32> to vector<256x64xf32>
    %65 = arith.truncf %64 : vector<256x64xf32> to vector<256x64xbf16>
    %c6 = arith.constant 6 : index
    %c0_44 = arith.constant 0 : index
    %c0_45 = arith.constant 0 : index
    %66 = vector.load %arg2[%c6, %c0_44, %c0_45] : memref<11x64x128xbf16, #tpu.memory_space<vmem>>, vector<1x64x128xbf16>
    %67 = vector.shape_cast %66 : vector<1x64x128xbf16> to vector<64x128xbf16>
    %cst_46 = arith.constant dense<0.000000e+00> : vector<256x128xf32>
    %68 = tpu.matmul %65, %67, %cst_46 {dimension_numbers = #tpu.dot_dimension_numbers<[1], [0], [0], [1], [0, 0, 1, 1], [], []>} : vector<256x64xbf16>, vector<64x128xbf16>, vector<256x128xf32> -> vector<256x128xf32>
    %c6_47 = arith.constant 6 : index
    %c0_48 = arith.constant 0 : index
    %c0_49 = arith.constant 0 : index
    %69 = vector.load %arg3[%c6_47, %c0_48, %c0_49] : memref<11x1x128xf32, #tpu.memory_space<vmem>>, vector<1x1x128xf32>
    %70 = vector.shape_cast %69 : vector<1x1x128xf32> to vector<1x128xf32>
    %71 = vector.broadcast %70 : vector<1x128xf32> to vector<256x128xf32>
    %72 = arith.addf %68, %71 : vector<256x128xf32>
    %73 = math.tanh %72 : vector<256x128xf32>
    %74 = vector.extract_strided_slice %73 {offsets = [0, 0], sizes = [256, 64], strides = [1, 1]} : vector<256x128xf32> to vector<256x64xf32>
    %75 = arith.truncf %74 : vector<256x64xf32> to vector<256x64xbf16>
    %c7 = arith.constant 7 : index
    %c0_50 = arith.constant 0 : index
    %c0_51 = arith.constant 0 : index
    %76 = vector.load %arg2[%c7, %c0_50, %c0_51] : memref<11x64x128xbf16, #tpu.memory_space<vmem>>, vector<1x64x128xbf16>
    %77 = vector.shape_cast %76 : vector<1x64x128xbf16> to vector<64x128xbf16>
    %cst_52 = arith.constant dense<0.000000e+00> : vector<256x128xf32>
    %78 = tpu.matmul %75, %77, %cst_52 {dimension_numbers = #tpu.dot_dimension_numbers<[1], [0], [0], [1], [0, 0, 1, 1], [], []>} : vector<256x64xbf16>, vector<64x128xbf16>, vector<256x128xf32> -> vector<256x128xf32>
    %c7_53 = arith.constant 7 : index
    %c0_54 = arith.constant 0 : index
    %c0_55 = arith.constant 0 : index
    %79 = vector.load %arg3[%c7_53, %c0_54, %c0_55] : memref<11x1x128xf32, #tpu.memory_space<vmem>>, vector<1x1x128xf32>
    %80 = vector.shape_cast %79 : vector<1x1x128xf32> to vector<1x128xf32>
    %81 = vector.broadcast %80 : vector<1x128xf32> to vector<256x128xf32>
    %82 = arith.addf %78, %81 : vector<256x128xf32>
    %83 = math.tanh %82 : vector<256x128xf32>
    %84 = vector.extract_strided_slice %83 {offsets = [0, 0], sizes = [256, 64], strides = [1, 1]} : vector<256x128xf32> to vector<256x64xf32>
    %85 = arith.truncf %84 : vector<256x64xf32> to vector<256x64xbf16>
    %c8 = arith.constant 8 : index
    %c0_56 = arith.constant 0 : index
    %c0_57 = arith.constant 0 : index
    %86 = vector.load %arg2[%c8, %c0_56, %c0_57] : memref<11x64x128xbf16, #tpu.memory_space<vmem>>, vector<1x64x128xbf16>
    %87 = vector.shape_cast %86 : vector<1x64x128xbf16> to vector<64x128xbf16>
    %cst_58 = arith.constant dense<0.000000e+00> : vector<256x128xf32>
    %88 = tpu.matmul %85, %87, %cst_58 {dimension_numbers = #tpu.dot_dimension_numbers<[1], [0], [0], [1], [0, 0, 1, 1], [], []>} : vector<256x64xbf16>, vector<64x128xbf16>, vector<256x128xf32> -> vector<256x128xf32>
    %c8_59 = arith.constant 8 : index
    %c0_60 = arith.constant 0 : index
    %c0_61 = arith.constant 0 : index
    %89 = vector.load %arg3[%c8_59, %c0_60, %c0_61] : memref<11x1x128xf32, #tpu.memory_space<vmem>>, vector<1x1x128xf32>
    %90 = vector.shape_cast %89 : vector<1x1x128xf32> to vector<1x128xf32>
    %91 = vector.broadcast %90 : vector<1x128xf32> to vector<256x128xf32>
    %92 = arith.addf %88, %91 : vector<256x128xf32>
    %93 = math.tanh %92 : vector<256x128xf32>
    %94 = vector.extract_strided_slice %93 {offsets = [0, 0], sizes = [256, 64], strides = [1, 1]} : vector<256x128xf32> to vector<256x64xf32>
    %95 = arith.truncf %94 : vector<256x64xf32> to vector<256x64xbf16>
    %c9 = arith.constant 9 : index
    %c0_62 = arith.constant 0 : index
    %c0_63 = arith.constant 0 : index
    %96 = vector.load %arg2[%c9, %c0_62, %c0_63] : memref<11x64x128xbf16, #tpu.memory_space<vmem>>, vector<1x64x128xbf16>
    %97 = vector.shape_cast %96 : vector<1x64x128xbf16> to vector<64x128xbf16>
    %cst_64 = arith.constant dense<0.000000e+00> : vector<256x128xf32>
    %98 = tpu.matmul %95, %97, %cst_64 {dimension_numbers = #tpu.dot_dimension_numbers<[1], [0], [0], [1], [0, 0, 1, 1], [], []>} : vector<256x64xbf16>, vector<64x128xbf16>, vector<256x128xf32> -> vector<256x128xf32>
    %c9_65 = arith.constant 9 : index
    %c0_66 = arith.constant 0 : index
    %c0_67 = arith.constant 0 : index
    %99 = vector.load %arg3[%c9_65, %c0_66, %c0_67] : memref<11x1x128xf32, #tpu.memory_space<vmem>>, vector<1x1x128xf32>
    %100 = vector.shape_cast %99 : vector<1x1x128xf32> to vector<1x128xf32>
    %101 = vector.broadcast %100 : vector<1x128xf32> to vector<256x128xf32>
    %102 = arith.addf %98, %101 : vector<256x128xf32>
    %cst_68 = arith.constant 0.000000e+00 : f32
    %103 = vector.broadcast %cst_68 : f32 to vector<256x128xf32>
    %104 = arith.cmpf oge, %102, %103 : vector<256x128xf32>
    %cst_69 = arith.constant 0.00999999977 : f32
    %105 = vector.broadcast %cst_69 : f32 to vector<256x128xf32>
    %106 = arith.mulf %105, %102 : vector<256x128xf32>
    %107 = arith.select %104, %102, %106 : vector<256x128xi1>, vector<256x128xf32>
    %108 = vector.extract_strided_slice %107 {offsets = [0, 0], sizes = [256, 64], strides = [1, 1]} : vector<256x128xf32> to vector<256x64xf32>
    %109 = arith.truncf %108 : vector<256x64xf32> to vector<256x64xbf16>
    %c10 = arith.constant 10 : index
    %c0_70 = arith.constant 0 : index
    %c0_71 = arith.constant 0 : index
    %110 = vector.load %arg2[%c10, %c0_70, %c0_71] : memref<11x64x128xbf16, #tpu.memory_space<vmem>>, vector<1x64x128xbf16>
    %111 = vector.shape_cast %110 : vector<1x64x128xbf16> to vector<64x128xbf16>
    %cst_72 = arith.constant dense<0.000000e+00> : vector<256x128xf32>
    %112 = tpu.matmul %109, %111, %cst_72 {dimension_numbers = #tpu.dot_dimension_numbers<[1], [0], [0], [1], [0, 0, 1, 1], [], []>} : vector<256x64xbf16>, vector<64x128xbf16>, vector<256x128xf32> -> vector<256x128xf32>
    %c10_73 = arith.constant 10 : index
    %c0_74 = arith.constant 0 : index
    %c0_75 = arith.constant 0 : index
    %113 = vector.load %arg3[%c10_73, %c0_74, %c0_75] : memref<11x1x128xf32, #tpu.memory_space<vmem>>, vector<1x1x128xf32>
    %114 = vector.shape_cast %113 : vector<1x1x128xf32> to vector<1x128xf32>
    %115 = vector.broadcast %114 : vector<1x128xf32> to vector<256x128xf32>
    %116 = arith.addf %112, %115 : vector<256x128xf32>
    %117 = vector.extract_strided_slice %116 {offsets = [0, 0], sizes = [256, 1], strides = [1, 1]} : vector<256x128xf32> to vector<256x1xf32>
    %c0_76 = arith.constant 0 : index
    %c0_77 = arith.constant 0 : index
    %118 = vector.load %arg4[%c0_76, %c0_77] : memref<256x1xf32, #tpu.memory_space<vmem>>, vector<256x1xf32>
    tpu.vector_store %arg4[%c0_76, %c0_77], %117 {strides = array<i32>} : memref<256x1xf32, #tpu.memory_space<vmem>>, vector<256x1xf32>,
    return
  }
  func.func @transform_0(%arg0: i32) -> (i32, i32) {
    %c0_i32 = arith.constant 0 : i32
    %c0_i32_0 = arith.constant 0 : i32
    return %arg0, %c0_i32 : i32, i32
  }
  func.func @transform_1(%arg0: i32) -> (i32, i32, i32) {
    %c0_i32 = arith.constant 0 : i32
    %c0_i32_0 = arith.constant 0 : i32
    %c0_i32_1 = arith.constant 0 : i32
    %c0_i32_2 = arith.constant 0 : i32
    return %c0_i32, %c0_i32_0, %c0_i32_1 : i32, i32, i32
  }
  func.func @transform_2(%arg0: i32) -> (i32, i32, i32) {
    %c0_i32 = arith.constant 0 : i32
    %c0_i32_0 = arith.constant 0 : i32
    %c0_i32_1 = arith.constant 0 : i32
    %c0_i32_2 = arith.constant 0 : i32
    return %c0_i32, %c0_i32_0, %c0_i32_1 : i32, i32, i32
  }
  func.func @transform_3(%arg0: i32) -> (i32, i32) {
    %c0_i32 = arith.constant 0 : i32
    %c0_i32_0 = arith.constant 0 : i32
    return %arg0, %c0_i32 : i32, i32
  }
}

</mosaic_0001>

<llo_original>
// kernel: tpu_custom_call.1
$region0: #{tpu_custom_call.1}
  #allocation0 [shape = 'u32[]', space=smem, size = 0x4, offset = 0x4, fixed_abs, tag = 'smem constant byte address 0x4 - core index']
  #allocation1 [shape = 'u32[144,128]{1,0:T(1,128)}', space=vmem, size = 0x12000, scoped, tag = 'internal scratch']
  #allocation2 [shape = 'f32[256,64]{1,0:T(8,128)}', space=vmem, size = 0x20000, scoped, tag = 'scratch operand']
  %s0 = inlined_call_operand.vmem [shape: f32[512,10], index: 0, kind: input, shape index: {}]
  %s1 = inlined_call_operand.vmem [shape: bf16[11,64,128], index: 1, kind: input, shape index: {}]
  %s2 = inlined_call_operand.vmem [shape: f32[11,1,128], index: 2, kind: input, shape index: {}]
  %s3 = inlined_call_operand.vmem [shape: f32[512,1], index: 3, kind: output, shape index: {}]
  %s4 = sld [smem:[#allocation0]]
  $region45: #{tpu_custom_call.1} parent=0
    _
  %s6 = ssub.s32 1, %s4
  %s7 = scalar_select 0, %s6, %s4
  loop: start=0, step=1, limit=4
  $region2: #{tpu_custom_call.1} parent=0 // loop_pre_header
    _
  $region3: #{tpu_custom_call.1} parent=0 // loop_header
    %s9 = sphi 0, %s13
    %p10 = scmp.ge.s32.totalorder %s9, 4
    %s19 = sphi 0, %s21
    %s22 = sphi 0, %s19
    %s23 = sphi 0, %s22
    %s39 = sphi 0, %s23
    %s43 = sphi 0, %s43
    %s45 = sphi 0, %s43
    %s46 = sphi 0, %s45
    %s60 = sphi 0, %s46
    %s64 = sphi 0, %s64
    %s66 = sphi 0, %s64
    %s67 = sphi 0, %s66
    %s81 = sphi 0, %s67
    %s87 = sphi 0, %s89
    %s90 = sphi 0, %s87
    %s91 = sphi 0, %s90
    %s107 = sphi 0, %s91
  $region4: #{tpu_custom_call.1} parent=0 // loop_header_branch
    %12 = sbr.rel (%p10) target = $region8
  $region5: #{tpu_custom_call.1} parent=0 // loop_body
    %s14 = ssub.s32 %s9, 1
    %s15 = ssub.s32 %s9, 2
    %s16 = sadd.s32 %s9, 1
    %s17 = ssub.s32 %s9, %s16
    %p18 = scmp.eq.s32.totalorder %s17, 0
    %s20 = sadd.s32 %s19, 1
    %s21 = scalar_select %p18, %s19, %s20
    %p24 = pneg %p18
    %p25 = scmp.eq.s32.totalorder %s9, 1
    %p26 = por %p24, %p25
    %p27 = scmp.ne.s32.totalorder %s19, %s22
    %p28 = scmp.eq.s32.totalorder %s9, 0
    %p29 = por %p27, %p28
    %p30 = scmp.ne.s32.totalorder %s19, %s22
    %p31 = scmp.eq.s32.totalorder %s14, 1
    %p32 = por %p30, %p31
    %p33 = scmp.ne.s32.totalorder %s22, %s23
    %p34 = scmp.eq.s32.totalorder %s14, 0
    %p35 = por %p33, %p34
    %p36 = scmp.ne.s32.totalorder %s22, %s23
    %p37 = scmp.eq.s32.totalorder %s15, 1
    %p38 = por %p36, %p37
    %p40 = scmp.ne.s32.totalorder %s23, %s39
    %p41 = scmp.eq.s32.totalorder %s15, 0
    %p42 = por %p40, %p41
    %s44 = sadd.s32 %s43, 1
    %p47 = scmp.eq.s32.totalorder %s9, 1
    %p48 = scmp.ne.s32.totalorder %s43, %s45
    %p49 = scmp.eq.s32.totalorder %s9, 0
    %p50 = por %p48, %p49
    %p51 = scmp.ne.s32.totalorder %s43, %s45
    %p52 = scmp.eq.s32.totalorder %s14, 1
    %p53 = por %p51, %p52
    %p54 = scmp.ne.s32.totalorder %s45, %s46
    %p55 = scmp.eq.s32.totalorder %s14, 0
    %p56 = por %p54, %p55
    %p57 = scmp.ne.s32.totalorder %s45, %s46
    %p58 = scmp.eq.s32.totalorder %s15, 1
    %p59 = por %p57, %p58
    %p61 = scmp.ne.s32.totalorder %s46, %s60
    %p62 = scmp.eq.s32.totalorder %s15, 0
    %p63 = por %p61, %p62
    %s65 = sadd.s32 %s64, 1
    %p68 = scmp.eq.s32.totalorder %s9, 1
    %p69 = scmp.ne.s32.totalorder %s64, %s66
    %p70 = scmp.eq.s32.totalorder %s9, 0
    %p71 = por %p69, %p70
    %p72 = scmp.ne.s32.totalorder %s64, %s66
    %p73 = scmp.eq.s32.totalorder %s14, 1
    %p74 = por %p72, %p73
    %p75 = scmp.ne.s32.totalorder %s66, %s67
    %p76 = scmp.eq.s32.totalorder %s14, 0
    %p77 = por %p75, %p76
    %p78 = scmp.ne.s32.totalorder %s66, %s67
    %p79 = scmp.eq.s32.totalorder %s15, 1
    %p80 = por %p78, %p79
    %p82 = scmp.ne.s32.totalorder %s67, %s81
    %p83 = scmp.eq.s32.totalorder %s15, 0
    %p84 = por %p82, %p83
    %s85 = ssub.s32 %s9, %s16
    %p86 = scmp.eq.s32.totalorder %s85, 0
    %s88 = sadd.s32 %s87, 1
    %s89 = scalar_select %p86, %s87, %s88
    %p92 = pneg %p86
    %p93 = scmp.eq.s32.totalorder %s9, 1
    %p94 = por %p92, %p93
    %p95 = scmp.ne.s32.totalorder %s87, %s90
    %p96 = scmp.eq.s32.totalorder %s9, 0
    %p97 = por %p95, %p96
    %p98 = scmp.ne.s32.totalorder %s87, %s90
    %p99 = scmp.eq.s32.totalorder %s14, 1
    %p100 = por %p98, %p99
    %p101 = scmp.ne.s32.totalorder %s90, %s91
    %p102 = scmp.eq.s32.totalorder %s14, 0
    %p103 = por %p101, %p102
    %p104 = scmp.ne.s32.totalorder %s90, %s91
    %p105 = scmp.eq.s32.totalorder %s15, 1
    %p106 = por %p104, %p105
    %p108 = scmp.ne.s32.totalorder %s91, %s107
    %p109 = scmp.eq.s32.totalorder %s15, 0
    %p110 = por %p108, %p109
    %p111 = scmp.le.s32.totalorder 1, %s9
    %p112 = scmp.lt.s32.totalorder %s9, 3
    %p113 = pnand %p111, %p112
    %p114 = pneg %p113
    // Predicated region
    $region9: #{tpu_custom_call.1} parent=5 // pred_check
      _
    $region10: #{tpu_custom_call.1} parent=5 // pred_check_branch
      %116 = sbr.rel (%p113) target = $region12
    $region11: #{tpu_custom_call.1} parent=5 // pred_region
      %s117 = ssub.s32 %s9, 1
      // Predicated region
      $region13: #{tpu_custom_call.1} parent=11 // pred_check
        %p118 = pneg %p56
      $region14: #{tpu_custom_call.1} parent=11 // pred_check_branch
        %120 = sbr.rel (%p118) target = $region16
      $region15: #{tpu_custom_call.1} parent=11 // pred_region
        _
      $region16: #{tpu_custom_call.1} parent=11 // pred_fallthru
        _
      // Predicated region
      $region17: #{tpu_custom_call.1} parent=11 // pred_check
        %p121 = pneg %p77
      $region18: #{tpu_custom_call.1} parent=11 // pred_check_branch
        %123 = sbr.rel (%p121) target = $region20
      $region19: #{tpu_custom_call.1} parent=11 // pred_region
        _
      $region20: #{tpu_custom_call.1} parent=11 // pred_fallthru
        _
    $region12: #{tpu_custom_call.1} parent=5 // pred_fallthru
      _
    %p124 = scmp.lt.s32.totalorder %s9, 2
    // Predicated region
    $region21: #{tpu_custom_call.1} parent=5 // pred_check
      %p125 = pneg %p124
    $region22: #{tpu_custom_call.1} parent=5 // pred_check_branch
      %127 = sbr.rel (%p125) target = $region24
    $region23: #{tpu_custom_call.1} parent=5 // pred_region
      // Predicated region
      $region25: #{tpu_custom_call.1} parent=23 // pred_check
        %p128 = pneg %p29
      $region26: #{tpu_custom_call.1} parent=23 // pred_check_branch
        %130 = sbr.rel (%p128) target = $region28
      $region27: #{tpu_custom_call.1} parent=23 // pred_region
        %s131 = smul.u32 32, %s9
        %p132 = scmp.lt.s32.totalorder %s131, 63
        %s133 = scalar_select %p132, %s131, 63
        %s134 = smul.addr %s133, 8
        %s135 = scalar_lea.vmem %s0, %s134
        %s136 = smul.u32 32, %s9
      $region28: #{tpu_custom_call.1} parent=23 // pred_fallthru
        _
    $region24: #{tpu_custom_call.1} parent=5 // pred_fallthru
      _
    %p137 = scmp.le.s32.totalorder 1, %s9
    %p138 = scmp.lt.s32.totalorder %s9, 3
    %p139 = pnand %p137, %p138
    %p140 = pneg %p139
    // Predicated region
    $region29: #{tpu_custom_call.1} parent=5 // pred_check
      _
    $region30: #{tpu_custom_call.1} parent=5 // pred_check_branch
      %142 = sbr.rel (%p139) target = $region32
    $region31: #{tpu_custom_call.1} parent=5 // pred_region
      %s143 = ssub.s32 %s9, 1
      %s144 = smul.u32 32, %s14
      %p145 = scmp.lt.s32.totalorder %s144, 63
      %s146 = scalar_select %p145, %s144, 63
      %s147 = smul.addr %s146, 8
      %s148 = scalar_lea.vmem %s0, %s147
      %p149 = pneg %p35
      %p150 = pneg %p32
      %p151 = pneg %p56
      %p152 = pneg %p53
      %p153 = pneg %p77
      %p154 = pneg %p74
      %p155 = pneg %p103
      %p156 = pneg %p100
      %s157 = smul.u32 32, %s14
      %p158 = scmp.lt.s32.totalorder %s157, 63
      %s159 = scalar_select %p158, %s157, 63
      %s160 = smul.addr %s159, 8
      %s161 = scalar_lea.vmem %s3, %s160
      %s162 = smul.u32 32, %s14
      %p163 = scmp.lt.s32.totalorder %s162, 63
      %s164 = scalar_select %p163, %s162, 63
      %s165 = smul.addr %s164, 8
      %s166 = scalar_lea.vmem %s0, %s165
      %s167 = smul.u32 32, %s14
      %s168 = smul.u32 32, %s14
      %p169 = scmp.lt.s32.totalorder %s168, 63
      %s170 = scalar_select %p169, %s168, 63
      %s171 = smul.addr %s170, 8
      %s172 = scalar_lea.vmem %s3, %s171
      %s173 = smul.u32 32, %s14
      %vm175 = vcmask 523264
      %176 = vst.msk [vmem:[#allocation2] sm:$0xff] %vm175, 0.0
      %177 = vst.msk [vmem:[#allocation2 + $0x8] sm:$0xff] %vm175, 0.0
      %178 = vst.msk [vmem:[#allocation2 + $0x10] sm:$0xff] %vm175, 0.0
      %179 = vst.msk [vmem:[#allocation2 + $0x18] sm:$0xff] %vm175, 0.0
      %180 = vst.msk [vmem:[#allocation2 + $0x20] sm:$0xff] %vm175, 0.0
      %181 = vst.msk [vmem:[#allocation2 + $0x28] sm:$0xff] %vm175, 0.0
      %182 = vst.msk [vmem:[#allocation2 + $0x30] sm:$0xff] %vm175, 0.0
      %183 = vst.msk [vmem:[#allocation2 + $0x38] sm:$0xff] %vm175, 0.0
      %184 = vst.msk [vmem:[#allocation2 + $0x40] sm:$0xff] %vm175, 0.0
      %185 = vst.msk [vmem:[#allocation2 + $0x48] sm:$0xff] %vm175, 0.0
      %186 = vst.msk [vmem:[#allocation2 + $0x50] sm:$0xff] %vm175, 0.0
      %187 = vst.msk [vmem:[#allocation2 + $0x58] sm:$0xff] %vm175, 0.0
      %188 = vst.msk [vmem:[#allocation2 + $0x60] sm:$0xff] %vm175, 0.0
      %189 = vst.msk [vmem:[#allocation2 + $0x68] sm:$0xff] %vm175, 0.0
      %190 = vst.msk [vmem:[#allocation2 + $0x70] sm:$0xff] %vm175, 0.0
      %191 = vst.msk [vmem:[#allocation2 + $0x78] sm:$0xff] %vm175, 0.0
      %192 = vst.msk [vmem:[#allocation2 + $0x80] sm:$0xff] %vm175, 0.0
      %193 = vst.msk [vmem:[#allocation2 + $0x88] sm:$0xff] %vm175, 0.0
      %194 = vst.msk [vmem:[#allocation2 + $0x90] sm:$0xff] %vm175, 0.0
      %195 = vst.msk [vmem:[#allocation2 + $0x98] sm:$0xff] %vm175, 0.0
      %196 = vst.msk [vmem:[#allocation2 + $0xa0] sm:$0xff] %vm175, 0.0
      %197 = vst.msk [vmem:[#allocation2 + $0xa8] sm:$0xff] %vm175, 0.0
      %198 = vst.msk [vmem:[#allocation2 + $0xb0] sm:$0xff] %vm175, 0.0
      %199 = vst.msk [vmem:[#allocation2 + $0xb8] sm:$0xff] %vm175, 0.0
      %200 = vst.msk [vmem:[#allocation2 + $0xc0] sm:$0xff] %vm175, 0.0
      %201 = vst.msk [vmem:[#allocation2 + $0xc8] sm:$0xff] %vm175, 0.0
      %202 = vst.msk [vmem:[#allocation2 + $0xd0] sm:$0xff] %vm175, 0.0
      %203 = vst.msk [vmem:[#allocation2 + $0xd8] sm:$0xff] %vm175, 0.0
      %204 = vst.msk [vmem:[#allocation2 + $0xe0] sm:$0xff] %vm175, 0.0
      %205 = vst.msk [vmem:[#allocation2 + $0xe8] sm:$0xff] %vm175, 0.0
      %206 = vst.msk [vmem:[#allocation2 + $0xf0] sm:$0xff] %vm175, 0.0
      %207 = vst.msk [vmem:[#allocation2 + $0xf8] sm:$0xff] %vm175, 0.0
      %v208 = vld [vmem:[%s166] sm:$0xff]
      %v209 = vld [vmem:[%s166 + $0x8] sm:$0xff]
      %v210 = vld [vmem:[%s166 + $0x10] sm:$0xff]
      %v211 = vld [vmem:[%s166 + $0x18] sm:$0xff]
      %v212 = vld [vmem:[%s166 + $0x20] sm:$0xff]
      %v213 = vld [vmem:[%s166 + $0x28] sm:$0xff]
      %v214 = vld [vmem:[%s166 + $0x30] sm:$0xff]
      %v215 = vld [vmem:[%s166 + $0x38] sm:$0xff]
      %v216 = vld [vmem:[%s166 + $0x40] sm:$0xff]
      %v217 = vld [vmem:[%s166 + $0x48] sm:$0xff]
      %v218 = vld [vmem:[%s166 + $0x50] sm:$0xff]
      %v219 = vld [vmem:[%s166 + $0x58] sm:$0xff]
      %v220 = vld [vmem:[%s166 + $0x60] sm:$0xff]
      %v221 = vld [vmem:[%s166 + $0x68] sm:$0xff]
      %v222 = vld [vmem:[%s166 + $0x70] sm:$0xff]
      %v223 = vld [vmem:[%s166 + $0x78] sm:$0xff]
      %v224 = vld [vmem:[%s166 + $0x80] sm:$0xff]
      %v225 = vld [vmem:[%s166 + $0x88] sm:$0xff]
      %v226 = vld [vmem:[%s166 + $0x90] sm:$0xff]
      %v227 = vld [vmem:[%s166 + $0x98] sm:$0xff]
      %v228 = vld [vmem:[%s166 + $0xa0] sm:$0xff]
      %v229 = vld [vmem:[%s166 + $0xa8] sm:$0xff]
      %v230 = vld [vmem:[%s166 + $0xb0] sm:$0xff]
      %v231 = vld [vmem:[%s166 + $0xb8] sm:$0xff]
      %v232 = vld [vmem:[%s166 + $0xc0] sm:$0xff]
      %v233 = vld [vmem:[%s166 + $0xc8] sm:$0xff]
      %v234 = vld [vmem:[%s166 + $0xd0] sm:$0xff]
      %v235 = vld [vmem:[%s166 + $0xd8] sm:$0xff]
      %v236 = vld [vmem:[%s166 + $0xe0] sm:$0xff]
      %v237 = vld [vmem:[%s166 + $0xe8] sm:$0xff]
      %v238 = vld [vmem:[%s166 + $0xf0] sm:$0xff]
      %v239 = vld [vmem:[%s166 + $0xf8] sm:$0xff]
      %vm240 = vcmask 80896
      %241 = vst.msk [vmem:[#allocation2] sm:$0xff] %vm240, %v208
      %242 = vst.msk [vmem:[#allocation2 + $0x8] sm:$0xff] %vm240, %v209
      %243 = vst.msk [vmem:[#allocation2 + $0x10] sm:$0xff] %vm240, %v210
      %244 = vst.msk [vmem:[#allocation2 + $0x18] sm:$0xff] %vm240, %v211
      %245 = vst.msk [vmem:[#allocation2 + $0x20] sm:$0xff] %vm240, %v212
      %246 = vst.msk [vmem:[#allocation2 + $0x28] sm:$0xff] %vm240, %v213
      %247 = vst.msk [vmem:[#allocation2 + $0x30] sm:$0xff] %vm240, %v214
      %248 = vst.msk [vmem:[#allocation2 + $0x38] sm:$0xff] %vm240, %v215
      %249 = vst.msk [vmem:[#allocation2 + $0x40] sm:$0xff] %vm240, %v216
      %250 = vst.msk [vmem:[#allocation2 + $0x48] sm:$0xff] %vm240, %v217
      %251 = vst.msk [vmem:[#allocation2 + $0x50] sm:$0xff] %vm240, %v218
      %252 = vst.msk [vmem:[#allocation2 + $0x58] sm:$0xff] %vm240, %v219
      %253 = vst.msk [vmem:[#allocation2 + $0x60] sm:$0xff] %vm240, %v220
      %254 = vst.msk [vmem:[#allocation2 + $0x68] sm:$0xff] %vm240, %v221
      %255 = vst.msk [vmem:[#allocation2 + $0x70] sm:$0xff] %vm240, %v222
      %256 = vst.msk [vmem:[#allocation2 + $0x78] sm:$0xff] %vm240, %v223
      %257 = vst.msk [vmem:[#allocation2 + $0x80] sm:$0xff] %vm240, %v224
      %258 = vst.msk [vmem:[#allocation2 + $0x88] sm:$0xff] %vm240, %v225
      %259 = vst.msk [vmem:[#allocation2 + $0x90] sm:$0xff] %vm240, %v226
      %260 = vst.msk [vmem:[#allocation2 + $0x98] sm:$0xff] %vm240, %v227
      %261 = vst.msk [vmem:[#allocation2 + $0xa0] sm:$0xff] %vm240, %v228
      %262 = vst.msk [vmem:[#allocation2 + $0xa8] sm:$0xff] %vm240, %v229
      %263 = vst.msk [vmem:[#allocation2 + $0xb0] sm:$0xff] %vm240, %v230
      %264 = vst.msk [vmem:[#allocation2 + $0xb8] sm:$0xff] %vm240, %v231
      %265 = vst.msk [vmem:[#allocation2 + $0xc0] sm:$0xff] %vm240, %v232
      %266 = vst.msk [vmem:[#allocation2 + $0xc8] sm:$0xff] %vm240, %v233
      %267 = vst.msk [vmem:[#allocation2 + $0xd0] sm:$0xff] %vm240, %v234
      %268 = vst.msk [vmem:[#allocation2 + $0xd8] sm:$0xff] %vm240, %v235
      %269 = vst.msk [vmem:[#allocation2 + $0xe0] sm:$0xff] %vm240, %v236
      %270 = vst.msk [vmem:[#allocation2 + $0xe8] sm:$0xff] %vm240, %v237
      %271 = vst.msk [vmem:[#allocation2 + $0xf0] sm:$0xff] %vm240, %v238
      %272 = vst.msk [vmem:[#allocation2 + $0xf8] sm:$0xff] %vm240, %v239
      %v273 = vld [vmem:[#allocation2] sm:$0xff]
      %v274 = vld [vmem:[#allocation2 + $0x8] sm:$0xff]
      %v275 = vld [vmem:[#allocation2 + $0x10] sm:$0xff]
      %v276 = vld [vmem:[#allocation2 + $0x18] sm:$0xff]
      %v277 = vld [vmem:[#allocation2 + $0x20] sm:$0xff]
      %v278 = vld [vmem:[#allocation2 + $0x28] sm:$0xff]
      %v279 = vld [vmem:[#allocation2 + $0x30] sm:$0xff]
      %v280 = vld [vmem:[#allocation2 + $0x38] sm:$0xff]
      %v281 = vld [vmem:[#allocation2 + $0x40] sm:$0xff]
      %v282 = vld [vmem:[#allocation2 + $0x48] sm:$0xff]
      %v283 = vld [vmem:[#allocation2 + $0x50] sm:$0xff]
      %v284 = vld [vmem:[#allocation2 + $0x58] sm:$0xff]
      %v285 = vld [vmem:[#allocation2 + $0x60] sm:$0xff]
      %v286 = vld [vmem:[#allocation2 + $0x68] sm:$0xff]
      %v287 = vld [vmem:[#allocation2 + $0x70] sm:$0xff]
      %v288 = vld [vmem:[#allocation2 + $0x78] sm:$0xff]
      %v289 = vld [vmem:[#allocation2 + $0x80] sm:$0xff]
      %v290 = vld [vmem:[#allocation2 + $0x88] sm:$0xff]
      %v291 = vld [vmem:[#allocation2 + $0x90] sm:$0xff]
      %v292 = vld [vmem:[#allocation2 + $0x98] sm:$0xff]
      %v293 = vld [vmem:[#allocation2 + $0xa0] sm:$0xff]
      %v294 = vld [vmem:[#allocation2 + $0xa8] sm:$0xff]
      %v295 = vld [vmem:[#allocation2 + $0xb0] sm:$0xff]
      %v296 = vld [vmem:[#allocation2 + $0xb8] sm:$0xff]
      %v297 = vld [vmem:[#allocation2 + $0xc0] sm:$0xff]
      %v298 = vld [vmem:[#allocation2 + $0xc8] sm:$0xff]
      %v299 = vld [vmem:[#allocation2 + $0xd0] sm:$0xff]
      %v300 = vld [vmem:[#allocation2 + $0xd8] sm:$0xff]
      %v301 = vld [vmem:[#allocation2 + $0xe0] sm:$0xff]
      %v302 = vld [vmem:[#allocation2 + $0xe8] sm:$0xff]
      %v303 = vld [vmem:[#allocation2 + $0xf0] sm:$0xff]
      %v304 = vld [vmem:[#allocation2 + $0xf8] sm:$0xff]
      %v305 = vpack.c.bf16 %v274, %v273
      %v306 = vpack.c.bf16 %v276, %v275
      %v307 = vpack.c.bf16 %v278, %v277
      %v308 = vpack.c.bf16 %v280, %v279
      %v309 = vpack.c.bf16 %v282, %v281
      %v310 = vpack.c.bf16 %v284, %v283
      %v311 = vpack.c.bf16 %v286, %v285
      %v312 = vpack.c.bf16 %v288, %v287
      %v313 = vpack.c.bf16 %v290, %v289
      %v314 = vpack.c.bf16 %v292, %v291
      %v315 = vpack.c.bf16 %v294, %v293
      %v316 = vpack.c.bf16 %v296, %v295
      %v317 = vpack.c.bf16 %v298, %v297
      %v318 = vpack.c.bf16 %v300, %v299
      %v319 = vpack.c.bf16 %v302, %v301
      %v320 = vpack.c.bf16 %v304, %v303
      %v321 = vld [vmem:[%s1] sm:$0xf]
      %v322 = vld [vmem:[%s1 + $0x4] sm:$0xf]
      %v323 = vld [vmem:[%s1 + $0x8] sm:$0xf]
      %v324 = vld [vmem:[%s1 + $0xc] sm:$0xf]
      %v325 = vld [vmem:[%s1 + $0x10] sm:$0xf]
      %v326 = vld [vmem:[%s1 + $0x14] sm:$0xf]
      %v327 = vld [vmem:[%s1 + $0x18] sm:$0xf]
      %v328 = vld [vmem:[%s1 + $0x1c] sm:$0xf]
      %v329 = vld [vmem:[%s2] sm:$0x1]
      %v331 = vlaneseq
      %v332 = vshrl.u32 %v331, 7
      %v333 = vsub.s32 0, %v332
      %v334 = vrot.slane %v329, %v333
      %v344 = vunpack.c.l.b16 %v321
      %v345 = vunpack.c.l.b16 %v322
      %v346 = vunpack.c.l.b16 %v323
      %v347 = vunpack.c.l.b16 %v324
      %v348 = vunpack.c.l.b16 %v325
      %v349 = vunpack.c.l.b16 %v326
      %v350 = vunpack.c.l.b16 %v327
      %v351 = vunpack.c.l.b16 %v328
      %v352 = vpack.c.b16 %v345, %v344
      %v353 = vpack.c.b16 %v347, %v346
      %v354 = vpack.c.b16 %v349, %v348
      %v355 = vpack.c.b16 %v351, %v350
      %v361 = vsel %vm175, %v305, 0
      %v364 = vsel %vm175, %v306, 0
      %v367 = vsel %vm175, %v307, 0
      %v370 = vsel %vm175, %v308, 0
      %v373 = vsel %vm175, %v309, 0
      %v376 = vsel %vm175, %v310, 0
      %v379 = vsel %vm175, %v311, 0
      %v382 = vsel %vm175, %v312, 0
      %v385 = vsel %vm175, %v313, 0
      %v388 = vsel %vm175, %v314, 0
      %v391 = vsel %vm175, %v315, 0
      %v394 = vsel %vm175, %v316, 0
      %v397 = vsel %vm175, %v317, 0
      %v400 = vsel %vm175, %v318, 0
      %v403 = vsel %vm175, %v319, 0
      %v406 = vsel %vm175, %v320, 0
      %408 = vmatprep.subr.bf16.mxu0 0
      %409 = vmatpush1.bf16.msra.mxu0 0
      %410 = vmatprep.subr.bf16.mxu0 0
      %411 = vmatpush1.bf16.msra.mxu0 0
      %412 = vmatprep.subr.bf16.mxu0 0
      %413 = vmatpush1.bf16.msra.mxu0 0
      %414 = vmatprep.subr.bf16.mxu0 0
      %415 = vmatpush1.bf16.msra.mxu0 0
      %416 = vmatprep.subr.bf16.mxu0 0
      %417 = vmatpush1.bf16.msra.mxu0 %v355
      %418 = vmatprep.subr.bf16.mxu0 0
      %419 = vmatpush1.bf16.msra.mxu0 %v354
      %420 = vmatprep.subr.bf16.mxu0 0
      %421 = vmatpush1.bf16.msra.mxu0 %v353
      %422 = vmatprep.subr.bf16.mxu0 0
      %423 = vmatpush1.bf16.msra.mxu0 %v352
      %424 = vmatprep.subr.bf16.mxu0 0
      %425 = vmatpush2.bf16.msra.mxu0 0
      %426 = vmatprep.subr.bf16.mxu0 0
      %427 = vmatpush2.bf16.msra.mxu0 0
      %428 = vmatprep.subr.bf16.mxu0 0
      %429 = vmatpush2.bf16.msra.mxu0 0
      %430 = vmatprep.subr.bf16.mxu0 0
      %431 = vmatpush2.bf16.msra.mxu0 0
      %432 = vmatprep.subr.bf16.mxu0 0
      %433 = vmatpush2.bf16.msra.mxu0 0
      %434 = vmatprep.subr.bf16.mxu0 0
      %435 = vmatpush2.bf16.msra.mxu0 0
      %436 = vmatprep.subr.bf16.mxu0 0
      %437 = vmatpush2.bf16.msra.mxu0 0
      %438 = vmatprep.subr.bf16.mxu0 0
      %439 = vmatpush2.bf16.msra.mxu0 0
      %440 = vmatprep.mubr.bf16.mxu0 0
      %441 = vmatmul.mubr.bf16.gmra.mxu0 %v361
      %v442 = vpop.f32.mrf.mxu0
      %v443 = vadd.f32 %v334, %v442
      %v444 = vpop.f32.mrf.mxu0
      %v445 = vpop.f32.mrf.mxu0
      %v446 = vadd.f32 %v334, %v445
      %v447 = vpop.f32.mrf.mxu0
      %448 = vmatprep.mubr.bf16.mxu0 0
      %449 = vmatmul.mubr.bf16.gmra.mxu0 %v364
      %v450 = vpop.f32.mrf.mxu0
      %v451 = vadd.f32 %v334, %v450
      %v452 = vpop.f32.mrf.mxu0
      %v453 = vpop.f32.mrf.mxu0
      %v454 = vadd.f32 %v334, %v453
      %v455 = vpop.f32.mrf.mxu0
      %456 = vmatprep.mubr.bf16.mxu0 0
      %457 = vmatmul.mubr.bf16.gmra.mxu0 %v367
      %v458 = vpop.f32.mrf.mxu0
      %v459 = vadd.f32 %v334, %v458
      %v460 = vpop.f32.mrf.mxu0
      %v461 = vpop.f32.mrf.mxu0
      %v462 = vadd.f32 %v334, %v461
      %v463 = vpop.f32.mrf.mxu0
      %464 = vmatprep.mubr.bf16.mxu0 0
      %465 = vmatmul.mubr.bf16.gmra.mxu0 %v370
      %v466 = vpop.f32.mrf.mxu0
      %v467 = vadd.f32 %v334, %v466
      %v468 = vpop.f32.mrf.mxu0
      %v469 = vpop.f32.mrf.mxu0
      %v470 = vadd.f32 %v334, %v469
      %v471 = vpop.f32.mrf.mxu0
      %472 = vmatprep.mubr.bf16.mxu0 0
      %473 = vmatmul.mubr.bf16.gmra.mxu0 %v373
      %v474 = vpop.f32.mrf.mxu0
      %v475 = vadd.f32 %v334, %v474
      %v476 = vpop.f32.mrf.mxu0
      %v477 = vpop.f32.mrf.mxu0
      %v478 = vadd.f32 %v334, %v477
      %v479 = vpop.f32.mrf.mxu0
      %480 = vmatprep.mubr.bf16.mxu0 0
      %481 = vmatmul.mubr.bf16.gmra.mxu0 %v376
      %v482 = vpop.f32.mrf.mxu0
      %v483 = vadd.f32 %v334, %v482
      %v484 = vpop.f32.mrf.mxu0
      %v485 = vpop.f32.mrf.mxu0
      %v486 = vadd.f32 %v334, %v485
      %v487 = vpop.f32.mrf.mxu0
      %488 = vmatprep.mubr.bf16.mxu0 0
      %489 = vmatmul.mubr.bf16.gmra.mxu0 %v379
      %v490 = vpop.f32.mrf.mxu0
      %v491 = vadd.f32 %v334, %v490
      %v492 = vpop.f32.mrf.mxu0
      %v493 = vpop.f32.mrf.mxu0
      %v494 = vadd.f32 %v334, %v493
      %v495 = vpop.f32.mrf.mxu0
      %496 = vmatprep.mubr.bf16.mxu0 0
      %497 = vmatmul.mubr.bf16.gmra.mxu0 %v382
      %v498 = vpop.f32.mrf.mxu0
      %v499 = vadd.f32 %v334, %v498
      %v500 = vpop.f32.mrf.mxu0
      %v501 = vpop.f32.mrf.mxu0
      %v502 = vadd.f32 %v334, %v501
      %v503 = vpop.f32.mrf.mxu0
      %504 = vmatprep.mubr.bf16.mxu0 0
      %505 = vmatmul.mubr.bf16.gmra.mxu0 %v385
      %v506 = vpop.f32.mrf.mxu0
      %v507 = vadd.f32 %v334, %v506
      %v508 = vpop.f32.mrf.mxu0
      %v509 = vpop.f32.mrf.mxu0
      %v510 = vadd.f32 %v334, %v509
      %v511 = vpop.f32.mrf.mxu0
      %512 = vmatprep.mubr.bf16.mxu0 0
      %513 = vmatmul.mubr.bf16.gmra.mxu0 %v388
      %v514 = vpop.f32.mrf.mxu0
      %v515 = vadd.f32 %v334, %v514
      %v516 = vpop.f32.mrf.mxu0
      %v517 = vpop.f32.mrf.mxu0
      %v518 = vadd.f32 %v334, %v517
      %v519 = vpop.f32.mrf.mxu0
      %520 = vmatprep.mubr.bf16.mxu0 0
      %521 = vmatmul.mubr.bf16.gmra.mxu0 %v391
      %v522 = vpop.f32.mrf.mxu0
      %v523 = vadd.f32 %v334, %v522
      %v524 = vpop.f32.mrf.mxu0
      %v525 = vpop.f32.mrf.mxu0
      %v526 = vadd.f32 %v334, %v525
      %v527 = vpop.f32.mrf.mxu0
      %528 = vmatprep.mubr.bf16.mxu0 0
      %529 = vmatmul.mubr.bf16.gmra.mxu0 %v394
      %v530 = vpop.f32.mrf.mxu0
      %v531 = vadd.f32 %v334, %v530
      %v532 = vpop.f32.mrf.mxu0
      %v533 = vpop.f32.mrf.mxu0
      %v534 = vadd.f32 %v334, %v533
      %v535 = vpop.f32.mrf.mxu0
      %536 = vmatprep.mubr.bf16.mxu0 0
      %537 = vmatmul.mubr.bf16.gmra.mxu0 %v397
      %v538 = vpop.f32.mrf.mxu0
      %v539 = vadd.f32 %v334, %v538
      %v540 = vpop.f32.mrf.mxu0
      %v541 = vpop.f32.mrf.mxu0
      %v542 = vadd.f32 %v334, %v541
      %v543 = vpop.f32.mrf.mxu0
      %544 = vmatprep.mubr.bf16.mxu0 0
      %545 = vmatmul.mubr.bf16.gmra.mxu0 %v400
      %v546 = vpop.f32.mrf.mxu0
      %v547 = vadd.f32 %v334, %v546
      %v548 = vpop.f32.mrf.mxu0
      %v549 = vpop.f32.mrf.mxu0
      %v550 = vadd.f32 %v334, %v549
      %v551 = vpop.f32.mrf.mxu0
      %552 = vmatprep.mubr.bf16.mxu0 0
      %553 = vmatmul.mubr.bf16.gmra.mxu0 %v403
      %v554 = vpop.f32.mrf.mxu0
      %v555 = vadd.f32 %v334, %v554
      %v556 = vpop.f32.mrf.mxu0
      %v557 = vpop.f32.mrf.mxu0
      %v558 = vadd.f32 %v334, %v557
      %v559 = vpop.f32.mrf.mxu0
      %560 = vmatprep.mubr.bf16.mxu0 0
      %561 = vmatmul.mubr.bf16.gmra.mxu0 %v406
      %v562 = vpop.f32.mrf.mxu0
      %v563 = vadd.f32 %v334, %v562
      %v564 = vpop.f32.mrf.mxu0
      %v565 = vpop.f32.mrf.mxu0
      %v566 = vadd.f32 %v334, %v565
      %v567 = vpop.f32.mrf.mxu0
      %568 = vdwg.mxu0
      %v569 = vtanh.pop %v443
      %v570 = vtanh.pop %v446
      %v571 = vtanh.pop %v451
      %v572 = vtanh.pop %v454
      %v573 = vtanh.pop %v459
      %v574 = vtanh.pop %v462
      %v575 = vtanh.pop %v467
      %v576 = vtanh.pop %v470
      %v577 = vtanh.pop %v475
      %v578 = vtanh.pop %v478
      %v579 = vtanh.pop %v483
      %v580 = vtanh.pop %v486
      %v581 = vtanh.pop %v491
      %v582 = vtanh.pop %v494
      %v583 = vtanh.pop %v499
      %v584 = vtanh.pop %v502
      %v585 = vtanh.pop %v507
      %v586 = vtanh.pop %v510
      %v587 = vtanh.pop %v515
      %v588 = vtanh.pop %v518
      %v589 = vtanh.pop %v523
      %v590 = vtanh.pop %v526
      %v591 = vtanh.pop %v531
      %v592 = vtanh.pop %v534
      %v593 = vtanh.pop %v539
      %v594 = vtanh.pop %v542
      %v595 = vtanh.pop %v547
      %v596 = vtanh.pop %v550
      %v597 = vtanh.pop %v555
      %v598 = vtanh.pop %v558
      %v599 = vtanh.pop %v563
      %v600 = vtanh.pop %v566
      %v601 = vpack.c.bf16 %v570, %v569
      %v602 = vpack.c.bf16 %v572, %v571
      %v603 = vpack.c.bf16 %v574, %v573
      %v604 = vpack.c.bf16 %v576, %v575
      %v605 = vpack.c.bf16 %v578, %v577
      %v606 = vpack.c.bf16 %v580, %v579
      %v607 = vpack.c.bf16 %v582, %v581
      %v608 = vpack.c.bf16 %v584, %v583
      %v609 = vpack.c.bf16 %v586, %v585
      %v610 = vpack.c.bf16 %v588, %v587
      %v611 = vpack.c.bf16 %v590, %v589
      %v612 = vpack.c.bf16 %v592, %v591
      %v613 = vpack.c.bf16 %v594, %v593
      %v614 = vpack.c.bf16 %v596, %v595
      %v615 = vpack.c.bf16 %v598, %v597
      %v616 = vpack.c.bf16 %v600, %v599
      %s617 = scalar_lea.vmem %s1, 32
      %v618 = vld [vmem:[%s617] sm:$0xf]
      %v619 = vld [vmem:[%s617 + $0x4] sm:$0xf]
      %v620 = vld [vmem:[%s617 + $0x8] sm:$0xf]
      %v621 = vld [vmem:[%s617 + $0xc] sm:$0xf]
      %v622 = vld [vmem:[%s617 + $0x10] sm:$0xf]
      %v623 = vld [vmem:[%s617 + $0x14] sm:$0xf]
      %v624 = vld [vmem:[%s617 + $0x18] sm:$0xf]
      %v625 = vld [vmem:[%s617 + $0x1c] sm:$0xf]
      %s626 = scalar_lea.vmem %s2, 1
      %v627 = vld [vmem:[%s626] sm:$0x1]
      %v629 = vlaneseq
      %v630 = vshrl.u32 %v629, 7
      %v631 = vsub.s32 0, %v630
      %v632 = vrot.slane %v627, %v631
      %v642 = vunpack.c.l.b16 %v618
      %v643 = vunpack.c.l.b16 %v619
      %v644 = vunpack.c.l.b16 %v620
      %v645 = vunpack.c.l.b16 %v621
      %v646 = vunpack.c.l.b16 %v622
      %v647 = vunpack.c.l.b16 %v623
      %v648 = vunpack.c.l.b16 %v624
      %v649 = vunpack.c.l.b16 %v625
      %v650 = vpack.c.b16 %v643, %v642
      %v651 = vpack.c.b16 %v645, %v644
      %v652 = vpack.c.b16 %v647, %v646
      %v653 = vpack.c.b16 %v649, %v648
      %v659 = vsel %vm175, %v601, 0
      %v662 = vsel %vm175, %v602, 0
      %v665 = vsel %vm175, %v603, 0
      %v668 = vsel %vm175, %v604, 0
      %v671 = vsel %vm175, %v605, 0
      %v674 = vsel %vm175, %v606, 0
      %v677 = vsel %vm175, %v607, 0
      %v680 = vsel %vm175, %v608, 0
      %v683 = vsel %vm175, %v609, 0
      %v686 = vsel %vm175, %v610, 0
      %v689 = vsel %vm175, %v611, 0
      %v692 = vsel %vm175, %v612, 0
      %v695 = vsel %vm175, %v613, 0
      %v698 = vsel %vm175, %v614, 0
      %v701 = vsel %vm175, %v615, 0
      %v704 = vsel %vm175, %v616, 0
      %706 = vmatprep.subr.bf16.mxu0 0
      %707 = vmatpush1.bf16.msra.mxu0 0
      %708 = vmatprep.subr.bf16.mxu0 0
      %709 = vmatpush1.bf16.msra.mxu0 0
      %710 = vmatprep.subr.bf16.mxu0 0
      %711 = vmatpush1.bf16.msra.mxu0 0
      %712 = vmatprep.subr.bf16.mxu0 0
      %713 = vmatpush1.bf16.msra.mxu0 0
      %714 = vmatprep.subr.bf16.mxu0 0
      %715 = vmatpush1.bf16.msra.mxu0 %v653
      %716 = vmatprep.subr.bf16.mxu0 0
      %717 = vmatpush1.bf16.msra.mxu0 %v652
      %718 = vmatprep.subr.bf16.mxu0 0
      %719 = vmatpush1.bf16.msra.mxu0 %v651
      %720 = vmatprep.subr.bf16.mxu0 0
      %721 = vmatpush1.bf16.msra.mxu0 %v650
      %722 = vmatprep.subr.bf16.mxu0 0
      %723 = vmatpush2.bf16.msra.mxu0 0
      %724 = vmatprep.subr.bf16.mxu0 0
      %725 = vmatpush2.bf16.msra.mxu0 0
      %726 = vmatprep.subr.bf16.mxu0 0
      %727 = vmatpush2.bf16.msra.mxu0 0
      %728 = vmatprep.subr.bf16.mxu0 0
      %729 = vmatpush2.bf16.msra.mxu0 0
      %730 = vmatprep.subr.bf16.mxu0 0
      %731 = vmatpush2.bf16.msra.mxu0 0
      %732 = vmatprep.subr.bf16.mxu0 0
      %733 = vmatpush2.bf16.msra.mxu0 0
      %734 = vmatprep.subr.bf16.mxu0 0
      %735 = vmatpush2.bf16.msra.mxu0 0
      %736 = vmatprep.subr.bf16.mxu0 0
      %737 = vmatpush2.bf16.msra.mxu0 0
      %738 = vmatprep.mubr.bf16.mxu0 0
      %739 = vmatmul.mubr.bf16.gmra.mxu0 %v659
      %v740 = vpop.f32.mrf.mxu0
      %v741 = vadd.f32 %v632, %v740
      %v742 = vpop.f32.mrf.mxu0
      %v743 = vpop.f32.mrf.mxu0
      %v744 = vadd.f32 %v632, %v743
      %v745 = vpop.f32.mrf.mxu0
      %746 = vmatprep.mubr.bf16.mxu0 0
      %747 = vmatmul.mubr.bf16.gmra.mxu0 %v662
      %v748 = vpop.f32.mrf.mxu0
      %v749 = vadd.f32 %v632, %v748
      %v750 = vpop.f32.mrf.mxu0
      %v751 = vpop.f32.mrf.mxu0
      %v752 = vadd.f32 %v632, %v751
      %v753 = vpop.f32.mrf.mxu0
      %754 = vmatprep.mubr.bf16.mxu0 0
      %755 = vmatmul.mubr.bf16.gmra.mxu0 %v665
      %v756 = vpop.f32.mrf.mxu0
      %v757 = vadd.f32 %v632, %v756
      %v758 = vpop.f32.mrf.mxu0
      %v759 = vpop.f32.mrf.mxu0
      %v760 = vadd.f32 %v632, %v759
      %v761 = vpop.f32.mrf.mxu0
      %762 = vmatprep.mubr.bf16.mxu0 0
      %763 = vmatmul.mubr.bf16.gmra.mxu0 %v668
      %v764 = vpop.f32.mrf.mxu0
      %v765 = vadd.f32 %v632, %v764
      %v766 = vpop.f32.mrf.mxu0
      %v767 = vpop.f32.mrf.mxu0
      %v768 = vadd.f32 %v632, %v767
      %v769 = vpop.f32.mrf.mxu0
      %770 = vmatprep.mubr.bf16.mxu0 0
      %771 = vmatmul.mubr.bf16.gmra.mxu0 %v671
      %v772 = vpop.f32.mrf.mxu0
      %v773 = vadd.f32 %v632, %v772
      %v774 = vpop.f32.mrf.mxu0
      %v775 = vpop.f32.mrf.mxu0
      %v776 = vadd.f32 %v632, %v775
      %v777 = vpop.f32.mrf.mxu0
      %778 = vmatprep.mubr.bf16.mxu0 0
      %779 = vmatmul.mubr.bf16.gmra.mxu0 %v674
      %v780 = vpop.f32.mrf.mxu0
      %v781 = vadd.f32 %v632, %v780
      %v782 = vpop.f32.mrf.mxu0
      %v783 = vpop.f32.mrf.mxu0
      %v784 = vadd.f32 %v632, %v783
      %v785 = vpop.f32.mrf.mxu0
      %786 = vmatprep.mubr.bf16.mxu0 0
      %787 = vmatmul.mubr.bf16.gmra.mxu0 %v677
      %v788 = vpop.f32.mrf.mxu0
      %v789 = vadd.f32 %v632, %v788
      %v790 = vpop.f32.mrf.mxu0
      %v791 = vpop.f32.mrf.mxu0
      %v792 = vadd.f32 %v632, %v791
      %v793 = vpop.f32.mrf.mxu0
      %794 = vmatprep.mubr.bf16.mxu0 0
      %795 = vmatmul.mubr.bf16.gmra.mxu0 %v680
      %v796 = vpop.f32.mrf.mxu0
      %v797 = vadd.f32 %v632, %v796
      %v798 = vpop.f32.mrf.mxu0
      %v799 = vpop.f32.mrf.mxu0
      %v800 = vadd.f32 %v632, %v799
      %v801 = vpop.f32.mrf.mxu0
      %802 = vmatprep.mubr.bf16.mxu0 0
      %803 = vmatmul.mubr.bf16.gmra.mxu0 %v683
      %v804 = vpop.f32.mrf.mxu0
      %v805 = vadd.f32 %v632, %v804
      %v806 = vpop.f32.mrf.mxu0
      %v807 = vpop.f32.mrf.mxu0
      %v808 = vadd.f32 %v632, %v807
      %v809 = vpop.f32.mrf.mxu0
      %810 = vmatprep.mubr.bf16.mxu0 0
      %811 = vmatmul.mubr.bf16.gmra.mxu0 %v686
      %v812 = vpop.f32.mrf.mxu0
      %v813 = vadd.f32 %v632, %v812
      %v814 = vpop.f32.mrf.mxu0
      %v815 = vpop.f32.mrf.mxu0
      %v816 = vadd.f32 %v632, %v815
      %v817 = vpop.f32.mrf.mxu0
      %818 = vmatprep.mubr.bf16.mxu0 0
      %819 = vmatmul.mubr.bf16.gmra.mxu0 %v689
      %v820 = vpop.f32.mrf.mxu0
      %v821 = vadd.f32 %v632, %v820
      %v822 = vpop.f32.mrf.mxu0
      %v823 = vpop.f32.mrf.mxu0
      %v824 = vadd.f32 %v632, %v823
      %v825 = vpop.f32.mrf.mxu0
      %826 = vmatprep.mubr.bf16.mxu0 0
      %827 = vmatmul.mubr.bf16.gmra.mxu0 %v692
      %v828 = vpop.f32.mrf.mxu0
      %v829 = vadd.f32 %v632, %v828
      %v830 = vpop.f32.mrf.mxu0
      %v831 = vpop.f32.mrf.mxu0
      %v832 = vadd.f32 %v632, %v831
      %v833 = vpop.f32.mrf.mxu0
      %834 = vmatprep.mubr.bf16.mxu0 0
      %835 = vmatmul.mubr.bf16.gmra.mxu0 %v695
      %v836 = vpop.f32.mrf.mxu0
      %v837 = vadd.f32 %v632, %v836
      %v838 = vpop.f32.mrf.mxu0
      %v839 = vpop.f32.mrf.mxu0
      %v840 = vadd.f32 %v632, %v839
      %v841 = vpop.f32.mrf.mxu0
      %842 = vmatprep.mubr.bf16.mxu0 0
      %843 = vmatmul.mubr.bf16.gmra.mxu0 %v698
      %v844 = vpop.f32.mrf.mxu0
      %v845 = vadd.f32 %v632, %v844
      %v846 = vpop.f32.mrf.mxu0
      %v847 = vpop.f32.mrf.mxu0
      %v848 = vadd.f32 %v632, %v847
      %v849 = vpop.f32.mrf.mxu0
      %850 = vmatprep.mubr.bf16.mxu0 0
      %851 = vmatmul.mubr.bf16.gmra.mxu0 %v701
      %v852 = vpop.f32.mrf.mxu0
      %v853 = vadd.f32 %v632, %v852
      %v854 = vpop.f32.mrf.mxu0
      %v855 = vpop.f32.mrf.mxu0
      %v856 = vadd.f32 %v632, %v855
      %v857 = vpop.f32.mrf.mxu0
      %858 = vmatprep.mubr.bf16.mxu0 0
      %859 = vmatmul.mubr.bf16.gmra.mxu0 %v704
      %v860 = vpop.f32.mrf.mxu0
      %v861 = vadd.f32 %v632, %v860
      %v862 = vpop.f32.mrf.mxu0
      %v863 = vpop.f32.mrf.mxu0
      %v864 = vadd.f32 %v632, %v863
      %v865 = vpop.f32.mrf.mxu0
      %866 = vdwg.mxu0
      %v867 = vtanh.pop %v741
      %v868 = vtanh.pop %v744
      %v869 = vtanh.pop %v749
      %v870 = vtanh.pop %v752
      %v871 = vtanh.pop %v757
      %v872 = vtanh.pop %v760
      %v873 = vtanh.pop %v765
      %v874 = vtanh.pop %v768
      %v875 = vtanh.pop %v773
      %v876 = vtanh.pop %v776
      %v877 = vtanh.pop %v781
      %v878 = vtanh.pop %v784
      %v879 = vtanh.pop %v789
      %v880 = vtanh.pop %v792
      %v881 = vtanh.pop %v797
      %v882 = vtanh.pop %v800
      %v883 = vtanh.pop %v805
      %v884 = vtanh.pop %v808
      %v885 = vtanh.pop %v813
      %v886 = vtanh.pop %v816
      %v887 = vtanh.pop %v821
      %v888 = vtanh.pop %v824
      %v889 = vtanh.pop %v829
      %v890 = vtanh.pop %v832
      %v891 = vtanh.pop %v837
      %v892 = vtanh.pop %v840
      %v893 = vtanh.pop %v845
      %v894 = vtanh.pop %v848
      %v895 = vtanh.pop %v853
      %v896 = vtanh.pop %v856
      %v897 = vtanh.pop %v861
      %v898 = vtanh.pop %v864
      %v899 = vpack.c.bf16 %v868, %v867
      %v900 = vpack.c.bf16 %v870, %v869
      %v901 = vpack.c.bf16 %v872, %v871
      %v902 = vpack.c.bf16 %v874, %v873
      %v903 = vpack.c.bf16 %v876, %v875
      %v904 = vpack.c.bf16 %v878, %v877
      %v905 = vpack.c.bf16 %v880, %v879
      %v906 = vpack.c.bf16 %v882, %v881
      %v907 = vpack.c.bf16 %v884, %v883
      %v908 = vpack.c.bf16 %v886, %v885
      %v909 = vpack.c.bf16 %v888, %v887
      %v910 = vpack.c.bf16 %v890, %v889
      %v911 = vpack.c.bf16 %v892, %v891
      %v912 = vpack.c.bf16 %v894, %v893
      %v913 = vpack.c.bf16 %v896, %v895
      %v914 = vpack.c.bf16 %v898, %v897
      %s915 = scalar_lea.vmem %s1, 64
      %v916 = vld [vmem:[%s915] sm:$0xf]
      %v917 = vld [vmem:[%s915 + $0x4] sm:$0xf]
      %v918 = vld [vmem:[%s915 + $0x8] sm:$0xf]
      %v919 = vld [vmem:[%s915 + $0xc] sm:$0xf]
      %v920 = vld [vmem:[%s915 + $0x10] sm:$0xf]
      %v921 = vld [vmem:[%s915 + $0x14] sm:$0xf]
      %v922 = vld [vmem:[%s915 + $0x18] sm:$0xf]
      %v923 = vld [vmem:[%s915 + $0x1c] sm:$0xf]
      %s924 = scalar_lea.vmem %s2, 2
      %v925 = vld [vmem:[%s924] sm:$0x1]
      %v927 = vlaneseq
      %v928 = vshrl.u32 %v927, 7
      %v929 = vsub.s32 0, %v928
      %v930 = vrot.slane %v925, %v929
      %v940 = vunpack.c.l.b16 %v916
      %v941 = vunpack.c.l.b16 %v917
      %v942 = vunpack.c.l.b16 %v918
      %v943 = vunpack.c.l.b16 %v919
      %v944 = vunpack.c.l.b16 %v920
      %v945 = vunpack.c.l.b16 %v921
      %v946 = vunpack.c.l.b16 %v922
      %v947 = vunpack.c.l.b16 %v923
      %v948 = vpack.c.b16 %v941, %v940
      %v949 = vpack.c.b16 %v943, %v942
      %v950 = vpack.c.b16 %v945, %v944
      %v951 = vpack.c.b16 %v947, %v946
      %v957 = vsel %vm175, %v899, 0
      %v960 = vsel %vm175, %v900, 0
      %v963 = vsel %vm175, %v901, 0
      %v966 = vsel %vm175, %v902, 0
      %v969 = vsel %vm175, %v903, 0
      %v972 = vsel %vm175, %v904, 0
      %v975 = vsel %vm175, %v905, 0
      %v978 = vsel %vm175, %v906, 0
      %v981 = vsel %vm175, %v907, 0
      %v984 = vsel %vm175, %v908, 0
      %v987 = vsel %vm175, %v909, 0
      %v990 = vsel %vm175, %v910, 0
      %v993 = vsel %vm175, %v911, 0
      %v996 = vsel %vm175, %v912, 0
      %v999 = vsel %vm175, %v913, 0
      %v1002 = vsel %vm175, %v914, 0
      %1004 = vmatprep.subr.bf16.mxu0 0
      %1005 = vmatpush1.bf16.msra.mxu0 0
      %1006 = vmatprep.subr.bf16.mxu0 0
      %1007 = vmatpush1.bf16.msra.mxu0 0
      %1008 = vmatprep.subr.bf16.mxu0 0
      %1009 = vmatpush1.bf16.msra.mxu0 0
      %1010 = vmatprep.subr.bf16.mxu0 0
      %1011 = vmatpush1.bf16.msra.mxu0 0
      %1012 = vmatprep.subr.bf16.mxu0 0
      %1013 = vmatpush1.bf16.msra.mxu0 %v951
      %1014 = vmatprep.subr.bf16.mxu0 0
      %1015 = vmatpush1.bf16.msra.mxu0 %v950
      %1016 = vmatprep.subr.bf16.mxu0 0
      %1017 = vmatpush1.bf16.msra.mxu0 %v949
      %1018 = vmatprep.subr.bf16.mxu0 0
      %1019 = vmatpush1.bf16.msra.mxu0 %v948
      %1020 = vmatprep.subr.bf16.mxu0 0
      %1021 = vmatpush2.bf16.msra.mxu0 0
      %1022 = vmatprep.subr.bf16.mxu0 0
      %1023 = vmatpush2.bf16.msra.mxu0 0
      %1024 = vmatprep.subr.bf16.mxu0 0
      %1025 = vmatpush2.bf16.msra.mxu0 0
      %1026 = vmatprep.subr.bf16.mxu0 0
      %1027 = vmatpush2.bf16.msra.mxu0 0
      %1028 = vmatprep.subr.bf16.mxu0 0
      %1029 = vmatpush2.bf16.msra.mxu0 0
      %1030 = vmatprep.subr.bf16.mxu0 0
      %1031 = vmatpush2.bf16.msra.mxu0 0
      %1032 = vmatprep.subr.bf16.mxu0 0
      %1033 = vmatpush2.bf16.msra.mxu0 0
      %1034 = vmatprep.subr.bf16.mxu0 0
      %1035 = vmatpush2.bf16.msra.mxu0 0
      %1036 = vmatprep.mubr.bf16.mxu0 0
      %1037 = vmatmul.mubr.bf16.gmra.mxu0 %v957
      %v1038 = vpop.f32.mrf.mxu0
      %v1039 = vadd.f32 %v930, %v1038
      %v1040 = vpop.f32.mrf.mxu0
      %v1041 = vpop.f32.mrf.mxu0
      %v1042 = vadd.f32 %v930, %v1041
      %v1043 = vpop.f32.mrf.mxu0
      %1044 = vmatprep.mubr.bf16.mxu0 0
      %1045 = vmatmul.mubr.bf16.gmra.mxu0 %v960
      %v1046 = vpop.f32.mrf.mxu0
      %v1047 = vadd.f32 %v930, %v1046
      %v1048 = vpop.f32.mrf.mxu0
      %v1049 = vpop.f32.mrf.mxu0
      %v1050 = vadd.f32 %v930, %v1049
      %v1051 = vpop.f32.mrf.mxu0
      %1052 = vmatprep.mubr.bf16.mxu0 0
      %1053 = vmatmul.mubr.bf16.gmra.mxu0 %v963
      %v1054 = vpop.f32.mrf.mxu0
      %v1055 = vadd.f32 %v930, %v1054
      %v1056 = vpop.f32.mrf.mxu0
      %v1057 = vpop.f32.mrf.mxu0
      %v1058 = vadd.f32 %v930, %v1057
      %v1059 = vpop.f32.mrf.mxu0
      %1060 = vmatprep.mubr.bf16.mxu0 0
      %1061 = vmatmul.mubr.bf16.gmra.mxu0 %v966
      %v1062 = vpop.f32.mrf.mxu0
      %v1063 = vadd.f32 %v930, %v1062
      %v1064 = vpop.f32.mrf.mxu0
      %v1065 = vpop.f32.mrf.mxu0
      %v1066 = vadd.f32 %v930, %v1065
      %v1067 = vpop.f32.mrf.mxu0
      %1068 = vmatprep.mubr.bf16.mxu0 0
      %1069 = vmatmul.mubr.bf16.gmra.mxu0 %v969
      %v1070 = vpop.f32.mrf.mxu0
      %v1071 = vadd.f32 %v930, %v1070
      %v1072 = vpop.f32.mrf.mxu0
      %v1073 = vpop.f32.mrf.mxu0
      %v1074 = vadd.f32 %v930, %v1073
      %v1075 = vpop.f32.mrf.mxu0
      %1076 = vmatprep.mubr.bf16.mxu0 0
      %1077 = vmatmul.mubr.bf16.gmra.mxu0 %v972
      %v1078 = vpop.f32.mrf.mxu0
      %v1079 = vadd.f32 %v930, %v1078
      %v1080 = vpop.f32.mrf.mxu0
      %v1081 = vpop.f32.mrf.mxu0
      %v1082 = vadd.f32 %v930, %v1081
      %v1083 = vpop.f32.mrf.mxu0
      %1084 = vmatprep.mubr.bf16.mxu0 0
      %1085 = vmatmul.mubr.bf16.gmra.mxu0 %v975
      %v1086 = vpop.f32.mrf.mxu0
      %v1087 = vadd.f32 %v930, %v1086
      %v1088 = vpop.f32.mrf.mxu0
      %v1089 = vpop.f32.mrf.mxu0
      %v1090 = vadd.f32 %v930, %v1089
      %v1091 = vpop.f32.mrf.mxu0
      %1092 = vmatprep.mubr.bf16.mxu0 0
      %1093 = vmatmul.mubr.bf16.gmra.mxu0 %v978
      %v1094 = vpop.f32.mrf.mxu0
      %v1095 = vadd.f32 %v930, %v1094
      %v1096 = vpop.f32.mrf.mxu0
      %v1097 = vpop.f32.mrf.mxu0
      %v1098 = vadd.f32 %v930, %v1097
      %v1099 = vpop.f32.mrf.mxu0
      %1100 = vmatprep.mubr.bf16.mxu0 0
      %1101 = vmatmul.mubr.bf16.gmra.mxu0 %v981
      %v1102 = vpop.f32.mrf.mxu0
      %v1103 = vadd.f32 %v930, %v1102
      %v1104 = vpop.f32.mrf.mxu0
      %v1105 = vpop.f32.mrf.mxu0
      %v1106 = vadd.f32 %v930, %v1105
      %v1107 = vpop.f32.mrf.mxu0
      %1108 = vmatprep.mubr.bf16.mxu0 0
      %1109 = vmatmul.mubr.bf16.gmra.mxu0 %v984
      %v1110 = vpop.f32.mrf.mxu0
      %v1111 = vadd.f32 %v930, %v1110
      %v1112 = vpop.f32.mrf.mxu0
      %v1113 = vpop.f32.mrf.mxu0
      %v1114 = vadd.f32 %v930, %v1113
      %v1115 = vpop.f32.mrf.mxu0
      %1116 = vmatprep.mubr.bf16.mxu0 0
      %1117 = vmatmul.mubr.bf16.gmra.mxu0 %v987
      %v1118 = vpop.f32.mrf.mxu0
      %v1119 = vadd.f32 %v930, %v1118
      %v1120 = vpop.f32.mrf.mxu0
      %v1121 = vpop.f32.mrf.mxu0
      %v1122 = vadd.f32 %v930, %v1121
      %v1123 = vpop.f32.mrf.mxu0
      %1124 = vmatprep.mubr.bf16.mxu0 0
      %1125 = vmatmul.mubr.bf16.gmra.mxu0 %v990
      %v1126 = vpop.f32.mrf.mxu0
      %v1127 = vadd.f32 %v930, %v1126
      %v1128 = vpop.f32.mrf.mxu0
      %v1129 = vpop.f32.mrf.mxu0
      %v1130 = vadd.f32 %v930, %v1129
      %v1131 = vpop.f32.mrf.mxu0
      %1132 = vmatprep.mubr.bf16.mxu0 0
      %1133 = vmatmul.mubr.bf16.gmra.mxu0 %v993
      %v1134 = vpop.f32.mrf.mxu0
      %v1135 = vadd.f32 %v930, %v1134
      %v1136 = vpop.f32.mrf.mxu0
      %v1137 = vpop.f32.mrf.mxu0
      %v1138 = vadd.f32 %v930, %v1137
      %v1139 = vpop.f32.mrf.mxu0
      %1140 = vmatprep.mubr.bf16.mxu0 0
      %1141 = vmatmul.mubr.bf16.gmra.mxu0 %v996
      %v1142 = vpop.f32.mrf.mxu0
      %v1143 = vadd.f32 %v930, %v1142
      %v1144 = vpop.f32.mrf.mxu0
      %v1145 = vpop.f32.mrf.mxu0
      %v1146 = vadd.f32 %v930, %v1145
      %v1147 = vpop.f32.mrf.mxu0
      %1148 = vmatprep.mubr.bf16.mxu0 0
      %1149 = vmatmul.mubr.bf16.gmra.mxu0 %v999
      %v1150 = vpop.f32.mrf.mxu0
      %v1151 = vadd.f32 %v930, %v1150
      %v1152 = vpop.f32.mrf.mxu0
      %v1153 = vpop.f32.mrf.mxu0
      %v1154 = vadd.f32 %v930, %v1153
      %v1155 = vpop.f32.mrf.mxu0
      %1156 = vmatprep.mubr.bf16.mxu0 0
      %1157 = vmatmul.mubr.bf16.gmra.mxu0 %v1002
      %v1158 = vpop.f32.mrf.mxu0
      %v1159 = vadd.f32 %v930, %v1158
      %v1160 = vpop.f32.mrf.mxu0
      %v1161 = vpop.f32.mrf.mxu0
      %v1162 = vadd.f32 %v930, %v1161
      %v1163 = vpop.f32.mrf.mxu0
      %1164 = vdwg.mxu0
      %v1165 = vtanh.pop %v1039
      %v1166 = vtanh.pop %v1042
      %v1167 = vtanh.pop %v1047
      %v1168 = vtanh.pop %v1050
      %v1169 = vtanh.pop %v1055
      %v1170 = vtanh.pop %v1058
      %v1171 = vtanh.pop %v1063
      %v1172 = vtanh.pop %v1066
      %v1173 = vtanh.pop %v1071
      %v1174 = vtanh.pop %v1074
      %v1175 = vtanh.pop %v1079
      %v1176 = vtanh.pop %v1082
      %v1177 = vtanh.pop %v1087
      %v1178 = vtanh.pop %v1090
      %v1179 = vtanh.pop %v1095
      %v1180 = vtanh.pop %v1098
      %v1181 = vtanh.pop %v1103
      %v1182 = vtanh.pop %v1106
      %v1183 = vtanh.pop %v1111
      %v1184 = vtanh.pop %v1114
      %v1185 = vtanh.pop %v1119
      %v1186 = vtanh.pop %v1122
      %v1187 = vtanh.pop %v1127
      %v1188 = vtanh.pop %v1130
      %v1189 = vtanh.pop %v1135
      %v1190 = vtanh.pop %v1138
      %v1191 = vtanh.pop %v1143
      %v1192 = vtanh.pop %v1146
      %v1193 = vtanh.pop %v1151
      %v1194 = vtanh.pop %v1154
      %v1195 = vtanh.pop %v1159
      %v1196 = vtanh.pop %v1162
      %v1197 = vpack.c.bf16 %v1166, %v1165
      %v1198 = vpack.c.bf16 %v1168, %v1167
      %v1199 = vpack.c.bf16 %v1170, %v1169
      %v1200 = vpack.c.bf16 %v1172, %v1171
      %v1201 = vpack.c.bf16 %v1174, %v1173
      %v1202 = vpack.c.bf16 %v1176, %v1175
      %v1203 = vpack.c.bf16 %v1178, %v1177
      %v1204 = vpack.c.bf16 %v1180, %v1179
      %v1205 = vpack.c.bf16 %v1182, %v1181
      %v1206 = vpack.c.bf16 %v1184, %v1183
      %v1207 = vpack.c.bf16 %v1186, %v1185
      %v1208 = vpack.c.bf16 %v1188, %v1187
      %v1209 = vpack.c.bf16 %v1190, %v1189
      %v1210 = vpack.c.bf16 %v1192, %v1191
      %v1211 = vpack.c.bf16 %v1194, %v1193
      %v1212 = vpack.c.bf16 %v1196, %v1195
      %s1213 = scalar_lea.vmem %s1, 96
      %v1214 = vld [vmem:[%s1213] sm:$0xf]
      %v1215 = vld [vmem:[%s1213 + $0x4] sm:$0xf]
      %v1216 = vld [vmem:[%s1213 + $0x8] sm:$0xf]
      %v1217 = vld [vmem:[%s1213 + $0xc] sm:$0xf]
      %v1218 = vld [vmem:[%s1213 + $0x10] sm:$0xf]
      %v1219 = vld [vmem:[%s1213 + $0x14] sm:$0xf]
      %v1220 = vld [vmem:[%s1213 + $0x18] sm:$0xf]
      %v1221 = vld [vmem:[%s1213 + $0x1c] sm:$0xf]
      %s1222 = scalar_lea.vmem %s2, 3
      %v1223 = vld [vmem:[%s1222] sm:$0x1]
      %v1225 = vlaneseq
      %v1226 = vshrl.u32 %v1225, 7
      %v1227 = vsub.s32 0, %v1226
      %v1228 = vrot.slane %v1223, %v1227
      %v1238 = vunpack.c.l.b16 %v1214
      %v1239 = vunpack.c.l.b16 %v1215
      %v1240 = vunpack.c.l.b16 %v1216
      %v1241 = vunpack.c.l.b16 %v1217
      %v1242 = vunpack.c.l.b16 %v1218
      %v1243 = vunpack.c.l.b16 %v1219
      %v1244 = vunpack.c.l.b16 %v1220
      %v1245 = vunpack.c.l.b16 %v1221
      %v1246 = vpack.c.b16 %v1239, %v1238
      %v1247 = vpack.c.b16 %v1241, %v1240
      %v1248 = vpack.c.b16 %v1243, %v1242
      %v1249 = vpack.c.b16 %v1245, %v1244
      %v1255 = vsel %vm175, %v1197, 0
      %v1258 = vsel %vm175, %v1198, 0
      %v1261 = vsel %vm175, %v1199, 0
      %v1264 = vsel %vm175, %v1200, 0
      %v1267 = vsel %vm175, %v1201, 0
      %v1270 = vsel %vm175, %v1202, 0
      %v1273 = vsel %vm175, %v1203, 0
      %v1276 = vsel %vm175, %v1204, 0
      %v1279 = vsel %vm175, %v1205, 0
      %v1282 = vsel %vm175, %v1206, 0
      %v1285 = vsel %vm175, %v1207, 0
      %v1288 = vsel %vm175, %v1208, 0
      %v1291 = vsel %vm175, %v1209, 0
      %v1294 = vsel %vm175, %v1210, 0
      %v1297 = vsel %vm175, %v1211, 0
      %v1300 = vsel %vm175, %v1212, 0
      %1302 = vmatprep.subr.bf16.mxu0 0
      %1303 = vmatpush1.bf16.msra.mxu0 0
      %1304 = vmatprep.subr.bf16.mxu0 0
      %1305 = vmatpush1.bf16.msra.mxu0 0
      %1306 = vmatprep.subr.bf16.mxu0 0
      %1307 = vmatpush1.bf16.msra.mxu0 0
      %1308 = vmatprep.subr.bf16.mxu0 0
      %1309 = vmatpush1.bf16.msra.mxu0 0
      %1310 = vmatprep.subr.bf16.mxu0 0
      %1311 = vmatpush1.bf16.msra.mxu0 %v1249
      %1312 = vmatprep.subr.bf16.mxu0 0
      %1313 = vmatpush1.bf16.msra.mxu0 %v1248
      %1314 = vmatprep.subr.bf16.mxu0 0
      %1315 = vmatpush1.bf16.msra.mxu0 %v1247
      %1316 = vmatprep.subr.bf16.mxu0 0
      %1317 = vmatpush1.bf16.msra.mxu0 %v1246
      %1318 = vmatprep.subr.bf16.mxu0 0
      %1319 = vmatpush2.bf16.msra.mxu0 0
      %1320 = vmatprep.subr.bf16.mxu0 0
      %1321 = vmatpush2.bf16.msra.mxu0 0
      %1322 = vmatprep.subr.bf16.mxu0 0
      %1323 = vmatpush2.bf16.msra.mxu0 0
      %1324 = vmatprep.subr.bf16.mxu0 0
      %1325 = vmatpush2.bf16.msra.mxu0 0
      %1326 = vmatprep.subr.bf16.mxu0 0
      %1327 = vmatpush2.bf16.msra.mxu0 0
      %1328 = vmatprep.subr.bf16.mxu0 0
      %1329 = vmatpush2.bf16.msra.mxu0 0
      %1330 = vmatprep.subr.bf16.mxu0 0
      %1331 = vmatpush2.bf16.msra.mxu0 0
      %1332 = vmatprep.subr.bf16.mxu0 0
      %1333 = vmatpush2.bf16.msra.mxu0 0
      %1334 = vmatprep.mubr.bf16.mxu0 0
      %1335 = vmatmul.mubr.bf16.gmra.mxu0 %v1255
      %v1336 = vpop.f32.mrf.mxu0
      %v1337 = vadd.f32 %v1228, %v1336
      %v1338 = vpop.f32.mrf.mxu0
      %v1339 = vpop.f32.mrf.mxu0
      %v1340 = vadd.f32 %v1228, %v1339
      %v1341 = vpop.f32.mrf.mxu0
      %1342 = vmatprep.mubr.bf16.mxu0 0
      %1343 = vmatmul.mubr.bf16.gmra.mxu0 %v1258
      %v1344 = vpop.f32.mrf.mxu0
      %v1345 = vadd.f32 %v1228, %v1344
      %v1346 = vpop.f32.mrf.mxu0
      %v1347 = vpop.f32.mrf.mxu0
      %v1348 = vadd.f32 %v1228, %v1347
      %v1349 = vpop.f32.mrf.mxu0
      %1350 = vmatprep.mubr.bf16.mxu0 0
      %1351 = vmatmul.mubr.bf16.gmra.mxu0 %v1261
      %v1352 = vpop.f32.mrf.mxu0
      %v1353 = vadd.f32 %v1228, %v1352
      %v1354 = vpop.f32.mrf.mxu0
      %v1355 = vpop.f32.mrf.mxu0
      %v1356 = vadd.f32 %v1228, %v1355
      %v1357 = vpop.f32.mrf.mxu0
      %1358 = vmatprep.mubr.bf16.mxu0 0
      %1359 = vmatmul.mubr.bf16.gmra.mxu0 %v1264
      %v1360 = vpop.f32.mrf.mxu0
      %v1361 = vadd.f32 %v1228, %v1360
      %v1362 = vpop.f32.mrf.mxu0
      %v1363 = vpop.f32.mrf.mxu0
      %v1364 = vadd.f32 %v1228, %v1363
      %v1365 = vpop.f32.mrf.mxu0
      %1366 = vmatprep.mubr.bf16.mxu0 0
      %1367 = vmatmul.mubr.bf16.gmra.mxu0 %v1267
      %v1368 = vpop.f32.mrf.mxu0
      %v1369 = vadd.f32 %v1228, %v1368
      %v1370 = vpop.f32.mrf.mxu0
      %v1371 = vpop.f32.mrf.mxu0
      %v1372 = vadd.f32 %v1228, %v1371
      %v1373 = vpop.f32.mrf.mxu0
      %1374 = vmatprep.mubr.bf16.mxu0 0
      %1375 = vmatmul.mubr.bf16.gmra.mxu0 %v1270
      %v1376 = vpop.f32.mrf.mxu0
      %v1377 = vadd.f32 %v1228, %v1376
      %v1378 = vpop.f32.mrf.mxu0
      %v1379 = vpop.f32.mrf.mxu0
      %v1380 = vadd.f32 %v1228, %v1379
      %v1381 = vpop.f32.mrf.mxu0
      %1382 = vmatprep.mubr.bf16.mxu0 0
      %1383 = vmatmul.mubr.bf16.gmra.mxu0 %v1273
      %v1384 = vpop.f32.mrf.mxu0
      %v1385 = vadd.f32 %v1228, %v1384
      %v1386 = vpop.f32.mrf.mxu0
      %v1387 = vpop.f32.mrf.mxu0
      %v1388 = vadd.f32 %v1228, %v1387
      %v1389 = vpop.f32.mrf.mxu0
      %1390 = vmatprep.mubr.bf16.mxu0 0
      %1391 = vmatmul.mubr.bf16.gmra.mxu0 %v1276
      %v1392 = vpop.f32.mrf.mxu0
      %v1393 = vadd.f32 %v1228, %v1392
      %v1394 = vpop.f32.mrf.mxu0
      %v1395 = vpop.f32.mrf.mxu0
      %v1396 = vadd.f32 %v1228, %v1395
      %v1397 = vpop.f32.mrf.mxu0
      %1398 = vmatprep.mubr.bf16.mxu0 0
      %1399 = vmatmul.mubr.bf16.gmra.mxu0 %v1279
      %v1400 = vpop.f32.mrf.mxu0
      %v1401 = vadd.f32 %v1228, %v1400
      %v1402 = vpop.f32.mrf.mxu0
      %v1403 = vpop.f32.mrf.mxu0
      %v1404 = vadd.f32 %v1228, %v1403
      %v1405 = vpop.f32.mrf.mxu0
      %1406 = vmatprep.mubr.bf16.mxu0 0
      %1407 = vmatmul.mubr.bf16.gmra.mxu0 %v1282
      %v1408 = vpop.f32.mrf.mxu0
      %v1409 = vadd.f32 %v1228, %v1408
      %v1410 = vpop.f32.mrf.mxu0
      %v1411 = vpop.f32.mrf.mxu0
      %v1412 = vadd.f32 %v1228, %v1411
      %v1413 = vpop.f32.mrf.mxu0
      %1414 = vmatprep.mubr.bf16.mxu0 0
      %1415 = vmatmul.mubr.bf16.gmra.mxu0 %v1285
      %v1416 = vpop.f32.mrf.mxu0
      %v1417 = vadd.f32 %v1228, %v1416
      %v1418 = vpop.f32.mrf.mxu0
      %v1419 = vpop.f32.mrf.mxu0
      %v1420 = vadd.f32 %v1228, %v1419
      %v1421 = vpop.f32.mrf.mxu0
      %1422 = vmatprep.mubr.bf16.mxu0 0
      %1423 = vmatmul.mubr.bf16.gmra.mxu0 %v1288
      %v1424 = vpop.f32.mrf.mxu0
      %v1425 = vadd.f32 %v1228, %v1424
      %v1426 = vpop.f32.mrf.mxu0
      %v1427 = vpop.f32.mrf.mxu0
      %v1428 = vadd.f32 %v1228, %v1427
      %v1429 = vpop.f32.mrf.mxu0
      %1430 = vmatprep.mubr.bf16.mxu0 0
      %1431 = vmatmul.mubr.bf16.gmra.mxu0 %v1291
      %v1432 = vpop.f32.mrf.mxu0
      %v1433 = vadd.f32 %v1228, %v1432
      %v1434 = vpop.f32.mrf.mxu0
      %v1435 = vpop.f32.mrf.mxu0
      %v1436 = vadd.f32 %v1228, %v1435
      %v1437 = vpop.f32.mrf.mxu0
      %1438 = vmatprep.mubr.bf16.mxu0 0
      %1439 = vmatmul.mubr.bf16.gmra.mxu0 %v1294
      %v1440 = vpop.f32.mrf.mxu0
      %v1441 = vadd.f32 %v1228, %v1440
      %v1442 = vpop.f32.mrf.mxu0
      %v1443 = vpop.f32.mrf.mxu0
      %v1444 = vadd.f32 %v1228, %v1443
      %v1445 = vpop.f32.mrf.mxu0
      %1446 = vmatprep.mubr.bf16.mxu0 0
      %1447 = vmatmul.mubr.bf16.gmra.mxu0 %v1297
      %v1448 = vpop.f32.mrf.mxu0
      %v1449 = vadd.f32 %v1228, %v1448
      %v1450 = vpop.f32.mrf.mxu0
      %v1451 = vpop.f32.mrf.mxu0
      %v1452 = vadd.f32 %v1228, %v1451
      %v1453 = vpop.f32.mrf.mxu0
      %1454 = vmatprep.mubr.bf16.mxu0 0
      %1455 = vmatmul.mubr.bf16.gmra.mxu0 %v1300
      %v1456 = vpop.f32.mrf.mxu0
      %v1457 = vadd.f32 %v1228, %v1456
      %v1458 = vpop.f32.mrf.mxu0
      %v1459 = vpop.f32.mrf.mxu0
      %v1460 = vadd.f32 %v1228, %v1459
      %v1461 = vpop.f32.mrf.mxu0
      %1462 = vdwg.mxu0
      %v1463 = vtanh.pop %v1337
      %v1464 = vtanh.pop %v1340
      %v1465 = vtanh.pop %v1345
      %v1466 = vtanh.pop %v1348
      %v1467 = vtanh.pop %v1353
      %v1468 = vtanh.pop %v1356
      %v1469 = vtanh.pop %v1361
      %v1470 = vtanh.pop %v1364
      %v1471 = vtanh.pop %v1369
      %v1472 = vtanh.pop %v1372
      %v1473 = vtanh.pop %v1377
      %v1474 = vtanh.pop %v1380
      %v1475 = vtanh.pop %v1385
      %v1476 = vtanh.pop %v1388
      %v1477 = vtanh.pop %v1393
      %v1478 = vtanh.pop %v1396
      %v1479 = vtanh.pop %v1401
      %v1480 = vtanh.pop %v1404
      %v1481 = vtanh.pop %v1409
      %v1482 = vtanh.pop %v1412
      %v1483 = vtanh.pop %v1417
      %v1484 = vtanh.pop %v1420
      %v1485 = vtanh.pop %v1425
      %v1486 = vtanh.pop %v1428
      %v1487 = vtanh.pop %v1433
      %v1488 = vtanh.pop %v1436
      %v1489 = vtanh.pop %v1441
      %v1490 = vtanh.pop %v1444
      %v1491 = vtanh.pop %v1449
      %v1492 = vtanh.pop %v1452
      %v1493 = vtanh.pop %v1457
      %v1494 = vtanh.pop %v1460
      %v1495 = vpack.c.bf16 %v1464, %v1463
      %v1496 = vpack.c.bf16 %v1466, %v1465
      %v1497 = vpack.c.bf16 %v1468, %v1467
      %v1498 = vpack.c.bf16 %v1470, %v1469
      %v1499 = vpack.c.bf16 %v1472, %v1471
      %v1500 = vpack.c.bf16 %v1474, %v1473
      %v1501 = vpack.c.bf16 %v1476, %v1475
      %v1502 = vpack.c.bf16 %v1478, %v1477
      %v1503 = vpack.c.bf16 %v1480, %v1479
      %v1504 = vpack.c.bf16 %v1482, %v1481
      %v1505 = vpack.c.bf16 %v1484, %v1483
      %v1506 = vpack.c.bf16 %v1486, %v1485
      %v1507 = vpack.c.bf16 %v1488, %v1487
      %v1508 = vpack.c.bf16 %v1490, %v1489
      %v1509 = vpack.c.bf16 %v1492, %v1491
      %v1510 = vpack.c.bf16 %v1494, %v1493
      %s1511 = scalar_lea.vmem %s1, 128
      %v1512 = vld [vmem:[%s1511] sm:$0xf]
      %v1513 = vld [vmem:[%s1511 + $0x4] sm:$0xf]
      %v1514 = vld [vmem:[%s1511 + $0x8] sm:$0xf]
      %v1515 = vld [vmem:[%s1511 + $0xc] sm:$0xf]
      %v1516 = vld [vmem:[%s1511 + $0x10] sm:$0xf]
      %v1517 = vld [vmem:[%s1511 + $0x14] sm:$0xf]
      %v1518 = vld [vmem:[%s1511 + $0x18] sm:$0xf]
      %v1519 = vld [vmem:[%s1511 + $0x1c] sm:$0xf]
      %s1520 = scalar_lea.vmem %s2, 4
      %v1521 = vld [vmem:[%s1520] sm:$0x1]
      %v1523 = vlaneseq
      %v1524 = vshrl.u32 %v1523, 7
      %v1525 = vsub.s32 0, %v1524
      %v1526 = vrot.slane %v1521, %v1525
      %v1536 = vunpack.c.l.b16 %v1512
      %v1537 = vunpack.c.l.b16 %v1513
      %v1538 = vunpack.c.l.b16 %v1514
      %v1539 = vunpack.c.l.b16 %v1515
      %v1540 = vunpack.c.l.b16 %v1516
      %v1541 = vunpack.c.l.b16 %v1517
      %v1542 = vunpack.c.l.b16 %v1518
      %v1543 = vunpack.c.l.b16 %v1519
      %v1544 = vpack.c.b16 %v1537, %v1536
      %v1545 = vpack.c.b16 %v1539, %v1538
      %v1546 = vpack.c.b16 %v1541, %v1540
      %v1547 = vpack.c.b16 %v1543, %v1542
      %v1553 = vsel %vm175, %v1495, 0
      %v1556 = vsel %vm175, %v1496, 0
      %v1559 = vsel %vm175, %v1497, 0
      %v1562 = vsel %vm175, %v1498, 0
      %v1565 = vsel %vm175, %v1499, 0
      %v1568 = vsel %vm175, %v1500, 0
      %v1571 = vsel %vm175, %v1501, 0
      %v1574 = vsel %vm175, %v1502, 0
      %v1577 = vsel %vm175, %v1503, 0
      %v1580 = vsel %vm175, %v1504, 0
      %v1583 = vsel %vm175, %v1505, 0
      %v1586 = vsel %vm175, %v1506, 0
      %v1589 = vsel %vm175, %v1507, 0
      %v1592 = vsel %vm175, %v1508, 0
      %v1595 = vsel %vm175, %v1509, 0
      %v1598 = vsel %vm175, %v1510, 0
      %1600 = vmatprep.subr.bf16.mxu0 0
      %1601 = vmatpush1.bf16.msra.mxu0 0
      %1602 = vmatprep.subr.bf16.mxu0 0
      %1603 = vmatpush1.bf16.msra.mxu0 0
      %1604 = vmatprep.subr.bf16.mxu0 0
      %1605 = vmatpush1.bf16.msra.mxu0 0
      %1606 = vmatprep.subr.bf16.mxu0 0
      %1607 = vmatpush1.bf16.msra.mxu0 0
      %1608 = vmatprep.subr.bf16.mxu0 0
      %1609 = vmatpush1.bf16.msra.mxu0 %v1547
      %1610 = vmatprep.subr.bf16.mxu0 0
      %1611 = vmatpush1.bf16.msra.mxu0 %v1546
      %1612 = vmatprep.subr.bf16.mxu0 0
      %1613 = vmatpush1.bf16.msra.mxu0 %v1545
      %1614 = vmatprep.subr.bf16.mxu0 0
      %1615 = vmatpush1.bf16.msra.mxu0 %v1544
      %1616 = vmatprep.subr.bf16.mxu0 0
      %1617 = vmatpush2.bf16.msra.mxu0 0
      %1618 = vmatprep.subr.bf16.mxu0 0
      %1619 = vmatpush2.bf16.msra.mxu0 0
      %1620 = vmatprep.subr.bf16.mxu0 0
      %1621 = vmatpush2.bf16.msra.mxu0 0
      %1622 = vmatprep.subr.bf16.mxu0 0
      %1623 = vmatpush2.bf16.msra.mxu0 0
      %1624 = vmatprep.subr.bf16.mxu0 0
      %1625 = vmatpush2.bf16.msra.mxu0 0
      %1626 = vmatprep.subr.bf16.mxu0 0
      %1627 = vmatpush2.bf16.msra.mxu0 0
      %1628 = vmatprep.subr.bf16.mxu0 0
      %1629 = vmatpush2.bf16.msra.mxu0 0
      %1630 = vmatprep.subr.bf16.mxu0 0
      %1631 = vmatpush2.bf16.msra.mxu0 0
      %1632 = vmatprep.mubr.bf16.mxu0 0
      %1633 = vmatmul.mubr.bf16.gmra.mxu0 %v1553
      %v1634 = vpop.f32.mrf.mxu0
      %v1635 = vadd.f32 %v1526, %v1634
      %v1636 = vpop.f32.mrf.mxu0
      %v1637 = vpop.f32.mrf.mxu0
      %v1638 = vadd.f32 %v1526, %v1637
      %v1639 = vpop.f32.mrf.mxu0
      %1640 = vmatprep.mubr.bf16.mxu0 0
      %1641 = vmatmul.mubr.bf16.gmra.mxu0 %v1556
      %v1642 = vpop.f32.mrf.mxu0
      %v1643 = vadd.f32 %v1526, %v1642
      %v1644 = vpop.f32.mrf.mxu0
      %v1645 = vpop.f32.mrf.mxu0
      %v1646 = vadd.f32 %v1526, %v1645
      %v1647 = vpop.f32.mrf.mxu0
      %1648 = vmatprep.mubr.bf16.mxu0 0
      %1649 = vmatmul.mubr.bf16.gmra.mxu0 %v1559
      %v1650 = vpop.f32.mrf.mxu0
      %v1651 = vadd.f32 %v1526, %v1650
      %v1652 = vpop.f32.mrf.mxu0
      %v1653 = vpop.f32.mrf.mxu0
      %v1654 = vadd.f32 %v1526, %v1653
      %v1655 = vpop.f32.mrf.mxu0
      %1656 = vmatprep.mubr.bf16.mxu0 0
      %1657 = vmatmul.mubr.bf16.gmra.mxu0 %v1562
      %v1658 = vpop.f32.mrf.mxu0
      %v1659 = vadd.f32 %v1526, %v1658
      %v1660 = vpop.f32.mrf.mxu0
      %v1661 = vpop.f32.mrf.mxu0
      %v1662 = vadd.f32 %v1526, %v1661
      %v1663 = vpop.f32.mrf.mxu0
      %1664 = vmatprep.mubr.bf16.mxu0 0
      %1665 = vmatmul.mubr.bf16.gmra.mxu0 %v1565
      %v1666 = vpop.f32.mrf.mxu0
      %v1667 = vadd.f32 %v1526, %v1666
      %v1668 = vpop.f32.mrf.mxu0
      %v1669 = vpop.f32.mrf.mxu0
      %v1670 = vadd.f32 %v1526, %v1669
      %v1671 = vpop.f32.mrf.mxu0
      %1672 = vmatprep.mubr.bf16.mxu0 0
      %1673 = vmatmul.mubr.bf16.gmra.mxu0 %v1568
      %v1674 = vpop.f32.mrf.mxu0
      %v1675 = vadd.f32 %v1526, %v1674
      %v1676 = vpop.f32.mrf.mxu0
      %v1677 = vpop.f32.mrf.mxu0
      %v1678 = vadd.f32 %v1526, %v1677
      %v1679 = vpop.f32.mrf.mxu0
      %1680 = vmatprep.mubr.bf16.mxu0 0
      %1681 = vmatmul.mubr.bf16.gmra.mxu0 %v1571
      %v1682 = vpop.f32.mrf.mxu0
      %v1683 = vadd.f32 %v1526, %v1682
      %v1684 = vpop.f32.mrf.mxu0
      %v1685 = vpop.f32.mrf.mxu0
      %v1686 = vadd.f32 %v1526, %v1685
      %v1687 = vpop.f32.mrf.mxu0
      %1688 = vmatprep.mubr.bf16.mxu0 0
      %1689 = vmatmul.mubr.bf16.gmra.mxu0 %v1574
      %v1690 = vpop.f32.mrf.mxu0
      %v1691 = vadd.f32 %v1526, %v1690
      %v1692 = vpop.f32.mrf.mxu0
      %v1693 = vpop.f32.mrf.mxu0
      %v1694 = vadd.f32 %v1526, %v1693
      %v1695 = vpop.f32.mrf.mxu0
      %1696 = vmatprep.mubr.bf16.mxu0 0
      %1697 = vmatmul.mubr.bf16.gmra.mxu0 %v1577
      %v1698 = vpop.f32.mrf.mxu0
      %v1699 = vadd.f32 %v1526, %v1698
      %v1700 = vpop.f32.mrf.mxu0
      %v1701 = vpop.f32.mrf.mxu0
      %v1702 = vadd.f32 %v1526, %v1701
      %v1703 = vpop.f32.mrf.mxu0
      %1704 = vmatprep.mubr.bf16.mxu0 0
      %1705 = vmatmul.mubr.bf16.gmra.mxu0 %v1580
      %v1706 = vpop.f32.mrf.mxu0
      %v1707 = vadd.f32 %v1526, %v1706
      %v1708 = vpop.f32.mrf.mxu0
      %v1709 = vpop.f32.mrf.mxu0
      %v1710 = vadd.f32 %v1526, %v1709
      %v1711 = vpop.f32.mrf.mxu0
      %1712 = vmatprep.mubr.bf16.mxu0 0
      %1713 = vmatmul.mubr.bf16.gmra.mxu0 %v1583
      %v1714 = vpop.f32.mrf.mxu0
      %v1715 = vadd.f32 %v1526, %v1714
      %v1716 = vpop.f32.mrf.mxu0
      %v1717 = vpop.f32.mrf.mxu0
      %v1718 = vadd.f32 %v1526, %v1717
      %v1719 = vpop.f32.mrf.mxu0
      %1720 = vmatprep.mubr.bf16.mxu0 0
      %1721 = vmatmul.mubr.bf16.gmra.mxu0 %v1586
      %v1722 = vpop.f32.mrf.mxu0
      %v1723 = vadd.f32 %v1526, %v1722
      %v1724 = vpop.f32.mrf.mxu0
      %v1725 = vpop.f32.mrf.mxu0
      %v1726 = vadd.f32 %v1526, %v1725
      %v1727 = vpop.f32.mrf.mxu0
      %1728 = vmatprep.mubr.bf16.mxu0 0
      %1729 = vmatmul.mubr.bf16.gmra.mxu0 %v1589
      %v1730 = vpop.f32.mrf.mxu0
      %v1731 = vadd.f32 %v1526, %v1730
      %v1732 = vpop.f32.mrf.mxu0
      %v1733 = vpop.f32.mrf.mxu0
      %v1734 = vadd.f32 %v1526, %v1733
      %v1735 = vpop.f32.mrf.mxu0
      %1736 = vmatprep.mubr.bf16.mxu0 0
      %1737 = vmatmul.mubr.bf16.gmra.mxu0 %v1592
      %v1738 = vpop.f32.mrf.mxu0
      %v1739 = vadd.f32 %v1526, %v1738
      %v1740 = vpop.f32.mrf.mxu0
      %v1741 = vpop.f32.mrf.mxu0
      %v1742 = vadd.f32 %v1526, %v1741
      %v1743 = vpop.f32.mrf.mxu0
      %1744 = vmatprep.mubr.bf16.mxu0 0
      %1745 = vmatmul.mubr.bf16.gmra.mxu0 %v1595
      %v1746 = vpop.f32.mrf.mxu0
      %v1747 = vadd.f32 %v1526, %v1746
      %v1748 = vpop.f32.mrf.mxu0
      %v1749 = vpop.f32.mrf.mxu0
      %v1750 = vadd.f32 %v1526, %v1749
      %v1751 = vpop.f32.mrf.mxu0
      %1752 = vmatprep.mubr.bf16.mxu0 0
      %1753 = vmatmul.mubr.bf16.gmra.mxu0 %v1598
      %v1754 = vpop.f32.mrf.mxu0
      %v1755 = vadd.f32 %v1526, %v1754
      %v1756 = vpop.f32.mrf.mxu0
      %v1757 = vpop.f32.mrf.mxu0
      %v1758 = vadd.f32 %v1526, %v1757
      %v1759 = vpop.f32.mrf.mxu0
      %1760 = vdwg.mxu0
      %v1761 = vtanh.pop %v1635
      %v1762 = vtanh.pop %v1638
      %v1763 = vtanh.pop %v1643
      %v1764 = vtanh.pop %v1646
      %v1765 = vtanh.pop %v1651
      %v1766 = vtanh.pop %v1654
      %v1767 = vtanh.pop %v1659
      %v1768 = vtanh.pop %v1662
      %v1769 = vtanh.pop %v1667
      %v1770 = vtanh.pop %v1670
      %v1771 = vtanh.pop %v1675
      %v1772 = vtanh.pop %v1678
      %v1773 = vtanh.pop %v1683
      %v1774 = vtanh.pop %v1686
      %v1775 = vtanh.pop %v1691
      %v1776 = vtanh.pop %v1694
      %v1777 = vtanh.pop %v1699
      %v1778 = vtanh.pop %v1702
      %v1779 = vtanh.pop %v1707
      %v1780 = vtanh.pop %v1710
      %v1781 = vtanh.pop %v1715
      %v1782 = vtanh.pop %v1718
      %v1783 = vtanh.pop %v1723
      %v1784 = vtanh.pop %v1726
      %v1785 = vtanh.pop %v1731
      %v1786 = vtanh.pop %v1734
      %v1787 = vtanh.pop %v1739
      %v1788 = vtanh.pop %v1742
      %v1789 = vtanh.pop %v1747
      %v1790 = vtanh.pop %v1750
      %v1791 = vtanh.pop %v1755
      %v1792 = vtanh.pop %v1758
      %v1793 = vpack.c.bf16 %v1762, %v1761
      %v1794 = vpack.c.bf16 %v1764, %v1763
      %v1795 = vpack.c.bf16 %v1766, %v1765
      %v1796 = vpack.c.bf16 %v1768, %v1767
      %v1797 = vpack.c.bf16 %v1770, %v1769
      %v1798 = vpack.c.bf16 %v1772, %v1771
      %v1799 = vpack.c.bf16 %v1774, %v1773
      %v1800 = vpack.c.bf16 %v1776, %v1775
      %v1801 = vpack.c.bf16 %v1778, %v1777
      %v1802 = vpack.c.bf16 %v1780, %v1779
      %v1803 = vpack.c.bf16 %v1782, %v1781
      %v1804 = vpack.c.bf16 %v1784, %v1783
      %v1805 = vpack.c.bf16 %v1786, %v1785
      %v1806 = vpack.c.bf16 %v1788, %v1787
      %v1807 = vpack.c.bf16 %v1790, %v1789
      %v1808 = vpack.c.bf16 %v1792, %v1791
      %s1809 = scalar_lea.vmem %s1, 160
      %v1810 = vld [vmem:[%s1809] sm:$0xf]
      %v1811 = vld [vmem:[%s1809 + $0x4] sm:$0xf]
      %v1812 = vld [vmem:[%s1809 + $0x8] sm:$0xf]
      %v1813 = vld [vmem:[%s1809 + $0xc] sm:$0xf]
      %v1814 = vld [vmem:[%s1809 + $0x10] sm:$0xf]
      %v1815 = vld [vmem:[%s1809 + $0x14] sm:$0xf]
      %v1816 = vld [vmem:[%s1809 + $0x18] sm:$0xf]
      %v1817 = vld [vmem:[%s1809 + $0x1c] sm:$0xf]
      %s1818 = scalar_lea.vmem %s2, 5
      %v1819 = vld [vmem:[%s1818] sm:$0x1]
      %v1821 = vlaneseq
      %v1822 = vshrl.u32 %v1821, 7
      %v1823 = vsub.s32 0, %v1822
      %v1824 = vrot.slane %v1819, %v1823
      %v1834 = vunpack.c.l.b16 %v1810
      %v1835 = vunpack.c.l.b16 %v1811
      %v1836 = vunpack.c.l.b16 %v1812
      %v1837 = vunpack.c.l.b16 %v1813
      %v1838 = vunpack.c.l.b16 %v1814
      %v1839 = vunpack.c.l.b16 %v1815
      %v1840 = vunpack.c.l.b16 %v1816
      %v1841 = vunpack.c.l.b16 %v1817
      %v1842 = vpack.c.b16 %v1835, %v1834
      %v1843 = vpack.c.b16 %v1837, %v1836
      %v1844 = vpack.c.b16 %v1839, %v1838
      %v1845 = vpack.c.b16 %v1841, %v1840
      %v1851 = vsel %vm175, %v1793, 0
      %v1854 = vsel %vm175, %v1794, 0
      %v1857 = vsel %vm175, %v1795, 0
      %v1860 = vsel %vm175, %v1796, 0
      %v1863 = vsel %vm175, %v1797, 0
      %v1866 = vsel %vm175, %v1798, 0
      %v1869 = vsel %vm175, %v1799, 0
      %v1872 = vsel %vm175, %v1800, 0
      %v1875 = vsel %vm175, %v1801, 0
      %v1878 = vsel %vm175, %v1802, 0
      %v1881 = vsel %vm175, %v1803, 0
      %v1884 = vsel %vm175, %v1804, 0
      %v1887 = vsel %vm175, %v1805, 0
      %v1890 = vsel %vm175, %v1806, 0
      %v1893 = vsel %vm175, %v1807, 0
      %v1896 = vsel %vm175, %v1808, 0
      %1898 = vmatprep.subr.bf16.mxu0 0
      %1899 = vmatpush1.bf16.msra.mxu0 0
      %1900 = vmatprep.subr.bf16.mxu0 0
      %1901 = vmatpush1.bf16.msra.mxu0 0
      %1902 = vmatprep.subr.bf16.mxu0 0
      %1903 = vmatpush1.bf16.msra.mxu0 0
      %1904 = vmatprep.subr.bf16.mxu0 0
      %1905 = vmatpush1.bf16.msra.mxu0 0
      %1906 = vmatprep.subr.bf16.mxu0 0
      %1907 = vmatpush1.bf16.msra.mxu0 %v1845
      %1908 = vmatprep.subr.bf16.mxu0 0
      %1909 = vmatpush1.bf16.msra.mxu0 %v1844
      %1910 = vmatprep.subr.bf16.mxu0 0
      %1911 = vmatpush1.bf16.msra.mxu0 %v1843
      %1912 = vmatprep.subr.bf16.mxu0 0
      %1913 = vmatpush1.bf16.msra.mxu0 %v1842
      %1914 = vmatprep.subr.bf16.mxu0 0
      %1915 = vmatpush2.bf16.msra.mxu0 0
      %1916 = vmatprep.subr.bf16.mxu0 0
      %1917 = vmatpush2.bf16.msra.mxu0 0
      %1918 = vmatprep.subr.bf16.mxu0 0
      %1919 = vmatpush2.bf16.msra.mxu0 0
      %1920 = vmatprep.subr.bf16.mxu0 0
      %1921 = vmatpush2.bf16.msra.mxu0 0
      %1922 = vmatprep.subr.bf16.mxu0 0
      %1923 = vmatpush2.bf16.msra.mxu0 0
      %1924 = vmatprep.subr.bf16.mxu0 0
      %1925 = vmatpush2.bf16.msra.mxu0 0
      %1926 = vmatprep.subr.bf16.mxu0 0
      %1927 = vmatpush2.bf16.msra.mxu0 0
      %1928 = vmatprep.subr.bf16.mxu0 0
      %1929 = vmatpush2.bf16.msra.mxu0 0
      %1930 = vmatprep.mubr.bf16.mxu0 0
      %1931 = vmatmul.mubr.bf16.gmra.mxu0 %v1851
      %v1932 = vpop.f32.mrf.mxu0
      %v1933 = vadd.f32 %v1824, %v1932
      %v1934 = vpop.f32.mrf.mxu0
      %v1935 = vpop.f32.mrf.mxu0
      %v1936 = vadd.f32 %v1824, %v1935
      %v1937 = vpop.f32.mrf.mxu0
      %1938 = vmatprep.mubr.bf16.mxu0 0
      %1939 = vmatmul.mubr.bf16.gmra.mxu0 %v1854
      %v1940 = vpop.f32.mrf.mxu0
      %v1941 = vadd.f32 %v1824, %v1940
      %v1942 = vpop.f32.mrf.mxu0
      %v1943 = vpop.f32.mrf.mxu0
      %v1944 = vadd.f32 %v1824, %v1943
      %v1945 = vpop.f32.mrf.mxu0
      %1946 = vmatprep.mubr.bf16.mxu0 0
      %1947 = vmatmul.mubr.bf16.gmra.mxu0 %v1857
      %v1948 = vpop.f32.mrf.mxu0
      %v1949 = vadd.f32 %v1824, %v1948
      %v1950 = vpop.f32.mrf.mxu0
      %v1951 = vpop.f32.mrf.mxu0
      %v1952 = vadd.f32 %v1824, %v1951
      %v1953 = vpop.f32.mrf.mxu0
      %1954 = vmatprep.mubr.bf16.mxu0 0
      %1955 = vmatmul.mubr.bf16.gmra.mxu0 %v1860
      %v1956 = vpop.f32.mrf.mxu0
      %v1957 = vadd.f32 %v1824, %v1956
      %v1958 = vpop.f32.mrf.mxu0
      %v1959 = vpop.f32.mrf.mxu0
      %v1960 = vadd.f32 %v1824, %v1959
      %v1961 = vpop.f32.mrf.mxu0
      %1962 = vmatprep.mubr.bf16.mxu0 0
      %1963 = vmatmul.mubr.bf16.gmra.mxu0 %v1863
      %v1964 = vpop.f32.mrf.mxu0
      %v1965 = vadd.f32 %v1824, %v1964
      %v1966 = vpop.f32.mrf.mxu0
      %v1967 = vpop.f32.mrf.mxu0
      %v1968 = vadd.f32 %v1824, %v1967
      %v1969 = vpop.f32.mrf.mxu0
      %1970 = vmatprep.mubr.bf16.mxu0 0
      %1971 = vmatmul.mubr.bf16.gmra.mxu0 %v1866
      %v1972 = vpop.f32.mrf.mxu0
      %v1973 = vadd.f32 %v1824, %v1972
      %v1974 = vpop.f32.mrf.mxu0
      %v1975 = vpop.f32.mrf.mxu0
      %v1976 = vadd.f32 %v1824, %v1975
      %v1977 = vpop.f32.mrf.mxu0
      %1978 = vmatprep.mubr.bf16.mxu0 0
      %1979 = vmatmul.mubr.bf16.gmra.mxu0 %v1869
      %v1980 = vpop.f32.mrf.mxu0
      %v1981 = vadd.f32 %v1824, %v1980
      %v1982 = vpop.f32.mrf.mxu0
      %v1983 = vpop.f32.mrf.mxu0
      %v1984 = vadd.f32 %v1824, %v1983
      %v1985 = vpop.f32.mrf.mxu0
      %1986 = vmatprep.mubr.bf16.mxu0 0
      %1987 = vmatmul.mubr.bf16.gmra.mxu0 %v1872
      %v1988 = vpop.f32.mrf.mxu0
      %v1989 = vadd.f32 %v1824, %v1988
      %v1990 = vpop.f32.mrf.mxu0
      %v1991 = vpop.f32.mrf.mxu0
      %v1992 = vadd.f32 %v1824, %v1991
      %v1993 = vpop.f32.mrf.mxu0
      %1994 = vmatprep.mubr.bf16.mxu0 0
      %1995 = vmatmul.mubr.bf16.gmra.mxu0 %v1875
      %v1996 = vpop.f32.mrf.mxu0
      %v1997 = vadd.f32 %v1824, %v1996
      %v1998 = vpop.f32.mrf.mxu0
      %v1999 = vpop.f32.mrf.mxu0
      %v2000 = vadd.f32 %v1824, %v1999
      %v2001 = vpop.f32.mrf.mxu0
      %2002 = vmatprep.mubr.bf16.mxu0 0
      %2003 = vmatmul.mubr.bf16.gmra.mxu0 %v1878
      %v2004 = vpop.f32.mrf.mxu0
      %v2005 = vadd.f32 %v1824, %v2004
      %v2006 = vpop.f32.mrf.mxu0
      %v2007 = vpop.f32.mrf.mxu0
      %v2008 = vadd.f32 %v1824, %v2007
      %v2009 = vpop.f32.mrf.mxu0
      %2010 = vmatprep.mubr.bf16.mxu0 0
      %2011 = vmatmul.mubr.bf16.gmra.mxu0 %v1881
      %v2012 = vpop.f32.mrf.mxu0
      %v2013 = vadd.f32 %v1824, %v2012
      %v2014 = vpop.f32.mrf.mxu0
      %v2015 = vpop.f32.mrf.mxu0
      %v2016 = vadd.f32 %v1824, %v2015
      %v2017 = vpop.f32.mrf.mxu0
      %2018 = vmatprep.mubr.bf16.mxu0 0
      %2019 = vmatmul.mubr.bf16.gmra.mxu0 %v1884
      %v2020 = vpop.f32.mrf.mxu0
      %v2021 = vadd.f32 %v1824, %v2020
      %v2022 = vpop.f32.mrf.mxu0
      %v2023 = vpop.f32.mrf.mxu0
      %v2024 = vadd.f32 %v1824, %v2023
      %v2025 = vpop.f32.mrf.mxu0
      %2026 = vmatprep.mubr.bf16.mxu0 0
      %2027 = vmatmul.mubr.bf16.gmra.mxu0 %v1887
      %v2028 = vpop.f32.mrf.mxu0
      %v2029 = vadd.f32 %v1824, %v2028
      %v2030 = vpop.f32.mrf.mxu0
      %v2031 = vpop.f32.mrf.mxu0
      %v2032 = vadd.f32 %v1824, %v2031
      %v2033 = vpop.f32.mrf.mxu0
      %2034 = vmatprep.mubr.bf16.mxu0 0
      %2035 = vmatmul.mubr.bf16.gmra.mxu0 %v1890
      %v2036 = vpop.f32.mrf.mxu0
      %v2037 = vadd.f32 %v1824, %v2036
      %v2038 = vpop.f32.mrf.mxu0
      %v2039 = vpop.f32.mrf.mxu0
      %v2040 = vadd.f32 %v1824, %v2039
      %v2041 = vpop.f32.mrf.mxu0
      %2042 = vmatprep.mubr.bf16.mxu0 0
      %2043 = vmatmul.mubr.bf16.gmra.mxu0 %v1893
      %v2044 = vpop.f32.mrf.mxu0
      %v2045 = vadd.f32 %v1824, %v2044
      %v2046 = vpop.f32.mrf.mxu0
      %v2047 = vpop.f32.mrf.mxu0
      %v2048 = vadd.f32 %v1824, %v2047
      %v2049 = vpop.f32.mrf.mxu0
      %2050 = vmatprep.mubr.bf16.mxu0 0
      %2051 = vmatmul.mubr.bf16.gmra.mxu0 %v1896
      %v2052 = vpop.f32.mrf.mxu0
      %v2053 = vadd.f32 %v1824, %v2052
      %v2054 = vpop.f32.mrf.mxu0
      %v2055 = vpop.f32.mrf.mxu0
      %v2056 = vadd.f32 %v1824, %v2055
      %v2057 = vpop.f32.mrf.mxu0
      %2058 = vdwg.mxu0
      %v2059 = vtanh.pop %v1933
      %v2060 = vtanh.pop %v1936
      %v2061 = vtanh.pop %v1941
      %v2062 = vtanh.pop %v1944
      %v2063 = vtanh.pop %v1949
      %v2064 = vtanh.pop %v1952
      %v2065 = vtanh.pop %v1957
      %v2066 = vtanh.pop %v1960
      %v2067 = vtanh.pop %v1965
      %v2068 = vtanh.pop %v1968
      %v2069 = vtanh.pop %v1973
      %v2070 = vtanh.pop %v1976
      %v2071 = vtanh.pop %v1981
      %v2072 = vtanh.pop %v1984
      %v2073 = vtanh.pop %v1989
      %v2074 = vtanh.pop %v1992
      %v2075 = vtanh.pop %v1997
      %v2076 = vtanh.pop %v2000
      %v2077 = vtanh.pop %v2005
      %v2078 = vtanh.pop %v2008
      %v2079 = vtanh.pop %v2013
      %v2080 = vtanh.pop %v2016
      %v2081 = vtanh.pop %v2021
      %v2082 = vtanh.pop %v2024
      %v2083 = vtanh.pop %v2029
      %v2084 = vtanh.pop %v2032
      %v2085 = vtanh.pop %v2037
      %v2086 = vtanh.pop %v2040
      %v2087 = vtanh.pop %v2045
      %v2088 = vtanh.pop %v2048
      %v2089 = vtanh.pop %v2053
      %v2090 = vtanh.pop %v2056
      %v2091 = vpack.c.bf16 %v2060, %v2059
      %v2092 = vpack.c.bf16 %v2062, %v2061
      %v2093 = vpack.c.bf16 %v2064, %v2063
      %v2094 = vpack.c.bf16 %v2066, %v2065
      %v2095 = vpack.c.bf16 %v2068, %v2067
      %v2096 = vpack.c.bf16 %v2070, %v2069
      %v2097 = vpack.c.bf16 %v2072, %v2071
      %v2098 = vpack.c.bf16 %v2074, %v2073
      %v2099 = vpack.c.bf16 %v2076, %v2075
      %v2100 = vpack.c.bf16 %v2078, %v2077
      %v2101 = vpack.c.bf16 %v2080, %v2079
      %v2102 = vpack.c.bf16 %v2082, %v2081
      %v2103 = vpack.c.bf16 %v2084, %v2083
      %v2104 = vpack.c.bf16 %v2086, %v2085
      %v2105 = vpack.c.bf16 %v2088, %v2087
      %v2106 = vpack.c.bf16 %v2090, %v2089
      %s2107 = scalar_lea.vmem %s1, 192
      %v2108 = vld [vmem:[%s2107] sm:$0xf]
      %v2109 = vld [vmem:[%s2107 + $0x4] sm:$0xf]
      %v2110 = vld [vmem:[%s2107 + $0x8] sm:$0xf]
      %v2111 = vld [vmem:[%s2107 + $0xc] sm:$0xf]
      %v2112 = vld [vmem:[%s2107 + $0x10] sm:$0xf]
      %v2113 = vld [vmem:[%s2107 + $0x14] sm:$0xf]
      %v2114 = vld [vmem:[%s2107 + $0x18] sm:$0xf]
      %v2115 = vld [vmem:[%s2107 + $0x1c] sm:$0xf]
      %s2116 = scalar_lea.vmem %s2, 6
      %v2117 = vld [vmem:[%s2116] sm:$0x1]
      %v2119 = vlaneseq
      %v2120 = vshrl.u32 %v2119, 7
      %v2121 = vsub.s32 0, %v2120
      %v2122 = vrot.slane %v2117, %v2121
      %v2132 = vunpack.c.l.b16 %v2108
      %v2133 = vunpack.c.l.b16 %v2109
      %v2134 = vunpack.c.l.b16 %v2110
      %v2135 = vunpack.c.l.b16 %v2111
      %v2136 = vunpack.c.l.b16 %v2112
      %v2137 = vunpack.c.l.b16 %v2113
      %v2138 = vunpack.c.l.b16 %v2114
      %v2139 = vunpack.c.l.b16 %v2115
      %v2140 = vpack.c.b16 %v2133, %v2132
      %v2141 = vpack.c.b16 %v2135, %v2134
      %v2142 = vpack.c.b16 %v2137, %v2136
      %v2143 = vpack.c.b16 %v2139, %v2138
      %v2149 = vsel %vm175, %v2091, 0
      %v2152 = vsel %vm175, %v2092, 0
      %v2155 = vsel %vm175, %v2093, 0
      %v2158 = vsel %vm175, %v2094, 0
      %v2161 = vsel %vm175, %v2095, 0
      %v2164 = vsel %vm175, %v2096, 0
      %v2167 = vsel %vm175, %v2097, 0
      %v2170 = vsel %vm175, %v2098, 0
      %v2173 = vsel %vm175, %v2099, 0
      %v2176 = vsel %vm175, %v2100, 0
      %v2179 = vsel %vm175, %v2101, 0
      %v2182 = vsel %vm175, %v2102, 0
      %v2185 = vsel %vm175, %v2103, 0
      %v2188 = vsel %vm175, %v2104, 0
      %v2191 = vsel %vm175, %v2105, 0
      %v2194 = vsel %vm175, %v2106, 0
      %2196 = vmatprep.subr.bf16.mxu0 0
      %2197 = vmatpush1.bf16.msra.mxu0 0
      %2198 = vmatprep.subr.bf16.mxu0 0
      %2199 = vmatpush1.bf16.msra.mxu0 0
      %2200 = vmatprep.subr.bf16.mxu0 0
      %2201 = vmatpush1.bf16.msra.mxu0 0
      %2202 = vmatprep.subr.bf16.mxu0 0
      %2203 = vmatpush1.bf16.msra.mxu0 0
      %2204 = vmatprep.subr.bf16.mxu0 0
      %2205 = vmatpush1.bf16.msra.mxu0 %v2143
      %2206 = vmatprep.subr.bf16.mxu0 0
      %2207 = vmatpush1.bf16.msra.mxu0 %v2142
      %2208 = vmatprep.subr.bf16.mxu0 0
      %2209 = vmatpush1.bf16.msra.mxu0 %v2141
      %2210 = vmatprep.subr.bf16.mxu0 0
      %2211 = vmatpush1.bf16.msra.mxu0 %v2140
      %2212 = vmatprep.subr.bf16.mxu0 0
      %2213 = vmatpush2.bf16.msra.mxu0 0
      %2214 = vmatprep.subr.bf16.mxu0 0
      %2215 = vmatpush2.bf16.msra.mxu0 0
      %2216 = vmatprep.subr.bf16.mxu0 0
      %2217 = vmatpush2.bf16.msra.mxu0 0
      %2218 = vmatprep.subr.bf16.mxu0 0
      %2219 = vmatpush2.bf16.msra.mxu0 0
      %2220 = vmatprep.subr.bf16.mxu0 0
      %2221 = vmatpush2.bf16.msra.mxu0 0
      %2222 = vmatprep.subr.bf16.mxu0 0
      %2223 = vmatpush2.bf16.msra.mxu0 0
      %2224 = vmatprep.subr.bf16.mxu0 0
      %2225 = vmatpush2.bf16.msra.mxu0 0
      %2226 = vmatprep.subr.bf16.mxu0 0
      %2227 = vmatpush2.bf16.msra.mxu0 0
      %2228 = vmatprep.mubr.bf16.mxu0 0
      %2229 = vmatmul.mubr.bf16.gmra.mxu0 %v2149
      %v2230 = vpop.f32.mrf.mxu0
      %v2231 = vadd.f32 %v2122, %v2230
      %v2232 = vpop.f32.mrf.mxu0
      %v2233 = vpop.f32.mrf.mxu0
      %v2234 = vadd.f32 %v2122, %v2233
      %v2235 = vpop.f32.mrf.mxu0
      %2236 = vmatprep.mubr.bf16.mxu0 0
      %2237 = vmatmul.mubr.bf16.gmra.mxu0 %v2152
      %v2238 = vpop.f32.mrf.mxu0
      %v2239 = vadd.f32 %v2122, %v2238
      %v2240 = vpop.f32.mrf.mxu0
      %v2241 = vpop.f32.mrf.mxu0
      %v2242 = vadd.f32 %v2122, %v2241
      %v2243 = vpop.f32.mrf.mxu0
      %2244 = vmatprep.mubr.bf16.mxu0 0
      %2245 = vmatmul.mubr.bf16.gmra.mxu0 %v2155
      %v2246 = vpop.f32.mrf.mxu0
      %v2247 = vadd.f32 %v2122, %v2246
      %v2248 = vpop.f32.mrf.mxu0
      %v2249 = vpop.f32.mrf.mxu0
      %v2250 = vadd.f32 %v2122, %v2249
      %v2251 = vpop.f32.mrf.mxu0
      %2252 = vmatprep.mubr.bf16.mxu0 0
      %2253 = vmatmul.mubr.bf16.gmra.mxu0 %v2158
      %v2254 = vpop.f32.mrf.mxu0
      %v2255 = vadd.f32 %v2122, %v2254
      %v2256 = vpop.f32.mrf.mxu0
      %v2257 = vpop.f32.mrf.mxu0
      %v2258 = vadd.f32 %v2122, %v2257
      %v2259 = vpop.f32.mrf.mxu0
      %2260 = vmatprep.mubr.bf16.mxu0 0
      %2261 = vmatmul.mubr.bf16.gmra.mxu0 %v2161
      %v2262 = vpop.f32.mrf.mxu0
      %v2263 = vadd.f32 %v2122, %v2262
      %v2264 = vpop.f32.mrf.mxu0
      %v2265 = vpop.f32.mrf.mxu0
      %v2266 = vadd.f32 %v2122, %v2265
      %v2267 = vpop.f32.mrf.mxu0
      %2268 = vmatprep.mubr.bf16.mxu0 0
      %2269 = vmatmul.mubr.bf16.gmra.mxu0 %v2164
      %v2270 = vpop.f32.mrf.mxu0
      %v2271 = vadd.f32 %v2122, %v2270
      %v2272 = vpop.f32.mrf.mxu0
      %v2273 = vpop.f32.mrf.mxu0
      %v2274 = vadd.f32 %v2122, %v2273
      %v2275 = vpop.f32.mrf.mxu0
      %2276 = vmatprep.mubr.bf16.mxu0 0
      %2277 = vmatmul.mubr.bf16.gmra.mxu0 %v2167
      %v2278 = vpop.f32.mrf.mxu0
      %v2279 = vadd.f32 %v2122, %v2278
      %v2280 = vpop.f32.mrf.mxu0
      %v2281 = vpop.f32.mrf.mxu0
      %v2282 = vadd.f32 %v2122, %v2281
      %v2283 = vpop.f32.mrf.mxu0
      %2284 = vmatprep.mubr.bf16.mxu0 0
      %2285 = vmatmul.mubr.bf16.gmra.mxu0 %v2170
      %v2286 = vpop.f32.mrf.mxu0
      %v2287 = vadd.f32 %v2122, %v2286
      %v2288 = vpop.f32.mrf.mxu0
      %v2289 = vpop.f32.mrf.mxu0
      %v2290 = vadd.f32 %v2122, %v2289
      %v2291 = vpop.f32.mrf.mxu0
      %2292 = vmatprep.mubr.bf16.mxu0 0
      %2293 = vmatmul.mubr.bf16.gmra.mxu0 %v2173
      %v2294 = vpop.f32.mrf.mxu0
      %v2295 = vadd.f32 %v2122, %v2294
      %v2296 = vpop.f32.mrf.mxu0
      %v2297 = vpop.f32.mrf.mxu0
      %v2298 = vadd.f32 %v2122, %v2297
      %v2299 = vpop.f32.mrf.mxu0
      %2300 = vmatprep.mubr.bf16.mxu0 0
      %2301 = vmatmul.mubr.bf16.gmra.mxu0 %v2176
      %v2302 = vpop.f32.mrf.mxu0
      %v2303 = vadd.f32 %v2122, %v2302
      %v2304 = vpop.f32.mrf.mxu0
      %v2305 = vpop.f32.mrf.mxu0
      %v2306 = vadd.f32 %v2122, %v2305
      %v2307 = vpop.f32.mrf.mxu0
      %2308 = vmatprep.mubr.bf16.mxu0 0
      %2309 = vmatmul.mubr.bf16.gmra.mxu0 %v2179
      %v2310 = vpop.f32.mrf.mxu0
      %v2311 = vadd.f32 %v2122, %v2310
      %v2312 = vpop.f32.mrf.mxu0
      %v2313 = vpop.f32.mrf.mxu0
      %v2314 = vadd.f32 %v2122, %v2313
      %v2315 = vpop.f32.mrf.mxu0
      %2316 = vmatprep.mubr.bf16.mxu0 0
      %2317 = vmatmul.mubr.bf16.gmra.mxu0 %v2182
      %v2318 = vpop.f32.mrf.mxu0
      %v2319 = vadd.f32 %v2122, %v2318
      %v2320 = vpop.f32.mrf.mxu0
      %v2321 = vpop.f32.mrf.mxu0
      %v2322 = vadd.f32 %v2122, %v2321
      %v2323 = vpop.f32.mrf.mxu0
      %2324 = vmatprep.mubr.bf16.mxu0 0
      %2325 = vmatmul.mubr.bf16.gmra.mxu0 %v2185
      %v2326 = vpop.f32.mrf.mxu0
      %v2327 = vadd.f32 %v2122, %v2326
      %v2328 = vpop.f32.mrf.mxu0
      %v2329 = vpop.f32.mrf.mxu0
      %v2330 = vadd.f32 %v2122, %v2329
      %v2331 = vpop.f32.mrf.mxu0
      %2332 = vmatprep.mubr.bf16.mxu0 0
      %2333 = vmatmul.mubr.bf16.gmra.mxu0 %v2188
      %v2334 = vpop.f32.mrf.mxu0
      %v2335 = vadd.f32 %v2122, %v2334
      %v2336 = vpop.f32.mrf.mxu0
      %v2337 = vpop.f32.mrf.mxu0
      %v2338 = vadd.f32 %v2122, %v2337
      %v2339 = vpop.f32.mrf.mxu0
      %2340 = vmatprep.mubr.bf16.mxu0 0
      %2341 = vmatmul.mubr.bf16.gmra.mxu0 %v2191
      %v2342 = vpop.f32.mrf.mxu0
      %v2343 = vadd.f32 %v2122, %v2342
      %v2344 = vpop.f32.mrf.mxu0
      %v2345 = vpop.f32.mrf.mxu0
      %v2346 = vadd.f32 %v2122, %v2345
      %v2347 = vpop.f32.mrf.mxu0
      %2348 = vmatprep.mubr.bf16.mxu0 0
      %2349 = vmatmul.mubr.bf16.gmra.mxu0 %v2194
      %v2350 = vpop.f32.mrf.mxu0
      %v2351 = vadd.f32 %v2122, %v2350
      %v2352 = vpop.f32.mrf.mxu0
      %v2353 = vpop.f32.mrf.mxu0
      %v2354 = vadd.f32 %v2122, %v2353
      %v2355 = vpop.f32.mrf.mxu0
      %2356 = vdwg.mxu0
      %v2357 = vtanh.pop %v2231
      %v2358 = vtanh.pop %v2234
      %v2359 = vtanh.pop %v2239
      %v2360 = vtanh.pop %v2242
      %v2361 = vtanh.pop %v2247
      %v2362 = vtanh.pop %v2250
      %v2363 = vtanh.pop %v2255
      %v2364 = vtanh.pop %v2258
      %v2365 = vtanh.pop %v2263
      %v2366 = vtanh.pop %v2266
      %v2367 = vtanh.pop %v2271
      %v2368 = vtanh.pop %v2274
      %v2369 = vtanh.pop %v2279
      %v2370 = vtanh.pop %v2282
      %v2371 = vtanh.pop %v2287
      %v2372 = vtanh.pop %v2290
      %v2373 = vtanh.pop %v2295
      %v2374 = vtanh.pop %v2298
      %v2375 = vtanh.pop %v2303
      %v2376 = vtanh.pop %v2306
      %v2377 = vtanh.pop %v2311
      %v2378 = vtanh.pop %v2314
      %v2379 = vtanh.pop %v2319
      %v2380 = vtanh.pop %v2322
      %v2381 = vtanh.pop %v2327
      %v2382 = vtanh.pop %v2330
      %v2383 = vtanh.pop %v2335
      %v2384 = vtanh.pop %v2338
      %v2385 = vtanh.pop %v2343
      %v2386 = vtanh.pop %v2346
      %v2387 = vtanh.pop %v2351
      %v2388 = vtanh.pop %v2354
      %v2389 = vpack.c.bf16 %v2358, %v2357
      %v2390 = vpack.c.bf16 %v2360, %v2359
      %v2391 = vpack.c.bf16 %v2362, %v2361
      %v2392 = vpack.c.bf16 %v2364, %v2363
      %v2393 = vpack.c.bf16 %v2366, %v2365
      %v2394 = vpack.c.bf16 %v2368, %v2367
      %v2395 = vpack.c.bf16 %v2370, %v2369
      %v2396 = vpack.c.bf16 %v2372, %v2371
      %v2397 = vpack.c.bf16 %v2374, %v2373
      %v2398 = vpack.c.bf16 %v2376, %v2375
      %v2399 = vpack.c.bf16 %v2378, %v2377
      %v2400 = vpack.c.bf16 %v2380, %v2379
      %v2401 = vpack.c.bf16 %v2382, %v2381
      %v2402 = vpack.c.bf16 %v2384, %v2383
      %v2403 = vpack.c.bf16 %v2386, %v2385
      %v2404 = vpack.c.bf16 %v2388, %v2387
      %s2405 = scalar_lea.vmem %s1, 224
      %v2406 = vld [vmem:[%s2405] sm:$0xf]
      %v2407 = vld [vmem:[%s2405 + $0x4] sm:$0xf]
      %v2408 = vld [vmem:[%s2405 + $0x8] sm:$0xf]
      %v2409 = vld [vmem:[%s2405 + $0xc] sm:$0xf]
      %v2410 = vld [vmem:[%s2405 + $0x10] sm:$0xf]
      %v2411 = vld [vmem:[%s2405 + $0x14] sm:$0xf]
      %v2412 = vld [vmem:[%s2405 + $0x18] sm:$0xf]
      %v2413 = vld [vmem:[%s2405 + $0x1c] sm:$0xf]
      %s2414 = scalar_lea.vmem %s2, 7
      %v2415 = vld [vmem:[%s2414] sm:$0x1]
      %v2417 = vlaneseq
      %v2418 = vshrl.u32 %v2417, 7
      %v2419 = vsub.s32 0, %v2418
      %v2420 = vrot.slane %v2415, %v2419
      %v2430 = vunpack.c.l.b16 %v2406
      %v2431 = vunpack.c.l.b16 %v2407
      %v2432 = vunpack.c.l.b16 %v2408
      %v2433 = vunpack.c.l.b16 %v2409
      %v2434 = vunpack.c.l.b16 %v2410
      %v2435 = vunpack.c.l.b16 %v2411
      %v2436 = vunpack.c.l.b16 %v2412
      %v2437 = vunpack.c.l.b16 %v2413
      %v2438 = vpack.c.b16 %v2431, %v2430
      %v2439 = vpack.c.b16 %v2433, %v2432
      %v2440 = vpack.c.b16 %v2435, %v2434
      %v2441 = vpack.c.b16 %v2437, %v2436
      %v2447 = vsel %vm175, %v2389, 0
      %v2450 = vsel %vm175, %v2390, 0
      %v2453 = vsel %vm175, %v2391, 0
      %v2456 = vsel %vm175, %v2392, 0
      %v2459 = vsel %vm175, %v2393, 0
      %v2462 = vsel %vm175, %v2394, 0
      %v2465 = vsel %vm175, %v2395, 0
      %v2468 = vsel %vm175, %v2396, 0
      %v2471 = vsel %vm175, %v2397, 0
      %v2474 = vsel %vm175, %v2398, 0
      %v2477 = vsel %vm175, %v2399, 0
      %v2480 = vsel %vm175, %v2400, 0
      %v2483 = vsel %vm175, %v2401, 0
      %v2486 = vsel %vm175, %v2402, 0
      %v2489 = vsel %vm175, %v2403, 0
      %v2492 = vsel %vm175, %v2404, 0
      %2494 = vmatprep.subr.bf16.mxu0 0
      %2495 = vmatpush1.bf16.msra.mxu0 0
      %2496 = vmatprep.subr.bf16.mxu0 0
      %2497 = vmatpush1.bf16.msra.mxu0 0
      %2498 = vmatprep.subr.bf16.mxu0 0
      %2499 = vmatpush1.bf16.msra.mxu0 0
      %2500 = vmatprep.subr.bf16.mxu0 0
      %2501 = vmatpush1.bf16.msra.mxu0 0
      %2502 = vmatprep.subr.bf16.mxu0 0
      %2503 = vmatpush1.bf16.msra.mxu0 %v2441
      %2504 = vmatprep.subr.bf16.mxu0 0
      %2505 = vmatpush1.bf16.msra.mxu0 %v2440
      %2506 = vmatprep.subr.bf16.mxu0 0
      %2507 = vmatpush1.bf16.msra.mxu0 %v2439
      %2508 = vmatprep.subr.bf16.mxu0 0
      %2509 = vmatpush1.bf16.msra.mxu0 %v2438
      %2510 = vmatprep.subr.bf16.mxu0 0
      %2511 = vmatpush2.bf16.msra.mxu0 0
      %2512 = vmatprep.subr.bf16.mxu0 0
      %2513 = vmatpush2.bf16.msra.mxu0 0
      %2514 = vmatprep.subr.bf16.mxu0 0
      %2515 = vmatpush2.bf16.msra.mxu0 0
      %2516 = vmatprep.subr.bf16.mxu0 0
      %2517 = vmatpush2.bf16.msra.mxu0 0
      %2518 = vmatprep.subr.bf16.mxu0 0
      %2519 = vmatpush2.bf16.msra.mxu0 0
      %2520 = vmatprep.subr.bf16.mxu0 0
      %2521 = vmatpush2.bf16.msra.mxu0 0
      %2522 = vmatprep.subr.bf16.mxu0 0
      %2523 = vmatpush2.bf16.msra.mxu0 0
      %2524 = vmatprep.subr.bf16.mxu0 0
      %2525 = vmatpush2.bf16.msra.mxu0 0
      %2526 = vmatprep.mubr.bf16.mxu0 0
      %2527 = vmatmul.mubr.bf16.gmra.mxu0 %v2447
      %v2528 = vpop.f32.mrf.mxu0
      %v2529 = vadd.f32 %v2420, %v2528
      %v2530 = vpop.f32.mrf.mxu0
      %v2531 = vpop.f32.mrf.mxu0
      %v2532 = vadd.f32 %v2420, %v2531
      %v2533 = vpop.f32.mrf.mxu0
      %2534 = vmatprep.mubr.bf16.mxu0 0
      %2535 = vmatmul.mubr.bf16.gmra.mxu0 %v2450
      %v2536 = vpop.f32.mrf.mxu0
      %v2537 = vadd.f32 %v2420, %v2536
      %v2538 = vpop.f32.mrf.mxu0
      %v2539 = vpop.f32.mrf.mxu0
      %v2540 = vadd.f32 %v2420, %v2539
      %v2541 = vpop.f32.mrf.mxu0
      %2542 = vmatprep.mubr.bf16.mxu0 0
      %2543 = vmatmul.mubr.bf16.gmra.mxu0 %v2453
      %v2544 = vpop.f32.mrf.mxu0
      %v2545 = vadd.f32 %v2420, %v2544
      %v2546 = vpop.f32.mrf.mxu0
      %v2547 = vpop.f32.mrf.mxu0
      %v2548 = vadd.f32 %v2420, %v2547
      %v2549 = vpop.f32.mrf.mxu0
      %2550 = vmatprep.mubr.bf16.mxu0 0
      %2551 = vmatmul.mubr.bf16.gmra.mxu0 %v2456
      %v2552 = vpop.f32.mrf.mxu0
      %v2553 = vadd.f32 %v2420, %v2552
      %v2554 = vpop.f32.mrf.mxu0
      %v2555 = vpop.f32.mrf.mxu0
      %v2556 = vadd.f32 %v2420, %v2555
      %v2557 = vpop.f32.mrf.mxu0
      %2558 = vmatprep.mubr.bf16.mxu0 0
      %2559 = vmatmul.mubr.bf16.gmra.mxu0 %v2459
      %v2560 = vpop.f32.mrf.mxu0
      %v2561 = vadd.f32 %v2420, %v2560
      %v2562 = vpop.f32.mrf.mxu0
      %v2563 = vpop.f32.mrf.mxu0
      %v2564 = vadd.f32 %v2420, %v2563
      %v2565 = vpop.f32.mrf.mxu0
      %2566 = vmatprep.mubr.bf16.mxu0 0
      %2567 = vmatmul.mubr.bf16.gmra.mxu0 %v2462
      %v2568 = vpop.f32.mrf.mxu0
      %v2569 = vadd.f32 %v2420, %v2568
      %v2570 = vpop.f32.mrf.mxu0
      %v2571 = vpop.f32.mrf.mxu0
      %v2572 = vadd.f32 %v2420, %v2571
      %v2573 = vpop.f32.mrf.mxu0
      %2574 = vmatprep.mubr.bf16.mxu0 0
      %2575 = vmatmul.mubr.bf16.gmra.mxu0 %v2465
      %v2576 = vpop.f32.mrf.mxu0
      %v2577 = vadd.f32 %v2420, %v2576
      %v2578 = vpop.f32.mrf.mxu0
      %v2579 = vpop.f32.mrf.mxu0
      %v2580 = vadd.f32 %v2420, %v2579
      %v2581 = vpop.f32.mrf.mxu0
      %2582 = vmatprep.mubr.bf16.mxu0 0
      %2583 = vmatmul.mubr.bf16.gmra.mxu0 %v2468
      %v2584 = vpop.f32.mrf.mxu0
      %v2585 = vadd.f32 %v2420, %v2584
      %v2586 = vpop.f32.mrf.mxu0
      %v2587 = vpop.f32.mrf.mxu0
      %v2588 = vadd.f32 %v2420, %v2587
      %v2589 = vpop.f32.mrf.mxu0
      %2590 = vmatprep.mubr.bf16.mxu0 0
      %2591 = vmatmul.mubr.bf16.gmra.mxu0 %v2471
      %v2592 = vpop.f32.mrf.mxu0
      %v2593 = vadd.f32 %v2420, %v2592
      %v2594 = vpop.f32.mrf.mxu0
      %v2595 = vpop.f32.mrf.mxu0
      %v2596 = vadd.f32 %v2420, %v2595
      %v2597 = vpop.f32.mrf.mxu0
      %2598 = vmatprep.mubr.bf16.mxu0 0
      %2599 = vmatmul.mubr.bf16.gmra.mxu0 %v2474
      %v2600 = vpop.f32.mrf.mxu0
      %v2601 = vadd.f32 %v2420, %v2600
      %v2602 = vpop.f32.mrf.mxu0
      %v2603 = vpop.f32.mrf.mxu0
      %v2604 = vadd.f32 %v2420, %v2603
      %v2605 = vpop.f32.mrf.mxu0
      %2606 = vmatprep.mubr.bf16.mxu0 0
      %2607 = vmatmul.mubr.bf16.gmra.mxu0 %v2477
      %v2608 = vpop.f32.mrf.mxu0
      %v2609 = vadd.f32 %v2420, %v2608
      %v2610 = vpop.f32.mrf.mxu0
      %v2611 = vpop.f32.mrf.mxu0
      %v2612 = vadd.f32 %v2420, %v2611
      %v2613 = vpop.f32.mrf.mxu0
      %2614 = vmatprep.mubr.bf16.mxu0 0
      %2615 = vmatmul.mubr.bf16.gmra.mxu0 %v2480
      %v2616 = vpop.f32.mrf.mxu0
      %v2617 = vadd.f32 %v2420, %v2616
      %v2618 = vpop.f32.mrf.mxu0
      %v2619 = vpop.f32.mrf.mxu0
      %v2620 = vadd.f32 %v2420, %v2619
      %v2621 = vpop.f32.mrf.mxu0
      %2622 = vmatprep.mubr.bf16.mxu0 0
      %2623 = vmatmul.mubr.bf16.gmra.mxu0 %v2483
      %v2624 = vpop.f32.mrf.mxu0
      %v2625 = vadd.f32 %v2420, %v2624
      %v2626 = vpop.f32.mrf.mxu0
      %v2627 = vpop.f32.mrf.mxu0
      %v2628 = vadd.f32 %v2420, %v2627
      %v2629 = vpop.f32.mrf.mxu0
      %2630 = vmatprep.mubr.bf16.mxu0 0
      %2631 = vmatmul.mubr.bf16.gmra.mxu0 %v2486
      %v2632 = vpop.f32.mrf.mxu0
      %v2633 = vadd.f32 %v2420, %v2632
      %v2634 = vpop.f32.mrf.mxu0
      %v2635 = vpop.f32.mrf.mxu0
      %v2636 = vadd.f32 %v2420, %v2635
      %v2637 = vpop.f32.mrf.mxu0
      %2638 = vmatprep.mubr.bf16.mxu0 0
      %2639 = vmatmul.mubr.bf16.gmra.mxu0 %v2489
      %v2640 = vpop.f32.mrf.mxu0
      %v2641 = vadd.f32 %v2420, %v2640
      %v2642 = vpop.f32.mrf.mxu0
      %v2643 = vpop.f32.mrf.mxu0
      %v2644 = vadd.f32 %v2420, %v2643
      %v2645 = vpop.f32.mrf.mxu0
      %2646 = vmatprep.mubr.bf16.mxu0 0
      %2647 = vmatmul.mubr.bf16.gmra.mxu0 %v2492
      %v2648 = vpop.f32.mrf.mxu0
      %v2649 = vadd.f32 %v2420, %v2648
      %v2650 = vpop.f32.mrf.mxu0
      %v2651 = vpop.f32.mrf.mxu0
      %v2652 = vadd.f32 %v2420, %v2651
      %v2653 = vpop.f32.mrf.mxu0
      %2654 = vdwg.mxu0
      %v2655 = vtanh.pop %v2529
      %v2656 = vtanh.pop %v2532
      %v2657 = vtanh.pop %v2537
      %v2658 = vtanh.pop %v2540
      %v2659 = vtanh.pop %v2545
      %v2660 = vtanh.pop %v2548
      %v2661 = vtanh.pop %v2553
      %v2662 = vtanh.pop %v2556
      %v2663 = vtanh.pop %v2561
      %v2664 = vtanh.pop %v2564
      %v2665 = vtanh.pop %v2569
      %v2666 = vtanh.pop %v2572
      %v2667 = vtanh.pop %v2577
      %v2668 = vtanh.pop %v2580
      %v2669 = vtanh.pop %v2585
      %v2670 = vtanh.pop %v2588
      %v2671 = vtanh.pop %v2593
      %v2672 = vtanh.pop %v2596
      %v2673 = vtanh.pop %v2601
      %v2674 = vtanh.pop %v2604
      %v2675 = vtanh.pop %v2609
      %v2676 = vtanh.pop %v2612
      %v2677 = vtanh.pop %v2617
      %v2678 = vtanh.pop %v2620
      %v2679 = vtanh.pop %v2625
      %v2680 = vtanh.pop %v2628
      %v2681 = vtanh.pop %v2633
      %v2682 = vtanh.pop %v2636
      %v2683 = vtanh.pop %v2641
      %v2684 = vtanh.pop %v2644
      %v2685 = vtanh.pop %v2649
      %v2686 = vtanh.pop %v2652
      %v2687 = vpack.c.bf16 %v2656, %v2655
      %v2688 = vpack.c.bf16 %v2658, %v2657
      %v2689 = vpack.c.bf16 %v2660, %v2659
      %v2690 = vpack.c.bf16 %v2662, %v2661
      %v2691 = vpack.c.bf16 %v2664, %v2663
      %v2692 = vpack.c.bf16 %v2666, %v2665
      %v2693 = vpack.c.bf16 %v2668, %v2667
      %v2694 = vpack.c.bf16 %v2670, %v2669
      %v2695 = vpack.c.bf16 %v2672, %v2671
      %v2696 = vpack.c.bf16 %v2674, %v2673
      %v2697 = vpack.c.bf16 %v2676, %v2675
      %v2698 = vpack.c.bf16 %v2678, %v2677
      %v2699 = vpack.c.bf16 %v2680, %v2679
      %v2700 = vpack.c.bf16 %v2682, %v2681
      %v2701 = vpack.c.bf16 %v2684, %v2683
      %v2702 = vpack.c.bf16 %v2686, %v2685
      %s2703 = scalar_lea.vmem %s1, 256
      %v2704 = vld [vmem:[%s2703] sm:$0xf]
      %v2705 = vld [vmem:[%s2703 + $0x4] sm:$0xf]
      %v2706 = vld [vmem:[%s2703 + $0x8] sm:$0xf]
      %v2707 = vld [vmem:[%s2703 + $0xc] sm:$0xf]
      %v2708 = vld [vmem:[%s2703 + $0x10] sm:$0xf]
      %v2709 = vld [vmem:[%s2703 + $0x14] sm:$0xf]
      %v2710 = vld [vmem:[%s2703 + $0x18] sm:$0xf]
      %v2711 = vld [vmem:[%s2703 + $0x1c] sm:$0xf]
      %s2712 = scalar_lea.vmem %s2, 8
      %v2713 = vld [vmem:[%s2712] sm:$0x1]
      %v2715 = vlaneseq
      %v2716 = vshrl.u32 %v2715, 7
      %v2717 = vsub.s32 0, %v2716
      %v2718 = vrot.slane %v2713, %v2717
      %v2728 = vunpack.c.l.b16 %v2704
      %v2729 = vunpack.c.l.b16 %v2705
      %v2730 = vunpack.c.l.b16 %v2706
      %v2731 = vunpack.c.l.b16 %v2707
      %v2732 = vunpack.c.l.b16 %v2708
      %v2733 = vunpack.c.l.b16 %v2709
      %v2734 = vunpack.c.l.b16 %v2710
      %v2735 = vunpack.c.l.b16 %v2711
      %v2736 = vpack.c.b16 %v2729, %v2728
      %v2737 = vpack.c.b16 %v2731, %v2730
      %v2738 = vpack.c.b16 %v2733, %v2732
      %v2739 = vpack.c.b16 %v2735, %v2734
      %v2745 = vsel %vm175, %v2687, 0
      %v2748 = vsel %vm175, %v2688, 0
      %v2751 = vsel %vm175, %v2689, 0
      %v2754 = vsel %vm175, %v2690, 0
      %v2757 = vsel %vm175, %v2691, 0
      %v2760 = vsel %vm175, %v2692, 0
      %v2763 = vsel %vm175, %v2693, 0
      %v2766 = vsel %vm175, %v2694, 0
      %v2769 = vsel %vm175, %v2695, 0
      %v2772 = vsel %vm175, %v2696, 0
      %v2775 = vsel %vm175, %v2697, 0
      %v2778 = vsel %vm175, %v2698, 0
      %v2781 = vsel %vm175, %v2699, 0
      %v2784 = vsel %vm175, %v2700, 0
      %v2787 = vsel %vm175, %v2701, 0
      %v2790 = vsel %vm175, %v2702, 0
      %2792 = vmatprep.subr.bf16.mxu0 0
      %2793 = vmatpush1.bf16.msra.mxu0 0
      %2794 = vmatprep.subr.bf16.mxu0 0
      %2795 = vmatpush1.bf16.msra.mxu0 0
      %2796 = vmatprep.subr.bf16.mxu0 0
      %2797 = vmatpush1.bf16.msra.mxu0 0
      %2798 = vmatprep.subr.bf16.mxu0 0
      %2799 = vmatpush1.bf16.msra.mxu0 0
      %2800 = vmatprep.subr.bf16.mxu0 0
      %2801 = vmatpush1.bf16.msra.mxu0 %v2739
      %2802 = vmatprep.subr.bf16.mxu0 0
      %2803 = vmatpush1.bf16.msra.mxu0 %v2738
      %2804 = vmatprep.subr.bf16.mxu0 0
      %2805 = vmatpush1.bf16.msra.mxu0 %v2737
      %2806 = vmatprep.subr.bf16.mxu0 0
      %2807 = vmatpush1.bf16.msra.mxu0 %v2736
      %2808 = vmatprep.subr.bf16.mxu0 0
      %2809 = vmatpush2.bf16.msra.mxu0 0
      %2810 = vmatprep.subr.bf16.mxu0 0
      %2811 = vmatpush2.bf16.msra.mxu0 0
      %2812 = vmatprep.subr.bf16.mxu0 0
      %2813 = vmatpush2.bf16.msra.mxu0 0
      %2814 = vmatprep.subr.bf16.mxu0 0
      %2815 = vmatpush2.bf16.msra.mxu0 0
      %2816 = vmatprep.subr.bf16.mxu0 0
      %2817 = vmatpush2.bf16.msra.mxu0 0
      %2818 = vmatprep.subr.bf16.mxu0 0
      %2819 = vmatpush2.bf16.msra.mxu0 0
      %2820 = vmatprep.subr.bf16.mxu0 0
      %2821 = vmatpush2.bf16.msra.mxu0 0
      %2822 = vmatprep.subr.bf16.mxu0 0
      %2823 = vmatpush2.bf16.msra.mxu0 0
      %2824 = vmatprep.mubr.bf16.mxu0 0
      %2825 = vmatmul.mubr.bf16.gmra.mxu0 %v2745
      %v2826 = vpop.f32.mrf.mxu0
      %v2827 = vadd.f32 %v2718, %v2826
      %v2828 = vpop.f32.mrf.mxu0
      %v2829 = vpop.f32.mrf.mxu0
      %v2830 = vadd.f32 %v2718, %v2829
      %v2831 = vpop.f32.mrf.mxu0
      %2832 = vmatprep.mubr.bf16.mxu0 0
      %2833 = vmatmul.mubr.bf16.gmra.mxu0 %v2748
      %v2834 = vpop.f32.mrf.mxu0
      %v2835 = vadd.f32 %v2718, %v2834
      %v2836 = vpop.f32.mrf.mxu0
      %v2837 = vpop.f32.mrf.mxu0
      %v2838 = vadd.f32 %v2718, %v2837
      %v2839 = vpop.f32.mrf.mxu0
      %2840 = vmatprep.mubr.bf16.mxu0 0
      %2841 = vmatmul.mubr.bf16.gmra.mxu0 %v2751
      %v2842 = vpop.f32.mrf.mxu0
      %v2843 = vadd.f32 %v2718, %v2842
      %v2844 = vpop.f32.mrf.mxu0
      %v2845 = vpop.f32.mrf.mxu0
      %v2846 = vadd.f32 %v2718, %v2845
      %v2847 = vpop.f32.mrf.mxu0
      %2848 = vmatprep.mubr.bf16.mxu0 0
      %2849 = vmatmul.mubr.bf16.gmra.mxu0 %v2754
      %v2850 = vpop.f32.mrf.mxu0
      %v2851 = vadd.f32 %v2718, %v2850
      %v2852 = vpop.f32.mrf.mxu0
      %v2853 = vpop.f32.mrf.mxu0
      %v2854 = vadd.f32 %v2718, %v2853
      %v2855 = vpop.f32.mrf.mxu0
      %2856 = vmatprep.mubr.bf16.mxu0 0
      %2857 = vmatmul.mubr.bf16.gmra.mxu0 %v2757
      %v2858 = vpop.f32.mrf.mxu0
      %v2859 = vadd.f32 %v2718, %v2858
      %v2860 = vpop.f32.mrf.mxu0
      %v2861 = vpop.f32.mrf.mxu0
      %v2862 = vadd.f32 %v2718, %v2861
      %v2863 = vpop.f32.mrf.mxu0
      %2864 = vmatprep.mubr.bf16.mxu0 0
      %2865 = vmatmul.mubr.bf16.gmra.mxu0 %v2760
      %v2866 = vpop.f32.mrf.mxu0
      %v2867 = vadd.f32 %v2718, %v2866
      %v2868 = vpop.f32.mrf.mxu0
      %v2869 = vpop.f32.mrf.mxu0
      %v2870 = vadd.f32 %v2718, %v2869
      %v2871 = vpop.f32.mrf.mxu0
      %2872 = vmatprep.mubr.bf16.mxu0 0
      %2873 = vmatmul.mubr.bf16.gmra.mxu0 %v2763
      %v2874 = vpop.f32.mrf.mxu0
      %v2875 = vadd.f32 %v2718, %v2874
      %v2876 = vpop.f32.mrf.mxu0
      %v2877 = vpop.f32.mrf.mxu0
      %v2878 = vadd.f32 %v2718, %v2877
      %v2879 = vpop.f32.mrf.mxu0
      %2880 = vmatprep.mubr.bf16.mxu0 0
      %2881 = vmatmul.mubr.bf16.gmra.mxu0 %v2766
      %v2882 = vpop.f32.mrf.mxu0
      %v2883 = vadd.f32 %v2718, %v2882
      %v2884 = vpop.f32.mrf.mxu0
      %v2885 = vpop.f32.mrf.mxu0
      %v2886 = vadd.f32 %v2718, %v2885
      %v2887 = vpop.f32.mrf.mxu0
      %2888 = vmatprep.mubr.bf16.mxu0 0
      %2889 = vmatmul.mubr.bf16.gmra.mxu0 %v2769
      %v2890 = vpop.f32.mrf.mxu0
      %v2891 = vadd.f32 %v2718, %v2890
      %v2892 = vpop.f32.mrf.mxu0
      %v2893 = vpop.f32.mrf.mxu0
      %v2894 = vadd.f32 %v2718, %v2893
      %v2895 = vpop.f32.mrf.mxu0
      %2896 = vmatprep.mubr.bf16.mxu0 0
      %2897 = vmatmul.mubr.bf16.gmra.mxu0 %v2772
      %v2898 = vpop.f32.mrf.mxu0
      %v2899 = vadd.f32 %v2718, %v2898
      %v2900 = vpop.f32.mrf.mxu0
      %v2901 = vpop.f32.mrf.mxu0
      %v2902 = vadd.f32 %v2718, %v2901
      %v2903 = vpop.f32.mrf.mxu0
      %2904 = vmatprep.mubr.bf16.mxu0 0
      %2905 = vmatmul.mubr.bf16.gmra.mxu0 %v2775
      %v2906 = vpop.f32.mrf.mxu0
      %v2907 = vadd.f32 %v2718, %v2906
      %v2908 = vpop.f32.mrf.mxu0
      %v2909 = vpop.f32.mrf.mxu0
      %v2910 = vadd.f32 %v2718, %v2909
      %v2911 = vpop.f32.mrf.mxu0
      %2912 = vmatprep.mubr.bf16.mxu0 0
      %2913 = vmatmul.mubr.bf16.gmra.mxu0 %v2778
      %v2914 = vpop.f32.mrf.mxu0
      %v2915 = vadd.f32 %v2718, %v2914
      %v2916 = vpop.f32.mrf.mxu0
      %v2917 = vpop.f32.mrf.mxu0
      %v2918 = vadd.f32 %v2718, %v2917
      %v2919 = vpop.f32.mrf.mxu0
      %2920 = vmatprep.mubr.bf16.mxu0 0
      %2921 = vmatmul.mubr.bf16.gmra.mxu0 %v2781
      %v2922 = vpop.f32.mrf.mxu0
      %v2923 = vadd.f32 %v2718, %v2922
      %v2924 = vpop.f32.mrf.mxu0
      %v2925 = vpop.f32.mrf.mxu0
      %v2926 = vadd.f32 %v2718, %v2925
      %v2927 = vpop.f32.mrf.mxu0
      %2928 = vmatprep.mubr.bf16.mxu0 0
      %2929 = vmatmul.mubr.bf16.gmra.mxu0 %v2784
      %v2930 = vpop.f32.mrf.mxu0
      %v2931 = vadd.f32 %v2718, %v2930
      %v2932 = vpop.f32.mrf.mxu0
      %v2933 = vpop.f32.mrf.mxu0
      %v2934 = vadd.f32 %v2718, %v2933
      %v2935 = vpop.f32.mrf.mxu0
      %2936 = vmatprep.mubr.bf16.mxu0 0
      %2937 = vmatmul.mubr.bf16.gmra.mxu0 %v2787
      %v2938 = vpop.f32.mrf.mxu0
      %v2939 = vadd.f32 %v2718, %v2938
      %v2940 = vpop.f32.mrf.mxu0
      %v2941 = vpop.f32.mrf.mxu0
      %v2942 = vadd.f32 %v2718, %v2941
      %v2943 = vpop.f32.mrf.mxu0
      %2944 = vmatprep.mubr.bf16.mxu0 0
      %2945 = vmatmul.mubr.bf16.gmra.mxu0 %v2790
      %v2946 = vpop.f32.mrf.mxu0
      %v2947 = vadd.f32 %v2718, %v2946
      %v2948 = vpop.f32.mrf.mxu0
      %v2949 = vpop.f32.mrf.mxu0
      %v2950 = vadd.f32 %v2718, %v2949
      %v2951 = vpop.f32.mrf.mxu0
      %2952 = vdwg.mxu0
      %v2953 = vtanh.pop %v2827
      %v2954 = vtanh.pop %v2830
      %v2955 = vtanh.pop %v2835
      %v2956 = vtanh.pop %v2838
      %v2957 = vtanh.pop %v2843
      %v2958 = vtanh.pop %v2846
      %v2959 = vtanh.pop %v2851
      %v2960 = vtanh.pop %v2854
      %v2961 = vtanh.pop %v2859
      %v2962 = vtanh.pop %v2862
      %v2963 = vtanh.pop %v2867
      %v2964 = vtanh.pop %v2870
      %v2965 = vtanh.pop %v2875
      %v2966 = vtanh.pop %v2878
      %v2967 = vtanh.pop %v2883
      %v2968 = vtanh.pop %v2886
      %v2969 = vtanh.pop %v2891
      %v2970 = vtanh.pop %v2894
      %v2971 = vtanh.pop %v2899
      %v2972 = vtanh.pop %v2902
      %v2973 = vtanh.pop %v2907
      %v2974 = vtanh.pop %v2910
      %v2975 = vtanh.pop %v2915
      %v2976 = vtanh.pop %v2918
      %v2977 = vtanh.pop %v2923
      %v2978 = vtanh.pop %v2926
      %v2979 = vtanh.pop %v2931
      %v2980 = vtanh.pop %v2934
      %v2981 = vtanh.pop %v2939
      %v2982 = vtanh.pop %v2942
      %v2983 = vtanh.pop %v2947
      %v2984 = vtanh.pop %v2950
      %v2985 = vpack.c.bf16 %v2954, %v2953
      %v2986 = vpack.c.bf16 %v2956, %v2955
      %v2987 = vpack.c.bf16 %v2958, %v2957
      %v2988 = vpack.c.bf16 %v2960, %v2959
      %v2989 = vpack.c.bf16 %v2962, %v2961
      %v2990 = vpack.c.bf16 %v2964, %v2963
      %v2991 = vpack.c.bf16 %v2966, %v2965
      %v2992 = vpack.c.bf16 %v2968, %v2967
      %v2993 = vpack.c.bf16 %v2970, %v2969
      %v2994 = vpack.c.bf16 %v2972, %v2971
      %v2995 = vpack.c.bf16 %v2974, %v2973
      %v2996 = vpack.c.bf16 %v2976, %v2975
      %v2997 = vpack.c.bf16 %v2978, %v2977
      %v2998 = vpack.c.bf16 %v2980, %v2979
      %v2999 = vpack.c.bf16 %v2982, %v2981
      %v3000 = vpack.c.bf16 %v2984, %v2983
      %s3001 = scalar_lea.vmem %s1, 288
      %v3002 = vld [vmem:[%s3001] sm:$0xf]
      %v3003 = vld [vmem:[%s3001 + $0x4] sm:$0xf]
      %v3004 = vld [vmem:[%s3001 + $0x8] sm:$0xf]
      %v3005 = vld [vmem:[%s3001 + $0xc] sm:$0xf]
      %v3006 = vld [vmem:[%s3001 + $0x10] sm:$0xf]
      %v3007 = vld [vmem:[%s3001 + $0x14] sm:$0xf]
      %v3008 = vld [vmem:[%s3001 + $0x18] sm:$0xf]
      %v3009 = vld [vmem:[%s3001 + $0x1c] sm:$0xf]
      %s3010 = scalar_lea.vmem %s2, 9
      %v3011 = vld [vmem:[%s3010] sm:$0x1]
      %v3013 = vlaneseq
      %v3014 = vshrl.u32 %v3013, 7
      %v3015 = vsub.s32 0, %v3014
      %v3016 = vrot.slane %v3011, %v3015
      %v3026 = vunpack.c.l.b16 %v3002
      %v3027 = vunpack.c.l.b16 %v3003
      %v3028 = vunpack.c.l.b16 %v3004
      %v3029 = vunpack.c.l.b16 %v3005
      %v3030 = vunpack.c.l.b16 %v3006
      %v3031 = vunpack.c.l.b16 %v3007
      %v3032 = vunpack.c.l.b16 %v3008
      %v3033 = vunpack.c.l.b16 %v3009
      %v3034 = vpack.c.b16 %v3027, %v3026
      %v3035 = vpack.c.b16 %v3029, %v3028
      %v3036 = vpack.c.b16 %v3031, %v3030
      %v3037 = vpack.c.b16 %v3033, %v3032
      %v3043 = vsel %vm175, %v2985, 0
      %v3046 = vsel %vm175, %v2986, 0
      %v3049 = vsel %vm175, %v2987, 0
      %v3052 = vsel %vm175, %v2988, 0
      %v3055 = vsel %vm175, %v2989, 0
      %v3058 = vsel %vm175, %v2990, 0
      %v3061 = vsel %vm175, %v2991, 0
      %v3064 = vsel %vm175, %v2992, 0
      %v3067 = vsel %vm175, %v2993, 0
      %v3070 = vsel %vm175, %v2994, 0
      %v3073 = vsel %vm175, %v2995, 0
      %v3076 = vsel %vm175, %v2996, 0
      %v3079 = vsel %vm175, %v2997, 0
      %v3082 = vsel %vm175, %v2998, 0
      %v3085 = vsel %vm175, %v2999, 0
      %v3088 = vsel %vm175, %v3000, 0
      %3090 = vmatprep.subr.bf16.mxu0 0
      %3091 = vmatpush1.bf16.msra.mxu0 0
      %3092 = vmatprep.subr.bf16.mxu0 0
      %3093 = vmatpush1.bf16.msra.mxu0 0
      %3094 = vmatprep.subr.bf16.mxu0 0
      %3095 = vmatpush1.bf16.msra.mxu0 0
      %3096 = vmatprep.subr.bf16.mxu0 0
      %3097 = vmatpush1.bf16.msra.mxu0 0
      %3098 = vmatprep.subr.bf16.mxu0 0
      %3099 = vmatpush1.bf16.msra.mxu0 %v3037
      %3100 = vmatprep.subr.bf16.mxu0 0
      %3101 = vmatpush1.bf16.msra.mxu0 %v3036
      %3102 = vmatprep.subr.bf16.mxu0 0
      %3103 = vmatpush1.bf16.msra.mxu0 %v3035
      %3104 = vmatprep.subr.bf16.mxu0 0
      %3105 = vmatpush1.bf16.msra.mxu0 %v3034
      %3106 = vmatprep.subr.bf16.mxu0 0
      %3107 = vmatpush2.bf16.msra.mxu0 0
      %3108 = vmatprep.subr.bf16.mxu0 0
      %3109 = vmatpush2.bf16.msra.mxu0 0
      %3110 = vmatprep.subr.bf16.mxu0 0
      %3111 = vmatpush2.bf16.msra.mxu0 0
      %3112 = vmatprep.subr.bf16.mxu0 0
      %3113 = vmatpush2.bf16.msra.mxu0 0
      %3114 = vmatprep.subr.bf16.mxu0 0
      %3115 = vmatpush2.bf16.msra.mxu0 0
      %3116 = vmatprep.subr.bf16.mxu0 0
      %3117 = vmatpush2.bf16.msra.mxu0 0
      %3118 = vmatprep.subr.bf16.mxu0 0
      %3119 = vmatpush2.bf16.msra.mxu0 0
      %3120 = vmatprep.subr.bf16.mxu0 0
      %3121 = vmatpush2.bf16.msra.mxu0 0
      %3122 = vmatprep.mubr.bf16.mxu0 0
      %3123 = vmatmul.mubr.bf16.gmra.mxu0 %v3043
      %v3124 = vpop.f32.mrf.mxu0
      %v3125 = vadd.f32 %v3016, %v3124
      %v3126 = vpop.f32.mrf.mxu0
      %v3127 = vpop.f32.mrf.mxu0
      %v3128 = vadd.f32 %v3016, %v3127
      %v3129 = vpop.f32.mrf.mxu0
      %3130 = vmatprep.mubr.bf16.mxu0 0
      %3131 = vmatmul.mubr.bf16.gmra.mxu0 %v3046
      %v3132 = vpop.f32.mrf.mxu0
      %v3133 = vadd.f32 %v3016, %v3132
      %v3134 = vpop.f32.mrf.mxu0
      %v3135 = vpop.f32.mrf.mxu0
      %v3136 = vadd.f32 %v3016, %v3135
      %v3137 = vpop.f32.mrf.mxu0
      %3138 = vmatprep.mubr.bf16.mxu0 0
      %3139 = vmatmul.mubr.bf16.gmra.mxu0 %v3049
      %v3140 = vpop.f32.mrf.mxu0
      %v3141 = vadd.f32 %v3016, %v3140
      %v3142 = vpop.f32.mrf.mxu0
      %v3143 = vpop.f32.mrf.mxu0
      %v3144 = vadd.f32 %v3016, %v3143
      %v3145 = vpop.f32.mrf.mxu0
      %3146 = vmatprep.mubr.bf16.mxu0 0
      %3147 = vmatmul.mubr.bf16.gmra.mxu0 %v3052
      %v3148 = vpop.f32.mrf.mxu0
      %v3149 = vadd.f32 %v3016, %v3148
      %v3150 = vpop.f32.mrf.mxu0
      %v3151 = vpop.f32.mrf.mxu0
      %v3152 = vadd.f32 %v3016, %v3151
      %v3153 = vpop.f32.mrf.mxu0
      %3154 = vmatprep.mubr.bf16.mxu0 0
      %3155 = vmatmul.mubr.bf16.gmra.mxu0 %v3055
      %v3156 = vpop.f32.mrf.mxu0
      %v3157 = vadd.f32 %v3016, %v3156
      %v3158 = vpop.f32.mrf.mxu0
      %v3159 = vpop.f32.mrf.mxu0
      %v3160 = vadd.f32 %v3016, %v3159
      %v3161 = vpop.f32.mrf.mxu0
      %3162 = vmatprep.mubr.bf16.mxu0 0
      %3163 = vmatmul.mubr.bf16.gmra.mxu0 %v3058
      %v3164 = vpop.f32.mrf.mxu0
      %v3165 = vadd.f32 %v3016, %v3164
      %v3166 = vpop.f32.mrf.mxu0
      %v3167 = vpop.f32.mrf.mxu0
      %v3168 = vadd.f32 %v3016, %v3167
      %v3169 = vpop.f32.mrf.mxu0
      %3170 = vmatprep.mubr.bf16.mxu0 0
      %3171 = vmatmul.mubr.bf16.gmra.mxu0 %v3061
      %v3172 = vpop.f32.mrf.mxu0
      %v3173 = vadd.f32 %v3016, %v3172
      %v3174 = vpop.f32.mrf.mxu0
      %v3175 = vpop.f32.mrf.mxu0
      %v3176 = vadd.f32 %v3016, %v3175
      %v3177 = vpop.f32.mrf.mxu0
      %3178 = vmatprep.mubr.bf16.mxu0 0
      %3179 = vmatmul.mubr.bf16.gmra.mxu0 %v3064
      %v3180 = vpop.f32.mrf.mxu0
      %v3181 = vadd.f32 %v3016, %v3180
      %v3182 = vpop.f32.mrf.mxu0
      %v3183 = vpop.f32.mrf.mxu0
      %v3184 = vadd.f32 %v3016, %v3183
      %v3185 = vpop.f32.mrf.mxu0
      %3186 = vmatprep.mubr.bf16.mxu0 0
      %3187 = vmatmul.mubr.bf16.gmra.mxu0 %v3067
      %v3188 = vpop.f32.mrf.mxu0
      %v3189 = vadd.f32 %v3016, %v3188
      %v3190 = vpop.f32.mrf.mxu0
      %v3191 = vpop.f32.mrf.mxu0
      %v3192 = vadd.f32 %v3016, %v3191
      %v3193 = vpop.f32.mrf.mxu0
      %3194 = vmatprep.mubr.bf16.mxu0 0
      %3195 = vmatmul.mubr.bf16.gmra.mxu0 %v3070
      %v3196 = vpop.f32.mrf.mxu0
      %v3197 = vadd.f32 %v3016, %v3196
      %v3198 = vpop.f32.mrf.mxu0
      %v3199 = vpop.f32.mrf.mxu0
      %v3200 = vadd.f32 %v3016, %v3199
      %v3201 = vpop.f32.mrf.mxu0
      %3202 = vmatprep.mubr.bf16.mxu0 0
      %3203 = vmatmul.mubr.bf16.gmra.mxu0 %v3073
      %v3204 = vpop.f32.mrf.mxu0
      %v3205 = vadd.f32 %v3016, %v3204
      %v3206 = vpop.f32.mrf.mxu0
      %v3207 = vpop.f32.mrf.mxu0
      %v3208 = vadd.f32 %v3016, %v3207
      %v3209 = vpop.f32.mrf.mxu0
      %3210 = vmatprep.mubr.bf16.mxu0 0
      %3211 = vmatmul.mubr.bf16.gmra.mxu0 %v3076
      %v3212 = vpop.f32.mrf.mxu0
      %v3213 = vadd.f32 %v3016, %v3212
      %v3214 = vpop.f32.mrf.mxu0
      %v3215 = vpop.f32.mrf.mxu0
      %v3216 = vadd.f32 %v3016, %v3215
      %v3217 = vpop.f32.mrf.mxu0
      %3218 = vmatprep.mubr.bf16.mxu0 0
      %3219 = vmatmul.mubr.bf16.gmra.mxu0 %v3079
      %v3220 = vpop.f32.mrf.mxu0
      %v3221 = vadd.f32 %v3016, %v3220
      %v3222 = vpop.f32.mrf.mxu0
      %v3223 = vpop.f32.mrf.mxu0
      %v3224 = vadd.f32 %v3016, %v3223
      %v3225 = vpop.f32.mrf.mxu0
      %3226 = vmatprep.mubr.bf16.mxu0 0
      %3227 = vmatmul.mubr.bf16.gmra.mxu0 %v3082
      %v3228 = vpop.f32.mrf.mxu0
      %v3229 = vadd.f32 %v3016, %v3228
      %v3230 = vpop.f32.mrf.mxu0
      %v3231 = vpop.f32.mrf.mxu0
      %v3232 = vadd.f32 %v3016, %v3231
      %v3233 = vpop.f32.mrf.mxu0
      %3234 = vmatprep.mubr.bf16.mxu0 0
      %3235 = vmatmul.mubr.bf16.gmra.mxu0 %v3085
      %v3236 = vpop.f32.mrf.mxu0
      %v3237 = vadd.f32 %v3016, %v3236
      %v3238 = vpop.f32.mrf.mxu0
      %v3239 = vpop.f32.mrf.mxu0
      %v3240 = vadd.f32 %v3016, %v3239
      %v3241 = vpop.f32.mrf.mxu0
      %3242 = vmatprep.mubr.bf16.mxu0 0
      %3243 = vmatmul.mubr.bf16.gmra.mxu0 %v3088
      %v3244 = vpop.f32.mrf.mxu0
      %v3245 = vadd.f32 %v3016, %v3244
      %v3246 = vpop.f32.mrf.mxu0
      %v3247 = vpop.f32.mrf.mxu0
      %v3248 = vadd.f32 %v3016, %v3247
      %v3249 = vpop.f32.mrf.mxu0
      %3250 = vdwg.mxu0
      %vm3251 = vcmp.ge.f32.partialorder %v3125, 0.0
      %vm3252 = vcmp.ge.f32.partialorder %v3128, 0.0
      %vm3253 = vcmp.ge.f32.partialorder %v3133, 0.0
      %vm3254 = vcmp.ge.f32.partialorder %v3136, 0.0
      %vm3255 = vcmp.ge.f32.partialorder %v3141, 0.0
      %vm3256 = vcmp.ge.f32.partialorder %v3144, 0.0
      %vm3257 = vcmp.ge.f32.partialorder %v3149, 0.0
      %vm3258 = vcmp.ge.f32.partialorder %v3152, 0.0
      %vm3259 = vcmp.ge.f32.partialorder %v3157, 0.0
      %vm3260 = vcmp.ge.f32.partialorder %v3160, 0.0
      %vm3261 = vcmp.ge.f32.partialorder %v3165, 0.0
      %vm3262 = vcmp.ge.f32.partialorder %v3168, 0.0
      %vm3263 = vcmp.ge.f32.partialorder %v3173, 0.0
      %vm3264 = vcmp.ge.f32.partialorder %v3176, 0.0
      %vm3265 = vcmp.ge.f32.partialorder %v3181, 0.0
      %vm3266 = vcmp.ge.f32.partialorder %v3184, 0.0
      %vm3267 = vcmp.ge.f32.partialorder %v3189, 0.0
      %vm3268 = vcmp.ge.f32.partialorder %v3192, 0.0
      %vm3269 = vcmp.ge.f32.partialorder %v3197, 0.0
      %vm3270 = vcmp.ge.f32.partialorder %v3200, 0.0
      %vm3271 = vcmp.ge.f32.partialorder %v3205, 0.0
      %vm3272 = vcmp.ge.f32.partialorder %v3208, 0.0
      %vm3273 = vcmp.ge.f32.partialorder %v3213, 0.0
      %vm3274 = vcmp.ge.f32.partialorder %v3216, 0.0
      %vm3275 = vcmp.ge.f32.partialorder %v3221, 0.0
      %vm3276 = vcmp.ge.f32.partialorder %v3224, 0.0
      %vm3277 = vcmp.ge.f32.partialorder %v3229, 0.0
      %vm3278 = vcmp.ge.f32.partialorder %v3232, 0.0
      %vm3279 = vcmp.ge.f32.partialorder %v3237, 0.0
      %vm3280 = vcmp.ge.f32.partialorder %v3240, 0.0
      %vm3281 = vcmp.ge.f32.partialorder %v3245, 0.0
      %vm3282 = vcmp.ge.f32.partialorder %v3248, 0.0
      %v3283 = vmul.f32 %v3125, 0.01
      %v3284 = vmul.f32 %v3128, 0.01
      %v3285 = vmul.f32 %v3133, 0.01
      %v3286 = vmul.f32 %v3136, 0.01
      %v3287 = vmul.f32 %v3141, 0.01
      %v3288 = vmul.f32 %v3144, 0.01
      %v3289 = vmul.f32 %v3149, 0.01
      %v3290 = vmul.f32 %v3152, 0.01
      %v3291 = vmul.f32 %v3157, 0.01
      %v3292 = vmul.f32 %v3160, 0.01
      %v3293 = vmul.f32 %v3165, 0.01
      %v3294 = vmul.f32 %v3168, 0.01
      %v3295 = vmul.f32 %v3173, 0.01
      %v3296 = vmul.f32 %v3176, 0.01
      %v3297 = vmul.f32 %v3181, 0.01
      %v3298 = vmul.f32 %v3184, 0.01
      %v3299 = vmul.f32 %v3189, 0.01
      %v3300 = vmul.f32 %v3192, 0.01
      %v3301 = vmul.f32 %v3197, 0.01
      %v3302 = vmul.f32 %v3200, 0.01
      %v3303 = vmul.f32 %v3205, 0.01
      %v3304 = vmul.f32 %v3208, 0.01
      %v3305 = vmul.f32 %v3213, 0.01
      %v3306 = vmul.f32 %v3216, 0.01
      %v3307 = vmul.f32 %v3221, 0.01
      %v3308 = vmul.f32 %v3224, 0.01
      %v3309 = vmul.f32 %v3229, 0.01
      %v3310 = vmul.f32 %v3232, 0.01
      %v3311 = vmul.f32 %v3237, 0.01
      %v3312 = vmul.f32 %v3240, 0.01
      %v3313 = vmul.f32 %v3245, 0.01
      %v3314 = vmul.f32 %v3248, 0.01
      %v3315 = vsel %vm3251, %v3125, %v3283
      %v3316 = vsel %vm3252, %v3128, %v3284
      %v3317 = vsel %vm3253, %v3133, %v3285
      %v3318 = vsel %vm3254, %v3136, %v3286
      %v3319 = vsel %vm3255, %v3141, %v3287
      %v3320 = vsel %vm3256, %v3144, %v3288
      %v3321 = vsel %vm3257, %v3149, %v3289
      %v3322 = vsel %vm3258, %v3152, %v3290
      %v3323 = vsel %vm3259, %v3157, %v3291
      %v3324 = vsel %vm3260, %v3160, %v3292
      %v3325 = vsel %vm3261, %v3165, %v3293
      %v3326 = vsel %vm3262, %v3168, %v3294
      %v3327 = vsel %vm3263, %v3173, %v3295
      %v3328 = vsel %vm3264, %v3176, %v3296
      %v3329 = vsel %vm3265, %v3181, %v3297
      %v3330 = vsel %vm3266, %v3184, %v3298
      %v3331 = vsel %vm3267, %v3189, %v3299
      %v3332 = vsel %vm3268, %v3192, %v3300
      %v3333 = vsel %vm3269, %v3197, %v3301
      %v3334 = vsel %vm3270, %v3200, %v3302
      %v3335 = vsel %vm3271, %v3205, %v3303
      %v3336 = vsel %vm3272, %v3208, %v3304
      %v3337 = vsel %vm3273, %v3213, %v3305
      %v3338 = vsel %vm3274, %v3216, %v3306
      %v3339 = vsel %vm3275, %v3221, %v3307
      %v3340 = vsel %vm3276, %v3224, %v3308
      %v3341 = vsel %vm3277, %v3229, %v3309
      %v3342 = vsel %vm3278, %v3232, %v3310
      %v3343 = vsel %vm3279, %v3237, %v3311
      %v3344 = vsel %vm3280, %v3240, %v3312
      %v3345 = vsel %vm3281, %v3245, %v3313
      %v3346 = vsel %vm3282, %v3248, %v3314
      %v3347 = vpack.c.bf16 %v3316, %v3315
      %v3348 = vpack.c.bf16 %v3318, %v3317
      %v3349 = vpack.c.bf16 %v3320, %v3319
      %v3350 = vpack.c.bf16 %v3322, %v3321
      %v3351 = vpack.c.bf16 %v3324, %v3323
      %v3352 = vpack.c.bf16 %v3326, %v3325
      %v3353 = vpack.c.bf16 %v3328, %v3327
      %v3354 = vpack.c.bf16 %v3330, %v3329
      %v3355 = vpack.c.bf16 %v3332, %v3331
      %v3356 = vpack.c.bf16 %v3334, %v3333
      %v3357 = vpack.c.bf16 %v3336, %v3335
      %v3358 = vpack.c.bf16 %v3338, %v3337
      %v3359 = vpack.c.bf16 %v3340, %v3339
      %v3360 = vpack.c.bf16 %v3342, %v3341
      %v3361 = vpack.c.bf16 %v3344, %v3343
      %v3362 = vpack.c.bf16 %v3346, %v3345
      %s3363 = scalar_lea.vmem %s1, 320
      %v3364 = vld [vmem:[%s3363] sm:$0xf]
      %v3365 = vld [vmem:[%s3363 + $0x4] sm:$0xf]
      %v3366 = vld [vmem:[%s3363 + $0x8] sm:$0xf]
      %v3367 = vld [vmem:[%s3363 + $0xc] sm:$0xf]
      %v3368 = vld [vmem:[%s3363 + $0x10] sm:$0xf]
      %v3369 = vld [vmem:[%s3363 + $0x14] sm:$0xf]
      %v3370 = vld [vmem:[%s3363 + $0x18] sm:$0xf]
      %v3371 = vld [vmem:[%s3363 + $0x1c] sm:$0xf]
      %s3372 = scalar_lea.vmem %s2, 10
      %v3373 = vld [vmem:[%s3372] sm:$0x1]
      %v3375 = vlaneseq
      %v3376 = vshrl.u32 %v3375, 7
      %v3377 = vsub.s32 0, %v3376
      %v3378 = vrot.slane %v3373, %v3377
      %v3388 = vunpack.c.l.b16 %v3364
      %v3389 = vunpack.c.l.b16 %v3365
      %v3390 = vunpack.c.l.b16 %v3366
      %v3391 = vunpack.c.l.b16 %v3367
      %v3392 = vunpack.c.l.b16 %v3368
      %v3393 = vunpack.c.l.b16 %v3369
      %v3394 = vunpack.c.l.b16 %v3370
      %v3395 = vunpack.c.l.b16 %v3371
      %v3396 = vpack.c.b16 %v3389, %v3388
      %v3397 = vpack.c.b16 %v3391, %v3390
      %v3398 = vpack.c.b16 %v3393, %v3392
      %v3399 = vpack.c.b16 %v3395, %v3394
      %v3405 = vsel %vm175, %v3347, 0
      %v3408 = vsel %vm175, %v3348, 0
      %v3411 = vsel %vm175, %v3349, 0
      %v3414 = vsel %vm175, %v3350, 0
      %v3417 = vsel %vm175, %v3351, 0
      %v3420 = vsel %vm175, %v3352, 0
      %v3423 = vsel %vm175, %v3353, 0
      %v3426 = vsel %vm175, %v3354, 0
      %v3429 = vsel %vm175, %v3355, 0
      %v3432 = vsel %vm175, %v3356, 0
      %v3435 = vsel %vm175, %v3357, 0
      %v3438 = vsel %vm175, %v3358, 0
      %v3441 = vsel %vm175, %v3359, 0
      %v3444 = vsel %vm175, %v3360, 0
      %v3447 = vsel %vm175, %v3361, 0
      %v3450 = vsel %vm175, %v3362, 0
      %3452 = vmatprep.subr.bf16.mxu0 0
      %3453 = vmatpush1.bf16.msra.mxu0 0
      %3454 = vmatprep.subr.bf16.mxu0 0
      %3455 = vmatpush1.bf16.msra.mxu0 0
      %3456 = vmatprep.subr.bf16.mxu0 0
      %3457 = vmatpush1.bf16.msra.mxu0 0
      %3458 = vmatprep.subr.bf16.mxu0 0
      %3459 = vmatpush1.bf16.msra.mxu0 0
      %3460 = vmatprep.subr.bf16.mxu0 0
      %3461 = vmatpush1.bf16.msra.mxu0 %v3399
      %3462 = vmatprep.subr.bf16.mxu0 0
      %3463 = vmatpush1.bf16.msra.mxu0 %v3398
      %3464 = vmatprep.subr.bf16.mxu0 0
      %3465 = vmatpush1.bf16.msra.mxu0 %v3397
      %3466 = vmatprep.subr.bf16.mxu0 0
      %3467 = vmatpush1.bf16.msra.mxu0 %v3396
      %3468 = vmatprep.subr.bf16.mxu0 0
      %3469 = vmatpush2.bf16.msra.mxu0 0
      %3470 = vmatprep.subr.bf16.mxu0 0
      %3471 = vmatpush2.bf16.msra.mxu0 0
      %3472 = vmatprep.subr.bf16.mxu0 0
      %3473 = vmatpush2.bf16.msra.mxu0 0
      %3474 = vmatprep.subr.bf16.mxu0 0
      %3475 = vmatpush2.bf16.msra.mxu0 0
      %3476 = vmatprep.subr.bf16.mxu0 0
      %3477 = vmatpush2.bf16.msra.mxu0 0
      %3478 = vmatprep.subr.bf16.mxu0 0
      %3479 = vmatpush2.bf16.msra.mxu0 0
      %3480 = vmatprep.subr.bf16.mxu0 0
      %3481 = vmatpush2.bf16.msra.mxu0 0
      %3482 = vmatprep.subr.bf16.mxu0 0
      %3483 = vmatpush2.bf16.msra.mxu0 0
      %3484 = vmatprep.mubr.bf16.mxu0 0
      %3485 = vmatmul.mubr.bf16.gmra.mxu0 %v3405
      %v3486 = vpop.f32.mrf.mxu0
      %v3487 = vadd.f32 %v3378, %v3486
      %v3488 = vpop.f32.mrf.mxu0
      %v3489 = vpop.f32.mrf.mxu0
      %v3490 = vadd.f32 %v3378, %v3489
      %v3491 = vpop.f32.mrf.mxu0
      %3492 = vmatprep.mubr.bf16.mxu0 0
      %3493 = vmatmul.mubr.bf16.gmra.mxu0 %v3408
      %v3494 = vpop.f32.mrf.mxu0
      %v3495 = vadd.f32 %v3378, %v3494
      %v3496 = vpop.f32.mrf.mxu0
      %v3497 = vpop.f32.mrf.mxu0
      %v3498 = vadd.f32 %v3378, %v3497
      %v3499 = vpop.f32.mrf.mxu0
      %3500 = vmatprep.mubr.bf16.mxu0 0
      %3501 = vmatmul.mubr.bf16.gmra.mxu0 %v3411
      %v3502 = vpop.f32.mrf.mxu0
      %v3503 = vadd.f32 %v3378, %v3502
      %v3504 = vpop.f32.mrf.mxu0
      %v3505 = vpop.f32.mrf.mxu0
      %v3506 = vadd.f32 %v3378, %v3505
      %v3507 = vpop.f32.mrf.mxu0
      %3508 = vmatprep.mubr.bf16.mxu0 0
      %3509 = vmatmul.mubr.bf16.gmra.mxu0 %v3414
      %v3510 = vpop.f32.mrf.mxu0
      %v3511 = vadd.f32 %v3378, %v3510
      %v3512 = vpop.f32.mrf.mxu0
      %v3513 = vpop.f32.mrf.mxu0
      %v3514 = vadd.f32 %v3378, %v3513
      %v3515 = vpop.f32.mrf.mxu0
      %3516 = vmatprep.mubr.bf16.mxu0 0
      %3517 = vmatmul.mubr.bf16.gmra.mxu0 %v3417
      %v3518 = vpop.f32.mrf.mxu0
      %v3519 = vadd.f32 %v3378, %v3518
      %v3520 = vpop.f32.mrf.mxu0
      %v3521 = vpop.f32.mrf.mxu0
      %v3522 = vadd.f32 %v3378, %v3521
      %v3523 = vpop.f32.mrf.mxu0
      %3524 = vmatprep.mubr.bf16.mxu0 0
      %3525 = vmatmul.mubr.bf16.gmra.mxu0 %v3420
      %v3526 = vpop.f32.mrf.mxu0
      %v3527 = vadd.f32 %v3378, %v3526
      %v3528 = vpop.f32.mrf.mxu0
      %v3529 = vpop.f32.mrf.mxu0
      %v3530 = vadd.f32 %v3378, %v3529
      %v3531 = vpop.f32.mrf.mxu0
      %3532 = vmatprep.mubr.bf16.mxu0 0
      %3533 = vmatmul.mubr.bf16.gmra.mxu0 %v3423
      %v3534 = vpop.f32.mrf.mxu0
      %v3535 = vadd.f32 %v3378, %v3534
      %v3536 = vpop.f32.mrf.mxu0
      %v3537 = vpop.f32.mrf.mxu0
      %v3538 = vadd.f32 %v3378, %v3537
      %v3539 = vpop.f32.mrf.mxu0
      %3540 = vmatprep.mubr.bf16.mxu0 0
      %3541 = vmatmul.mubr.bf16.gmra.mxu0 %v3426
      %v3542 = vpop.f32.mrf.mxu0
      %v3543 = vadd.f32 %v3378, %v3542
      %v3544 = vpop.f32.mrf.mxu0
      %v3545 = vpop.f32.mrf.mxu0
      %v3546 = vadd.f32 %v3378, %v3545
      %v3547 = vpop.f32.mrf.mxu0
      %3548 = vmatprep.mubr.bf16.mxu0 0
      %3549 = vmatmul.mubr.bf16.gmra.mxu0 %v3429
      %v3550 = vpop.f32.mrf.mxu0
      %v3551 = vadd.f32 %v3378, %v3550
      %v3552 = vpop.f32.mrf.mxu0
      %v3553 = vpop.f32.mrf.mxu0
      %v3554 = vadd.f32 %v3378, %v3553
      %v3555 = vpop.f32.mrf.mxu0
      %3556 = vmatprep.mubr.bf16.mxu0 0
      %3557 = vmatmul.mubr.bf16.gmra.mxu0 %v3432
      %v3558 = vpop.f32.mrf.mxu0
      %v3559 = vadd.f32 %v3378, %v3558
      %v3560 = vpop.f32.mrf.mxu0
      %v3561 = vpop.f32.mrf.mxu0
      %v3562 = vadd.f32 %v3378, %v3561
      %v3563 = vpop.f32.mrf.mxu0
      %3564 = vmatprep.mubr.bf16.mxu0 0
      %3565 = vmatmul.mubr.bf16.gmra.mxu0 %v3435
      %v3566 = vpop.f32.mrf.mxu0
      %v3567 = vadd.f32 %v3378, %v3566
      %v3568 = vpop.f32.mrf.mxu0
      %v3569 = vpop.f32.mrf.mxu0
      %v3570 = vadd.f32 %v3378, %v3569
      %v3571 = vpop.f32.mrf.mxu0
      %3572 = vmatprep.mubr.bf16.mxu0 0
      %3573 = vmatmul.mubr.bf16.gmra.mxu0 %v3438
      %v3574 = vpop.f32.mrf.mxu0
      %v3575 = vadd.f32 %v3378, %v3574
      %v3576 = vpop.f32.mrf.mxu0
      %v3577 = vpop.f32.mrf.mxu0
      %v3578 = vadd.f32 %v3378, %v3577
      %v3579 = vpop.f32.mrf.mxu0
      %3580 = vmatprep.mubr.bf16.mxu0 0
      %3581 = vmatmul.mubr.bf16.gmra.mxu0 %v3441
      %v3582 = vpop.f32.mrf.mxu0
      %v3583 = vadd.f32 %v3378, %v3582
      %v3584 = vpop.f32.mrf.mxu0
      %v3585 = vpop.f32.mrf.mxu0
      %v3586 = vadd.f32 %v3378, %v3585
      %v3587 = vpop.f32.mrf.mxu0
      %3588 = vmatprep.mubr.bf16.mxu0 0
      %3589 = vmatmul.mubr.bf16.gmra.mxu0 %v3444
      %v3590 = vpop.f32.mrf.mxu0
      %v3591 = vadd.f32 %v3378, %v3590
      %v3592 = vpop.f32.mrf.mxu0
      %v3593 = vpop.f32.mrf.mxu0
      %v3594 = vadd.f32 %v3378, %v3593
      %v3595 = vpop.f32.mrf.mxu0
      %3596 = vmatprep.mubr.bf16.mxu0 0
      %3597 = vmatmul.mubr.bf16.gmra.mxu0 %v3447
      %v3598 = vpop.f32.mrf.mxu0
      %v3599 = vadd.f32 %v3378, %v3598
      %v3600 = vpop.f32.mrf.mxu0
      %v3601 = vpop.f32.mrf.mxu0
      %v3602 = vadd.f32 %v3378, %v3601
      %v3603 = vpop.f32.mrf.mxu0
      %3604 = vmatprep.mubr.bf16.mxu0 0
      %3605 = vmatmul.mubr.bf16.gmra.mxu0 %v3450
      %v3606 = vpop.f32.mrf.mxu0
      %v3607 = vadd.f32 %v3378, %v3606
      %v3608 = vpop.f32.mrf.mxu0
      %v3609 = vpop.f32.mrf.mxu0
      %v3610 = vadd.f32 %v3378, %v3609
      %v3611 = vpop.f32.mrf.mxu0
      %3612 = vdwg.mxu0
      %vm3613 = vcmask 7168
      %3614 = vst.msk [vmem:[%s172] sm:$0xff] %vm3613, %v3487
      %3615 = vst.msk [vmem:[%s172 + $0x8] sm:$0xff] %vm3613, %v3490
      %3616 = vst.msk [vmem:[%s172 + $0x10] sm:$0xff] %vm3613, %v3495
      %3617 = vst.msk [vmem:[%s172 + $0x18] sm:$0xff] %vm3613, %v3498
      %3618 = vst.msk [vmem:[%s172 + $0x20] sm:$0xff] %vm3613, %v3503
      %3619 = vst.msk [vmem:[%s172 + $0x28] sm:$0xff] %vm3613, %v3506
      %3620 = vst.msk [vmem:[%s172 + $0x30] sm:$0xff] %vm3613, %v3511
      %3621 = vst.msk [vmem:[%s172 + $0x38] sm:$0xff] %vm3613, %v3514
      %3622 = vst.msk [vmem:[%s172 + $0x40] sm:$0xff] %vm3613, %v3519
      %3623 = vst.msk [vmem:[%s172 + $0x48] sm:$0xff] %vm3613, %v3522
      %3624 = vst.msk [vmem:[%s172 + $0x50] sm:$0xff] %vm3613, %v3527
      %3625 = vst.msk [vmem:[%s172 + $0x58] sm:$0xff] %vm3613, %v3530
      %3626 = vst.msk [vmem:[%s172 + $0x60] sm:$0xff] %vm3613, %v3535
      %3627 = vst.msk [vmem:[%s172 + $0x68] sm:$0xff] %vm3613, %v3538
      %3628 = vst.msk [vmem:[%s172 + $0x70] sm:$0xff] %vm3613, %v3543
      %3629 = vst.msk [vmem:[%s172 + $0x78] sm:$0xff] %vm3613, %v3546
      %3630 = vst.msk [vmem:[%s172 + $0x80] sm:$0xff] %vm3613, %v3551
      %3631 = vst.msk [vmem:[%s172 + $0x88] sm:$0xff] %vm3613, %v3554
      %3632 = vst.msk [vmem:[%s172 + $0x90] sm:$0xff] %vm3613, %v3559
      %3633 = vst.msk [vmem:[%s172 + $0x98] sm:$0xff] %vm3613, %v3562
      %3634 = vst.msk [vmem:[%s172 + $0xa0] sm:$0xff] %vm3613, %v3567
      %3635 = vst.msk [vmem:[%s172 + $0xa8] sm:$0xff] %vm3613, %v3570
      %3636 = vst.msk [vmem:[%s172 + $0xb0] sm:$0xff] %vm3613, %v3575
      %3637 = vst.msk [vmem:[%s172 + $0xb8] sm:$0xff] %vm3613, %v3578
      %3638 = vst.msk [vmem:[%s172 + $0xc0] sm:$0xff] %vm3613, %v3583
      %3639 = vst.msk [vmem:[%s172 + $0xc8] sm:$0xff] %vm3613, %v3586
      %3640 = vst.msk [vmem:[%s172 + $0xd0] sm:$0xff] %vm3613, %v3591
      %3641 = vst.msk [vmem:[%s172 + $0xd8] sm:$0xff] %vm3613, %v3594
      %3642 = vst.msk [vmem:[%s172 + $0xe0] sm:$0xff] %vm3613, %v3599
      %3643 = vst.msk [vmem:[%s172 + $0xe8] sm:$0xff] %vm3613, %v3602
      %3644 = vst.msk [vmem:[%s172 + $0xf0] sm:$0xff] %vm3613, %v3607
      %3645 = vst.msk [vmem:[%s172 + $0xf8] sm:$0xff] %vm3613, %v3610
      %s3646 = smul.u32 32, %s14
      %p3647 = scmp.lt.s32.totalorder %s3646, 63
      %s3648 = scalar_select %p3647, %s3646, 63
      %s3649 = smul.addr %s3648, 8
      %s3650 = scalar_lea.vmem %s3, %s3649
      // Predicated region
      $region33: #{tpu_custom_call.1} parent=31 // pred_check
        %p3651 = pneg %p100
      $region34: #{tpu_custom_call.1} parent=31 // pred_check_branch
        %3653 = sbr.rel (%p3651) target = $region36
      $region35: #{tpu_custom_call.1} parent=31 // pred_region
        %s3654 = smul.u32 32, %s14
      $region36: #{tpu_custom_call.1} parent=31 // pred_fallthru
        _
    $region32: #{tpu_custom_call.1} parent=5 // pred_fallthru
      _
    %p3655 = scmp.le.s32.totalorder 2, %s9
    // Predicated region
    $region37: #{tpu_custom_call.1} parent=5 // pred_check
      %p3656 = pneg %p3655
    $region38: #{tpu_custom_call.1} parent=5 // pred_check_branch
      %3658 = sbr.rel (%p3656) target = $region40
    $region39: #{tpu_custom_call.1} parent=5 // pred_region
      %s3659 = ssub.s32 %s9, 2
      // Predicated region
      $region41: #{tpu_custom_call.1} parent=39 // pred_check
        %p3660 = pneg %p106
      $region42: #{tpu_custom_call.1} parent=39 // pred_check_branch
        %3662 = sbr.rel (%p3660) target = $region44
      $region43: #{tpu_custom_call.1} parent=39 // pred_region
        %s3663 = smul.u32 32, %s15
        %p3664 = scmp.lt.s32.totalorder %s3663, 63
        %s3665 = scalar_select %p3664, %s3663, 63
        %s3666 = smul.addr %s3665, 8
        %s3667 = scalar_lea.vmem %s3, %s3666
      $region44: #{tpu_custom_call.1} parent=39 // pred_fallthru
        _
    $region40: #{tpu_custom_call.1} parent=5 // pred_fallthru
      _
  $region6: #{tpu_custom_call.1} parent=0 // loop_footer
    %s13 = sadd.s32 1, %s9
  $region7: #{tpu_custom_call.1} parent=0 // loop_footer_branch
    %8 = sbr.rel target = $region3
  $region8: #{tpu_custom_call.1} parent=0 // loop_exit
    _

</llo_original>
